<compile_context>
chip_gen: v7x
topology: tpu7x:2x2x1
jax: 0.10.0
libtpu: 0.0.40
codegen_flags: <defaults>
</compile_context>

<pallas_src>
import numpy as np
import jax
import jax.numpy as jnp
from jax.experimental import pallas as pl
from jax.experimental.pallas import tpu as pltpu

_INV_SQRT2 = 0.7071067811865476


def _erf_approx(x):
    # Abramowitz & Stegun 7.1.26 (max abs error ~1.5e-7); only exp/mul/add/where.
    a1, a2, a3, a4, a5 = 0.254829592, -0.284496736, 1.421413741, -1.453152027, 1.061405429
    p = 0.3275911
    ax = jnp.abs(x)
    t = 1.0 / (1.0 + p * ax)
    poly = ((((a5 * t + a4) * t + a3) * t + a2) * t + a1) * t
    y = 1.0 - poly * jnp.exp(-ax * ax)
    return jnp.where(x >= 0, y, -y)


def _gelu_exact(x):
    # exact GELU (torch nn.GELU default): 0.5*x*(1+erf(x/sqrt(2)))
    return 0.5 * x * (1.0 + _erf_approx(x * _INV_SQRT2))


# ----------------------------------------------------------------------------
# The single fused Pallas kernel
# ----------------------------------------------------------------------------
def _encoder_kernel(x_ref,
                    p1, n1, c1, p2, n2, c2, p3, n3, c3, p4, n4, c4, p5, n5, c5,
                    ph, g, bh,
                    out_ref):
    """Whole CNNEncoder forward; all operands are small and VMEM-resident.

    Conv layer l:  Y_l = GELU( sum_kh  P_l[kh] @ X @ N_l[kh]  + Bias_l )
    Fused heads:   [mean | log_std] = bh + sum_h (Ph[h] @ Y5) @ G[h]
    """
    def conv_layer(x, p_ref, n_ref, bias_ref):
        acc = bias_ref[...]
        for t in range(p_ref.shape[0]):               # static unroll (3*Cin taps)
            rows = jnp.dot(p_ref[t], x, preferred_element_type=jnp.float32)
            acc = acc + jnp.dot(rows, n_ref[t], preferred_element_type=jnp.float32)
        return _gelu_exact(acc)

    h = x_ref[...].astype(jnp.float32)
    h = conv_layer(h, p1, n1, c1)
    h = conv_layer(h, p2, n2, c2)
    h = conv_layer(h, p3, n3, c3)
    h = conv_layer(h, p4, n4, c4)
    h = conv_layer(h, p5, n5, c5)

    acc = jnp.zeros(out_ref.shape, jnp.float32) + bh[...]
    for t in range(ph.shape[0]):                      # static unroll (4 feature rows)
        row = jnp.dot(ph[t], h, preferred_element_type=jnp.float32)
        acc = acc + jnp.dot(row, g[t], preferred_element_type=jnp.float32)
    out_ref[...] = acc


def _encoder_pallas_call(x2d, ops, batch, z2):
    n_in = 1 + len(ops)
    return pl.pallas_call(
        _encoder_kernel,
        out_shape=jax.ShapeDtypeStruct((batch, z2), jnp.float32),
        in_specs=[pl.BlockSpec(memory_space=pltpu.MemorySpace.VMEM)] * n_in,
        out_specs=pl.BlockSpec(memory_space=pltpu.MemorySpace.VMEM),
    )(x2d, *ops)


# ----------------------------------------------------------------------------
# One-time operand preparation (PyTorch layouts -> kernel matrices), pure NumPy.
# ----------------------------------------------------------------------------
def _conv_out_size(h, w, stride):
    return (h + 2 - 3) // stride + 1, (w + 2 - 3) // stride + 1


def _build_bias_np(b_t, batch, ho, wo, c_out):
    """Bias placed only at interior (non-padding) rows / lane blocks."""
    hp_o, wp_o = ho + 2, wo + 2
    b_np = np.asarray(b_t, np.float32)
    lane = np.zeros((wp_o * c_out,), np.float32)
    for ow in range(wo):
        lane[(ow + 1) * c_out:(ow + 2) * c_out] = b_np
    row_mask = np.zeros((batch * hp_o, 1), np.float32)
    for b in range(batch):
        row_mask[b * hp_o + 1: b * hp_o + 1 + ho, 0] = 1.0
    return row_mask * lane[None, :]


def _build_first_conv_ops(w_t, b_t, batch, c_in, h_in, w_in, stride):
    """First conv consumes the raw NCHW input reshaped (for free) to [B*Cin*H, W]."""
    w_np = np.asarray(w_t, np.float32)                 # [Cout, Cin, 3, 3]
    c_out = w_np.shape[0]
    ho, wo = _conv_out_size(h_in, w_in, stride)
    hp_o, wp_o = ho + 2, wo + 2
    n_terms = 3 * c_in

    p = np.zeros((n_terms, batch * hp_o, batch * c_in * h_in), np.float32)
    n = np.zeros((n_terms, w_in, wp_o * c_out), np.float32)
    for kh in range(3):
        for ci in range(c_in):
            t = kh * c_in + ci
            for b in range(batch):
                for oh in range(ho):
                    ih = oh * stride + kh - 1
                    if 0 <= ih < h_in:
                        p[t, b * hp_o + oh + 1, (b * c_in + ci) * h_in + ih] = 1.0
            for kw in range(3):
                for ow in range(wo):
                    iw = ow * stride + kw - 1
                    if 0 <= iw < w_in:
                        n[t, iw, (ow + 1) * c_out:(ow + 2) * c_out] += w_np[:, ci, kh, kw]
    return p, n, _build_bias_np(b_t, batch, ho, wo, c_out), (ho, wo, c_out)


def _build_conv_ops(w_t, b_t, batch, h_in, w_in, c_in, stride):
    """Conv layers 2..5 consume the previous layer's padded output [B*(H+2), (W+2)*C]."""
    w_np = np.asarray(w_t, np.float32)                 # [Cout, Cin, 3, 3]
    c_out = w_np.shape[0]
    ho, wo = _conv_out_size(h_in, w_in, stride)
    hp_i, wp_i = h_in + 2, w_in + 2
    hp_o, wp_o = ho + 2, wo + 2

    p = np.zeros((3, batch * hp_o, batch * hp_i), np.float32)
    n = np.zeros((3, wp_i * c_in, wp_o * c_out), np.float32)
    for kh in range(3):
        for b in range(batch):
            for oh in range(ho):
                p[kh, b * hp_o + oh + 1, b * hp_i + oh * stride + kh] = 1.0
        for kw in range(3):
            w_kk = w_np[:, :, kh, kw].T                # [Cin, Cout]
            for ow in range(wo):
                ip = ow * stride + kw                  # padded input column index
                n[kh, ip * c_in:(ip + 1) * c_in,
                      (ow + 1) * c_out:(ow + 2) * c_out] += w_kk
    return p, n, _build_bias_np(b_t, batch, ho, wo, c_out), (ho, wo, c_out)


def _build_head_ops(w_mean, b_mean, w_std, b_std, batch, h_f, w_f, c_f):
    """Fused linear heads; torch nn.Flatten-on-NCHW ordering folded into G."""
    wm = np.asarray(w_mean, np.float32)                # [z, feat]
    ws = np.asarray(w_std, np.float32)
    z = wm.shape[0]
    hp, wp = h_f + 2, w_f + 2

    ph = np.zeros((h_f, batch, batch * hp), np.float32)
    for h in range(h_f):
        for b in range(batch):
            ph[h, b, b * hp + h + 1] = 1.0

    g = np.zeros((h_f, wp * c_f, 2 * z), np.float32)
    for h in range(h_f):
        for w in range(w_f):
            for c in range(c_f):
                feat_idx = c * (h_f * w_f) + h * w_f + w   # torch flatten index (NCHW)
                lane = (w + 1) * c_f + c
                g[h, lane, :z] = wm[:, feat_idx]
                g[h, lane, z:] = ws[:, feat_idx]
    b_cat = np.concatenate([np.asarray(b_mean, np.float32),
                            np.asarray(b_std, np.float32)]).reshape(1, 2 * z)
    return ph, g, b_cat


def prepare_operands(params, batch, num_input_channels, height, width):
    """One-time conversion of PyTorch-layout parameters into the constant matrices
    consumed by the fused kernel (specialized to the input shape, like a jit trace)."""
    convs = params["convs"]
    w0, b0, s0 = convs[0]
    p, n, c, (hc, wc, cc) = _build_first_conv_ops(
        w0, b0, batch, num_input_channels, height, width, s0)
    ops = [p, n, c]
    for (w, b, s) in convs[1:]:
        p, n, c, (hc, wc, cc) = _build_conv_ops(w, b, batch, hc, wc, cc, s)
        ops.extend([p, n, c])
    ph, g, bh = _build_head_ops(params["mean_w"], params["mean_b"],
                                params["std_w"], params["std_b"],
                                batch, hc, wc, cc)
    ops.extend([ph, g, bh])
    return tuple(jnp.asarray(o, jnp.float32) for o in ops)


# ----------------------------------------------------------------------------
# Parameters (PyTorch layouts), forward pass and a pure-JAX reference
# ----------------------------------------------------------------------------
def init_params(key, num_input_channels, num_filters, z_dim):
    """Synthetic parameters in PyTorch layouts: conv weight [Cout,Cin,3,3], linear [out,in]."""
    c = num_filters
    conv_defs = [
        (num_input_channels, c, 2),
        (c, c, 1),
        (c, 2 * c, 2),
        (2 * c, 2 * c, 1),
        (2 * c, 2 * c, 2),
    ]
    keys = jax.random.split(key, len(conv_defs) + 2)
    convs = []
    for i, (ci, co, s) in enumerate(conv_defs):
        w = jax.random.normal(keys[i], (co, ci, 3, 3), jnp.float32) / np.sqrt(9.0 * ci)
        b = 0.01 * jax.random.normal(keys[i], (co,), jnp.float32)
        convs.append((w, b, s))
    feat_dim = 2 * 16 * c   # module hard-codes 2*16*c_hid => 32x32 input
    w_mean = jax.random.normal(keys[-2], (z_dim, feat_dim), jnp.float32) / np.sqrt(feat_dim)
    w_std = jax.random.normal(keys[-1], (z_dim, feat_dim), jnp.float32) / np.sqrt(feat_dim)
    return {"convs": convs,
            "mean_w": w_mean, "mean_b": jnp.zeros((z_dim,), jnp.float32),
            "std_w": w_std, "std_b": jnp.zeros((z_dim,), jnp.float32)}


def cnn_encoder_forward(ops, x_nchw):
    """x_nchw: [B, C, H, W] in [0, 1]. Returns (mean, log_std), each [B, z_dim]."""
    b, c, h, w = x_nchw.shape
    x2d = x_nchw.reshape(b * c * h, w).astype(jnp.float32)  # free reshape; layout folded into P/N
    z2 = ops[-1].shape[-1]
    out = _encoder_pallas_call(x2d, ops, b, z2)              # [B, 2*z] (mean | log_std)
    z = z2 // 2
    return out[:, :z], out[:, z:]


def reference_forward(params, x):
    """Pure-JAX (XLA) reference mirroring the PyTorch module, for validation."""
    h = x.astype(jnp.float32)
    for (w, b, s) in params["convs"]:
        h = jax.lax.conv_general_dilated(
            h, w, window_strides=(s, s), padding=((1, 1), (1, 1)),
            dimension_numbers=("NCHW", "OIHW", "NCHW"),
            precision=jax.lax.Precision.HIGHEST)
        h = jax.nn.gelu(h + b.reshape(1, -1, 1, 1), approximate=False)
    feat = h.reshape(h.shape[0], -1)
    mean = jnp.dot(feat, params["mean_w"].T,
                   precision=jax.lax.Precision.HIGHEST) + params["mean_b"]
    log_std = jnp.dot(feat, params["std_w"].T,
                      precision=jax.lax.Precision.HIGHEST) + params["std_b"]
    return mean, log_std


if __name__ == "__main__":
    # Flatten dim is hard-coded to 2*16*c_hid in the module => 32x32 input (MNIST-like).
    B, C_IN, H, W = 2, 1, 32, 32
    NUM_FILTERS, Z_DIM = 8, 8

    key = jax.random.PRNGKey(0)
    k_params, k_x = jax.random.split(key)
    params = init_params(k_params, C_IN, NUM_FILTERS, Z_DIM)
    x = jax.random.uniform(k_x, (B, C_IN, H, W), jnp.float32)  # images in [0, 1]

    ops = prepare_operands(params, B, C_IN, H, W)   # one-time weight preprocessing
    fwd = jax.jit(cnn_encoder_forward)
    mean, log_std = fwd(ops, x)
    jax.block_until_ready((mean, log_std))

    assert mean.shape == (B, Z_DIM) and log_std.shape == (B, Z_DIM)
    assert bool(jnp.all(jnp.isfinite(mean))) and bool(jnp.all(jnp.isfinite(log_std)))

    # Validate against a pure-JAX reference of the PyTorch module.
    ref_mean, ref_log_std = reference_forward(params, x)
    np.testing.assert_allclose(np.asarray(mean), np.asarray(ref_mean),
                               atol=2e-2, rtol=2e-2)
    np.testing.assert_allclose(np.asarray(log_std), np.asarray(ref_log_std),
                               atol=2e-2, rtol=2e-2)
    print("KERNEL_OK")
</pallas_src>

<mosaic_0001>
module attributes {stable_mosaic.version = 11 : i64} {
  func.func @_encoder_kernel(%arg0: memref<64x32xf32, #tpu.memory_space<vmem>>, %arg1: memref<3x36x64xf32, #tpu.memory_space<vmem>>, %arg2: memref<3x32x144xf32, #tpu.memory_space<vmem>>, %arg3: memref<36x144xf32, #tpu.memory_space<vmem>>, %arg4: memref<3x36x36xf32, #tpu.memory_space<vmem>>, %arg5: memref<3x144x144xf32, #tpu.memory_space<vmem>>, %arg6: memref<36x144xf32, #tpu.memory_space<vmem>>, %arg7: memref<3x20x36xf32, #tpu.memory_space<vmem>>, %arg8: memref<3x144x160xf32, #tpu.memory_space<vmem>>, %arg9: memref<20x160xf32, #tpu.memory_space<vmem>>, %arg10: memref<3x20x20xf32, #tpu.memory_space<vmem>>, %arg11: memref<3x160x160xf32, #tpu.memory_space<vmem>>, %arg12: memref<20x160xf32, #tpu.memory_space<vmem>>, %arg13: memref<3x12x20xf32, #tpu.memory_space<vmem>>, %arg14: memref<3x160x96xf32, #tpu.memory_space<vmem>>, %arg15: memref<12x96xf32, #tpu.memory_space<vmem>>, %arg16: memref<4x2x12xf32, #tpu.memory_space<vmem>>, %arg17: memref<4x96x16xf32, #tpu.memory_space<vmem>>, %arg18: memref<1x16xf32, #tpu.memory_space<vmem>>, %arg19: memref<2x16xf32, #tpu.memory_space<vmem>>) attributes {dimension_semantics = [], scalar_prefetch = 0 : i64, scratch_operands = 0 : i64, tpu.core_type = #tpu.core_type<tc>} {
    %c0 = arith.constant 0 : index
    %c0_0 = arith.constant 0 : index
    %0 = vector.load %arg0[%c0, %c0_0] : memref<64x32xf32, #tpu.memory_space<vmem>>, vector<64x32xf32>
    %c0_1 = arith.constant 0 : index
    %c0_2 = arith.constant 0 : index
    %1 = vector.load %arg3[%c0_1, %c0_2] : memref<36x144xf32, #tpu.memory_space<vmem>>, vector<36x144xf32>
    %c0_3 = arith.constant 0 : index
    %c0_4 = arith.constant 0 : index
    %c0_5 = arith.constant 0 : index
    %2 = vector.load %arg1[%c0_3, %c0_4, %c0_5] : memref<3x36x64xf32, #tpu.memory_space<vmem>>, vector<1x36x64xf32>
    %3 = vector.shape_cast %2 : vector<1x36x64xf32> to vector<36x64xf32>
    %cst = arith.constant dense<0.000000e+00> : vector<36x32xf32>
    %4 = tpu.matmul %3, %0, %cst {dimension_numbers = #tpu.dot_dimension_numbers<[1], [0], [0], [1], [0, 0, 1, 1], [], []>} : vector<36x64xf32>, vector<64x32xf32>, vector<36x32xf32> -> vector<36x32xf32>
    %c0_6 = arith.constant 0 : index
    %c0_7 = arith.constant 0 : index
    %c0_8 = arith.constant 0 : index
    %5 = vector.load %arg2[%c0_6, %c0_7, %c0_8] : memref<3x32x144xf32, #tpu.memory_space<vmem>>, vector<1x32x144xf32>
    %6 = vector.shape_cast %5 : vector<1x32x144xf32> to vector<32x144xf32>
    %cst_9 = arith.constant dense<0.000000e+00> : vector<36x144xf32>
    %7 = tpu.matmul %4, %6, %cst_9 {dimension_numbers = #tpu.dot_dimension_numbers<[1], [0], [0], [1], [0, 0, 1, 1], [], []>} : vector<36x32xf32>, vector<32x144xf32>, vector<36x144xf32> -> vector<36x144xf32>
    %8 = arith.addf %1, %7 : vector<36x144xf32>
    %c1 = arith.constant 1 : index
    %c0_10 = arith.constant 0 : index
    %c0_11 = arith.constant 0 : index
    %9 = vector.load %arg1[%c1, %c0_10, %c0_11] : memref<3x36x64xf32, #tpu.memory_space<vmem>>, vector<1x36x64xf32>
    %10 = vector.shape_cast %9 : vector<1x36x64xf32> to vector<36x64xf32>
    %cst_12 = arith.constant dense<0.000000e+00> : vector<36x32xf32>
    %11 = tpu.matmul %10, %0, %cst_12 {dimension_numbers = #tpu.dot_dimension_numbers<[1], [0], [0], [1], [0, 0, 1, 1], [], []>} : vector<36x64xf32>, vector<64x32xf32>, vector<36x32xf32> -> vector<36x32xf32>
    %c1_13 = arith.constant 1 : index
    %c0_14 = arith.constant 0 : index
    %c0_15 = arith.constant 0 : index
    %12 = vector.load %arg2[%c1_13, %c0_14, %c0_15] : memref<3x32x144xf32, #tpu.memory_space<vmem>>, vector<1x32x144xf32>
    %13 = vector.shape_cast %12 : vector<1x32x144xf32> to vector<32x144xf32>
    %cst_16 = arith.constant dense<0.000000e+00> : vector<36x144xf32>
    %14 = tpu.matmul %11, %13, %cst_16 {dimension_numbers = #tpu.dot_dimension_numbers<[1], [0], [0], [1], [0, 0, 1, 1], [], []>} : vector<36x32xf32>, vector<32x144xf32>, vector<36x144xf32> -> vector<36x144xf32>
    %15 = arith.addf %8, %14 : vector<36x144xf32>
    %c2 = arith.constant 2 : index
    %c0_17 = arith.constant 0 : index
    %c0_18 = arith.constant 0 : index
    %16 = vector.load %arg1[%c2, %c0_17, %c0_18] : memref<3x36x64xf32, #tpu.memory_space<vmem>>, vector<1x36x64xf32>
    %17 = vector.shape_cast %16 : vector<1x36x64xf32> to vector<36x64xf32>
    %cst_19 = arith.constant dense<0.000000e+00> : vector<36x32xf32>
    %18 = tpu.matmul %17, %0, %cst_19 {dimension_numbers = #tpu.dot_dimension_numbers<[1], [0], [0], [1], [0, 0, 1, 1], [], []>} : vector<36x64xf32>, vector<64x32xf32>, vector<36x32xf32> -> vector<36x32xf32>
    %c2_20 = arith.constant 2 : index
    %c0_21 = arith.constant 0 : index
    %c0_22 = arith.constant 0 : index
    %19 = vector.load %arg2[%c2_20, %c0_21, %c0_22] : memref<3x32x144xf32, #tpu.memory_space<vmem>>, vector<1x32x144xf32>
    %20 = vector.shape_cast %19 : vector<1x32x144xf32> to vector<32x144xf32>
    %cst_23 = arith.constant dense<0.000000e+00> : vector<36x144xf32>
    %21 = tpu.matmul %18, %20, %cst_23 {dimension_numbers = #tpu.dot_dimension_numbers<[1], [0], [0], [1], [0, 0, 1, 1], [], []>} : vector<36x32xf32>, vector<32x144xf32>, vector<36x144xf32> -> vector<36x144xf32>
    %22 = arith.addf %15, %21 : vector<36x144xf32>
    %cst_24 = arith.constant 5.000000e-01 : f32
    %23 = vector.broadcast %cst_24 : f32 to vector<36x144xf32>
    %24 = arith.mulf %23, %22 : vector<36x144xf32>
    %cst_25 = arith.constant 0.707106769 : f32
    %25 = vector.broadcast %cst_25 : f32 to vector<36x144xf32>
    %26 = arith.mulf %22, %25 : vector<36x144xf32>
    %27 = math.absf %26 : vector<36x144xf32>
    %cst_26 = arith.constant 0.327591091 : f32
    %28 = vector.broadcast %cst_26 : f32 to vector<36x144xf32>
    %29 = arith.mulf %28, %27 : vector<36x144xf32>
    %cst_27 = arith.constant 1.000000e+00 : f32
    %30 = vector.broadcast %cst_27 : f32 to vector<36x144xf32>
    %31 = arith.addf %30, %29 : vector<36x144xf32>
    %cst_28 = arith.constant 1.000000e+00 : f32
    %32 = vector.broadcast %cst_28 : f32 to vector<36x144xf32>
    %33 = arith.divf %32, %31 : vector<36x144xf32>
    %cst_29 = arith.constant 1.06140542 : f32
    %34 = vector.broadcast %cst_29 : f32 to vector<36x144xf32>
    %35 = arith.mulf %34, %33 : vector<36x144xf32>
    %cst_30 = arith.constant -1.45315206 : f32
    %36 = vector.broadcast %cst_30 : f32 to vector<36x144xf32>
    %37 = arith.addf %35, %36 : vector<36x144xf32>
    %38 = arith.mulf %37, %33 : vector<36x144xf32>
    %cst_31 = arith.constant 1.42141378 : f32
    %39 = vector.broadcast %cst_31 : f32 to vector<36x144xf32>
    %40 = arith.addf %38, %39 : vector<36x144xf32>
    %41 = arith.mulf %40, %33 : vector<36x144xf32>
    %cst_32 = arith.constant -0.284496725 : f32
    %42 = vector.broadcast %cst_32 : f32 to vector<36x144xf32>
    %43 = arith.addf %41, %42 : vector<36x144xf32>
    %44 = arith.mulf %43, %33 : vector<36x144xf32>
    %cst_33 = arith.constant 0.254829586 : f32
    %45 = vector.broadcast %cst_33 : f32 to vector<36x144xf32>
    %46 = arith.addf %44, %45 : vector<36x144xf32>
    %47 = arith.mulf %46, %33 : vector<36x144xf32>
    %cst_34 = arith.constant 0.000000e+00 : f32
    %48 = vector.broadcast %cst_34 : f32 to vector<36x144xf32>
    %49 = arith.subf %48, %27 : vector<36x144xf32>
    %50 = arith.mulf %49, %27 : vector<36x144xf32>
    %51 = math.exp %50 : vector<36x144xf32>
    %52 = arith.mulf %47, %51 : vector<36x144xf32>
    %cst_35 = arith.constant 1.000000e+00 : f32
    %53 = vector.broadcast %cst_35 : f32 to vector<36x144xf32>
    %54 = arith.subf %53, %52 : vector<36x144xf32>
    %cst_36 = arith.constant 0.000000e+00 : f32
    %55 = vector.broadcast %cst_36 : f32 to vector<36x144xf32>
    %56 = arith.cmpf oge, %26, %55 : vector<36x144xf32>
    %cst_37 = arith.constant 0.000000e+00 : f32
    %57 = vector.broadcast %cst_37 : f32 to vector<36x144xf32>
    %58 = arith.subf %57, %54 : vector<36x144xf32>
    %59 = arith.select %56, %54, %58 : vector<36x144xi1>, vector<36x144xf32>
    %cst_38 = arith.constant 1.000000e+00 : f32
    %60 = vector.broadcast %cst_38 : f32 to vector<36x144xf32>
    %61 = arith.addf %60, %59 : vector<36x144xf32>
    %62 = arith.mulf %24, %61 : vector<36x144xf32>
    %c0_39 = arith.constant 0 : index
    %c0_40 = arith.constant 0 : index
    %63 = vector.load %arg6[%c0_39, %c0_40] : memref<36x144xf32, #tpu.memory_space<vmem>>, vector<36x144xf32>
    %c0_41 = arith.constant 0 : index
    %c0_42 = arith.constant 0 : index
    %c0_43 = arith.constant 0 : index
    %64 = vector.load %arg4[%c0_41, %c0_42, %c0_43] : memref<3x36x36xf32, #tpu.memory_space<vmem>>, vector<1x36x36xf32>
    %65 = vector.shape_cast %64 : vector<1x36x36xf32> to vector<36x36xf32>
    %cst_44 = arith.constant dense<0.000000e+00> : vector<36x144xf32>
    %66 = tpu.matmul %65, %62, %cst_44 {dimension_numbers = #tpu.dot_dimension_numbers<[1], [0], [0], [1], [0, 0, 1, 1], [], []>} : vector<36x36xf32>, vector<36x144xf32>, vector<36x144xf32> -> vector<36x144xf32>
    %c0_45 = arith.constant 0 : index
    %c0_46 = arith.constant 0 : index
    %c0_47 = arith.constant 0 : index
    %67 = vector.load %arg5[%c0_45, %c0_46, %c0_47] : memref<3x144x144xf32, #tpu.memory_space<vmem>>, vector<1x144x144xf32>
    %68 = vector.shape_cast %67 : vector<1x144x144xf32> to vector<144x144xf32>
    %cst_48 = arith.constant dense<0.000000e+00> : vector<36x144xf32>
    %69 = tpu.matmul %66, %68, %cst_48 {dimension_numbers = #tpu.dot_dimension_numbers<[1], [0], [0], [1], [0, 0, 1, 1], [], []>} : vector<36x144xf32>, vector<144x144xf32>, vector<36x144xf32> -> vector<36x144xf32>
    %70 = arith.addf %63, %69 : vector<36x144xf32>
    %c1_49 = arith.constant 1 : index
    %c0_50 = arith.constant 0 : index
    %c0_51 = arith.constant 0 : index
    %71 = vector.load %arg4[%c1_49, %c0_50, %c0_51] : memref<3x36x36xf32, #tpu.memory_space<vmem>>, vector<1x36x36xf32>
    %72 = vector.shape_cast %71 : vector<1x36x36xf32> to vector<36x36xf32>
    %cst_52 = arith.constant dense<0.000000e+00> : vector<36x144xf32>
    %73 = tpu.matmul %72, %62, %cst_52 {dimension_numbers = #tpu.dot_dimension_numbers<[1], [0], [0], [1], [0, 0, 1, 1], [], []>} : vector<36x36xf32>, vector<36x144xf32>, vector<36x144xf32> -> vector<36x144xf32>
    %c1_53 = arith.constant 1 : index
    %c0_54 = arith.constant 0 : index
    %c0_55 = arith.constant 0 : index
    %74 = vector.load %arg5[%c1_53, %c0_54, %c0_55] : memref<3x144x144xf32, #tpu.memory_space<vmem>>, vector<1x144x144xf32>
    %75 = vector.shape_cast %74 : vector<1x144x144xf32> to vector<144x144xf32>
    %cst_56 = arith.constant dense<0.000000e+00> : vector<36x144xf32>
    %76 = tpu.matmul %73, %75, %cst_56 {dimension_numbers = #tpu.dot_dimension_numbers<[1], [0], [0], [1], [0, 0, 1, 1], [], []>} : vector<36x144xf32>, vector<144x144xf32>, vector<36x144xf32> -> vector<36x144xf32>
    %77 = arith.addf %70, %76 : vector<36x144xf32>
    %c2_57 = arith.constant 2 : index
    %c0_58 = arith.constant 0 : index
    %c0_59 = arith.constant 0 : index
    %78 = vector.load %arg4[%c2_57, %c0_58, %c0_59] : memref<3x36x36xf32, #tpu.memory_space<vmem>>, vector<1x36x36xf32>
    %79 = vector.shape_cast %78 : vector<1x36x36xf32> to vector<36x36xf32>
    %cst_60 = arith.constant dense<0.000000e+00> : vector<36x144xf32>
    %80 = tpu.matmul %79, %62, %cst_60 {dimension_numbers = #tpu.dot_dimension_numbers<[1], [0], [0], [1], [0, 0, 1, 1], [], []>} : vector<36x36xf32>, vector<36x144xf32>, vector<36x144xf32> -> vector<36x144xf32>
    %c2_61 = arith.constant 2 : index
    %c0_62 = arith.constant 0 : index
    %c0_63 = arith.constant 0 : index
    %81 = vector.load %arg5[%c2_61, %c0_62, %c0_63] : memref<3x144x144xf32, #tpu.memory_space<vmem>>, vector<1x144x144xf32>
    %82 = vector.shape_cast %81 : vector<1x144x144xf32> to vector<144x144xf32>
    %cst_64 = arith.constant dense<0.000000e+00> : vector<36x144xf32>
    %83 = tpu.matmul %80, %82, %cst_64 {dimension_numbers = #tpu.dot_dimension_numbers<[1], [0], [0], [1], [0, 0, 1, 1], [], []>} : vector<36x144xf32>, vector<144x144xf32>, vector<36x144xf32> -> vector<36x144xf32>
    %84 = arith.addf %77, %83 : vector<36x144xf32>
    %cst_65 = arith.constant 5.000000e-01 : f32
    %85 = vector.broadcast %cst_65 : f32 to vector<36x144xf32>
    %86 = arith.mulf %85, %84 : vector<36x144xf32>
    %cst_66 = arith.constant 0.707106769 : f32
    %87 = vector.broadcast %cst_66 : f32 to vector<36x144xf32>
    %88 = arith.mulf %84, %87 : vector<36x144xf32>
    %89 = math.absf %88 : vector<36x144xf32>
    %cst_67 = arith.constant 0.327591091 : f32
    %90 = vector.broadcast %cst_67 : f32 to vector<36x144xf32>
    %91 = arith.mulf %90, %89 : vector<36x144xf32>
    %cst_68 = arith.constant 1.000000e+00 : f32
    %92 = vector.broadcast %cst_68 : f32 to vector<36x144xf32>
    %93 = arith.addf %92, %91 : vector<36x144xf32>
    %cst_69 = arith.constant 1.000000e+00 : f32
    %94 = vector.broadcast %cst_69 : f32 to vector<36x144xf32>
    %95 = arith.divf %94, %93 : vector<36x144xf32>
    %cst_70 = arith.constant 1.06140542 : f32
    %96 = vector.broadcast %cst_70 : f32 to vector<36x144xf32>
    %97 = arith.mulf %96, %95 : vector<36x144xf32>
    %cst_71 = arith.constant -1.45315206 : f32
    %98 = vector.broadcast %cst_71 : f32 to vector<36x144xf32>
    %99 = arith.addf %97, %98 : vector<36x144xf32>
    %100 = arith.mulf %99, %95 : vector<36x144xf32>
    %cst_72 = arith.constant 1.42141378 : f32
    %101 = vector.broadcast %cst_72 : f32 to vector<36x144xf32>
    %102 = arith.addf %100, %101 : vector<36x144xf32>
    %103 = arith.mulf %102, %95 : vector<36x144xf32>
    %cst_73 = arith.constant -0.284496725 : f32
    %104 = vector.broadcast %cst_73 : f32 to vector<36x144xf32>
    %105 = arith.addf %103, %104 : vector<36x144xf32>
    %106 = arith.mulf %105, %95 : vector<36x144xf32>
    %cst_74 = arith.constant 0.254829586 : f32
    %107 = vector.broadcast %cst_74 : f32 to vector<36x144xf32>
    %108 = arith.addf %106, %107 : vector<36x144xf32>
    %109 = arith.mulf %108, %95 : vector<36x144xf32>
    %cst_75 = arith.constant 0.000000e+00 : f32
    %110 = vector.broadcast %cst_75 : f32 to vector<36x144xf32>
    %111 = arith.subf %110, %89 : vector<36x144xf32>
    %112 = arith.mulf %111, %89 : vector<36x144xf32>
    %113 = math.exp %112 : vector<36x144xf32>
    %114 = arith.mulf %109, %113 : vector<36x144xf32>
    %cst_76 = arith.constant 1.000000e+00 : f32
    %115 = vector.broadcast %cst_76 : f32 to vector<36x144xf32>
    %116 = arith.subf %115, %114 : vector<36x144xf32>
    %cst_77 = arith.constant 0.000000e+00 : f32
    %117 = vector.broadcast %cst_77 : f32 to vector<36x144xf32>
    %118 = arith.cmpf oge, %88, %117 : vector<36x144xf32>
    %cst_78 = arith.constant 0.000000e+00 : f32
    %119 = vector.broadcast %cst_78 : f32 to vector<36x144xf32>
    %120 = arith.subf %119, %116 : vector<36x144xf32>
    %121 = arith.select %118, %116, %120 : vector<36x144xi1>, vector<36x144xf32>
    %cst_79 = arith.constant 1.000000e+00 : f32
    %122 = vector.broadcast %cst_79 : f32 to vector<36x144xf32>
    %123 = arith.addf %122, %121 : vector<36x144xf32>
    %124 = arith.mulf %86, %123 : vector<36x144xf32>
    %c0_80 = arith.constant 0 : index
    %c0_81 = arith.constant 0 : index
    %125 = vector.load %arg9[%c0_80, %c0_81] : memref<20x160xf32, #tpu.memory_space<vmem>>, vector<20x160xf32>
    %c0_82 = arith.constant 0 : index
    %c0_83 = arith.constant 0 : index
    %c0_84 = arith.constant 0 : index
    %126 = vector.load %arg7[%c0_82, %c0_83, %c0_84] : memref<3x20x36xf32, #tpu.memory_space<vmem>>, vector<1x20x36xf32>
    %127 = vector.shape_cast %126 : vector<1x20x36xf32> to vector<20x36xf32>
    %cst_85 = arith.constant dense<0.000000e+00> : vector<20x144xf32>
    %128 = tpu.matmul %127, %124, %cst_85 {dimension_numbers = #tpu.dot_dimension_numbers<[1], [0], [0], [1], [0, 0, 1, 1], [], []>} : vector<20x36xf32>, vector<36x144xf32>, vector<20x144xf32> -> vector<20x144xf32>
    %c0_86 = arith.constant 0 : index
    %c0_87 = arith.constant 0 : index
    %c0_88 = arith.constant 0 : index
    %129 = vector.load %arg8[%c0_86, %c0_87, %c0_88] : memref<3x144x160xf32, #tpu.memory_space<vmem>>, vector<1x144x160xf32>
    %130 = vector.shape_cast %129 : vector<1x144x160xf32> to vector<144x160xf32>
    %cst_89 = arith.constant dense<0.000000e+00> : vector<20x160xf32>
    %131 = tpu.matmul %128, %130, %cst_89 {dimension_numbers = #tpu.dot_dimension_numbers<[1], [0], [0], [1], [0, 0, 1, 1], [], []>} : vector<20x144xf32>, vector<144x160xf32>, vector<20x160xf32> -> vector<20x160xf32>
    %132 = arith.addf %125, %131 : vector<20x160xf32>
    %c1_90 = arith.constant 1 : index
    %c0_91 = arith.constant 0 : index
    %c0_92 = arith.constant 0 : index
    %133 = vector.load %arg7[%c1_90, %c0_91, %c0_92] : memref<3x20x36xf32, #tpu.memory_space<vmem>>, vector<1x20x36xf32>
    %134 = vector.shape_cast %133 : vector<1x20x36xf32> to vector<20x36xf32>
    %cst_93 = arith.constant dense<0.000000e+00> : vector<20x144xf32>
    %135 = tpu.matmul %134, %124, %cst_93 {dimension_numbers = #tpu.dot_dimension_numbers<[1], [0], [0], [1], [0, 0, 1, 1], [], []>} : vector<20x36xf32>, vector<36x144xf32>, vector<20x144xf32> -> vector<20x144xf32>
    %c1_94 = arith.constant 1 : index
    %c0_95 = arith.constant 0 : index
    %c0_96 = arith.constant 0 : index
    %136 = vector.load %arg8[%c1_94, %c0_95, %c0_96] : memref<3x144x160xf32, #tpu.memory_space<vmem>>, vector<1x144x160xf32>
    %137 = vector.shape_cast %136 : vector<1x144x160xf32> to vector<144x160xf32>
    %cst_97 = arith.constant dense<0.000000e+00> : vector<20x160xf32>
    %138 = tpu.matmul %135, %137, %cst_97 {dimension_numbers = #tpu.dot_dimension_numbers<[1], [0], [0], [1], [0, 0, 1, 1], [], []>} : vector<20x144xf32>, vector<144x160xf32>, vector<20x160xf32> -> vector<20x160xf32>
    %139 = arith.addf %132, %138 : vector<20x160xf32>
    %c2_98 = arith.constant 2 : index
    %c0_99 = arith.constant 0 : index
    %c0_100 = arith.constant 0 : index
    %140 = vector.load %arg7[%c2_98, %c0_99, %c0_100] : memref<3x20x36xf32, #tpu.memory_space<vmem>>, vector<1x20x36xf32>
    %141 = vector.shape_cast %140 : vector<1x20x36xf32> to vector<20x36xf32>
    %cst_101 = arith.constant dense<0.000000e+00> : vector<20x144xf32>
    %142 = tpu.matmul %141, %124, %cst_101 {dimension_numbers = #tpu.dot_dimension_numbers<[1], [0], [0], [1], [0, 0, 1, 1], [], []>} : vector<20x36xf32>, vector<36x144xf32>, vector<20x144xf32> -> vector<20x144xf32>
    %c2_102 = arith.constant 2 : index
    %c0_103 = arith.constant 0 : index
    %c0_104 = arith.constant 0 : index
    %143 = vector.load %arg8[%c2_102, %c0_103, %c0_104] : memref<3x144x160xf32, #tpu.memory_space<vmem>>, vector<1x144x160xf32>
    %144 = vector.shape_cast %143 : vector<1x144x160xf32> to vector<144x160xf32>
    %cst_105 = arith.constant dense<0.000000e+00> : vector<20x160xf32>
    %145 = tpu.matmul %142, %144, %cst_105 {dimension_numbers = #tpu.dot_dimension_numbers<[1], [0], [0], [1], [0, 0, 1, 1], [], []>} : vector<20x144xf32>, vector<144x160xf32>, vector<20x160xf32> -> vector<20x160xf32>
    %146 = arith.addf %139, %145 : vector<20x160xf32>
    %cst_106 = arith.constant 5.000000e-01 : f32
    %147 = vector.broadcast %cst_106 : f32 to vector<20x160xf32>
    %148 = arith.mulf %147, %146 : vector<20x160xf32>
    %cst_107 = arith.constant 0.707106769 : f32
    %149 = vector.broadcast %cst_107 : f32 to vector<20x160xf32>
    %150 = arith.mulf %146, %149 : vector<20x160xf32>
    %151 = math.absf %150 : vector<20x160xf32>
    %cst_108 = arith.constant 0.327591091 : f32
    %152 = vector.broadcast %cst_108 : f32 to vector<20x160xf32>
    %153 = arith.mulf %152, %151 : vector<20x160xf32>
    %cst_109 = arith.constant 1.000000e+00 : f32
    %154 = vector.broadcast %cst_109 : f32 to vector<20x160xf32>
    %155 = arith.addf %154, %153 : vector<20x160xf32>
    %cst_110 = arith.constant 1.000000e+00 : f32
    %156 = vector.broadcast %cst_110 : f32 to vector<20x160xf32>
    %157 = arith.divf %156, %155 : vector<20x160xf32>
    %cst_111 = arith.constant 1.06140542 : f32
    %158 = vector.broadcast %cst_111 : f32 to vector<20x160xf32>
    %159 = arith.mulf %158, %157 : vector<20x160xf32>
    %cst_112 = arith.constant -1.45315206 : f32
    %160 = vector.broadcast %cst_112 : f32 to vector<20x160xf32>
    %161 = arith.addf %159, %160 : vector<20x160xf32>
    %162 = arith.mulf %161, %157 : vector<20x160xf32>
    %cst_113 = arith.constant 1.42141378 : f32
    %163 = vector.broadcast %cst_113 : f32 to vector<20x160xf32>
    %164 = arith.addf %162, %163 : vector<20x160xf32>
    %165 = arith.mulf %164, %157 : vector<20x160xf32>
    %cst_114 = arith.constant -0.284496725 : f32
    %166 = vector.broadcast %cst_114 : f32 to vector<20x160xf32>
    %167 = arith.addf %165, %166 : vector<20x160xf32>
    %168 = arith.mulf %167, %157 : vector<20x160xf32>
    %cst_115 = arith.constant 0.254829586 : f32
    %169 = vector.broadcast %cst_115 : f32 to vector<20x160xf32>
    %170 = arith.addf %168, %169 : vector<20x160xf32>
    %171 = arith.mulf %170, %157 : vector<20x160xf32>
    %cst_116 = arith.constant 0.000000e+00 : f32
    %172 = vector.broadcast %cst_116 : f32 to vector<20x160xf32>
    %173 = arith.subf %172, %151 : vector<20x160xf32>
    %174 = arith.mulf %173, %151 : vector<20x160xf32>
    %175 = math.exp %174 : vector<20x160xf32>
    %176 = arith.mulf %171, %175 : vector<20x160xf32>
    %cst_117 = arith.constant 1.000000e+00 : f32
    %177 = vector.broadcast %cst_117 : f32 to vector<20x160xf32>
    %178 = arith.subf %177, %176 : vector<20x160xf32>
    %cst_118 = arith.constant 0.000000e+00 : f32
    %179 = vector.broadcast %cst_118 : f32 to vector<20x160xf32>
    %180 = arith.cmpf oge, %150, %179 : vector<20x160xf32>
    %cst_119 = arith.constant 0.000000e+00 : f32
    %181 = vector.broadcast %cst_119 : f32 to vector<20x160xf32>
    %182 = arith.subf %181, %178 : vector<20x160xf32>
    %183 = arith.select %180, %178, %182 : vector<20x160xi1>, vector<20x160xf32>
    %cst_120 = arith.constant 1.000000e+00 : f32
    %184 = vector.broadcast %cst_120 : f32 to vector<20x160xf32>
    %185 = arith.addf %184, %183 : vector<20x160xf32>
    %186 = arith.mulf %148, %185 : vector<20x160xf32>
    %c0_121 = arith.constant 0 : index
    %c0_122 = arith.constant 0 : index
    %187 = vector.load %arg12[%c0_121, %c0_122] : memref<20x160xf32, #tpu.memory_space<vmem>>, vector<20x160xf32>
    %c0_123 = arith.constant 0 : index
    %c0_124 = arith.constant 0 : index
    %c0_125 = arith.constant 0 : index
    %188 = vector.load %arg10[%c0_123, %c0_124, %c0_125] : memref<3x20x20xf32, #tpu.memory_space<vmem>>, vector<1x20x20xf32>
    %189 = vector.shape_cast %188 : vector<1x20x20xf32> to vector<20x20xf32>
    %cst_126 = arith.constant dense<0.000000e+00> : vector<20x160xf32>
    %190 = tpu.matmul %189, %186, %cst_126 {dimension_numbers = #tpu.dot_dimension_numbers<[1], [0], [0], [1], [0, 0, 1, 1], [], []>} : vector<20x20xf32>, vector<20x160xf32>, vector<20x160xf32> -> vector<20x160xf32>
    %c0_127 = arith.constant 0 : index
    %c0_128 = arith.constant 0 : index
    %c0_129 = arith.constant 0 : index
    %191 = vector.load %arg11[%c0_127, %c0_128, %c0_129] : memref<3x160x160xf32, #tpu.memory_space<vmem>>, vector<1x160x160xf32>
    %192 = vector.shape_cast %191 : vector<1x160x160xf32> to vector<160x160xf32>
    %cst_130 = arith.constant dense<0.000000e+00> : vector<20x160xf32>
    %193 = tpu.matmul %190, %192, %cst_130 {dimension_numbers = #tpu.dot_dimension_numbers<[1], [0], [0], [1], [0, 0, 1, 1], [], []>} : vector<20x160xf32>, vector<160x160xf32>, vector<20x160xf32> -> vector<20x160xf32>
    %194 = arith.addf %187, %193 : vector<20x160xf32>
    %c1_131 = arith.constant 1 : index
    %c0_132 = arith.constant 0 : index
    %c0_133 = arith.constant 0 : index
    %195 = vector.load %arg10[%c1_131, %c0_132, %c0_133] : memref<3x20x20xf32, #tpu.memory_space<vmem>>, vector<1x20x20xf32>
    %196 = vector.shape_cast %195 : vector<1x20x20xf32> to vector<20x20xf32>
    %cst_134 = arith.constant dense<0.000000e+00> : vector<20x160xf32>
    %197 = tpu.matmul %196, %186, %cst_134 {dimension_numbers = #tpu.dot_dimension_numbers<[1], [0], [0], [1], [0, 0, 1, 1], [], []>} : vector<20x20xf32>, vector<20x160xf32>, vector<20x160xf32> -> vector<20x160xf32>
    %c1_135 = arith.constant 1 : index
    %c0_136 = arith.constant 0 : index
    %c0_137 = arith.constant 0 : index
    %198 = vector.load %arg11[%c1_135, %c0_136, %c0_137] : memref<3x160x160xf32, #tpu.memory_space<vmem>>, vector<1x160x160xf32>
    %199 = vector.shape_cast %198 : vector<1x160x160xf32> to vector<160x160xf32>
    %cst_138 = arith.constant dense<0.000000e+00> : vector<20x160xf32>
    %200 = tpu.matmul %197, %199, %cst_138 {dimension_numbers = #tpu.dot_dimension_numbers<[1], [0], [0], [1], [0, 0, 1, 1], [], []>} : vector<20x160xf32>, vector<160x160xf32>, vector<20x160xf32> -> vector<20x160xf32>
    %201 = arith.addf %194, %200 : vector<20x160xf32>
    %c2_139 = arith.constant 2 : index
    %c0_140 = arith.constant 0 : index
    %c0_141 = arith.constant 0 : index
    %202 = vector.load %arg10[%c2_139, %c0_140, %c0_141] : memref<3x20x20xf32, #tpu.memory_space<vmem>>, vector<1x20x20xf32>
    %203 = vector.shape_cast %202 : vector<1x20x20xf32> to vector<20x20xf32>
    %cst_142 = arith.constant dense<0.000000e+00> : vector<20x160xf32>
    %204 = tpu.matmul %203, %186, %cst_142 {dimension_numbers = #tpu.dot_dimension_numbers<[1], [0], [0], [1], [0, 0, 1, 1], [], []>} : vector<20x20xf32>, vector<20x160xf32>, vector<20x160xf32> -> vector<20x160xf32>
    %c2_143 = arith.constant 2 : index
    %c0_144 = arith.constant 0 : index
    %c0_145 = arith.constant 0 : index
    %205 = vector.load %arg11[%c2_143, %c0_144, %c0_145] : memref<3x160x160xf32, #tpu.memory_space<vmem>>, vector<1x160x160xf32>
    %206 = vector.shape_cast %205 : vector<1x160x160xf32> to vector<160x160xf32>
    %cst_146 = arith.constant dense<0.000000e+00> : vector<20x160xf32>
    %207 = tpu.matmul %204, %206, %cst_146 {dimension_numbers = #tpu.dot_dimension_numbers<[1], [0], [0], [1], [0, 0, 1, 1], [], []>} : vector<20x160xf32>, vector<160x160xf32>, vector<20x160xf32> -> vector<20x160xf32>
    %208 = arith.addf %201, %207 : vector<20x160xf32>
    %cst_147 = arith.constant 5.000000e-01 : f32
    %209 = vector.broadcast %cst_147 : f32 to vector<20x160xf32>
    %210 = arith.mulf %209, %208 : vector<20x160xf32>
    %cst_148 = arith.constant 0.707106769 : f32
    %211 = vector.broadcast %cst_148 : f32 to vector<20x160xf32>
    %212 = arith.mulf %208, %211 : vector<20x160xf32>
    %213 = math.absf %212 : vector<20x160xf32>
    %cst_149 = arith.constant 0.327591091 : f32
    %214 = vector.broadcast %cst_149 : f32 to vector<20x160xf32>
    %215 = arith.mulf %214, %213 : vector<20x160xf32>
    %cst_150 = arith.constant 1.000000e+00 : f32
    %216 = vector.broadcast %cst_150 : f32 to vector<20x160xf32>
    %217 = arith.addf %216, %215 : vector<20x160xf32>
    %cst_151 = arith.constant 1.000000e+00 : f32
    %218 = vector.broadcast %cst_151 : f32 to vector<20x160xf32>
    %219 = arith.divf %218, %217 : vector<20x160xf32>
    %cst_152 = arith.constant 1.06140542 : f32
    %220 = vector.broadcast %cst_152 : f32 to vector<20x160xf32>
    %221 = arith.mulf %220, %219 : vector<20x160xf32>
    %cst_153 = arith.constant -1.45315206 : f32
    %222 = vector.broadcast %cst_153 : f32 to vector<20x160xf32>
    %223 = arith.addf %221, %222 : vector<20x160xf32>
    %224 = arith.mulf %223, %219 : vector<20x160xf32>
    %cst_154 = arith.constant 1.42141378 : f32
    %225 = vector.broadcast %cst_154 : f32 to vector<20x160xf32>
    %226 = arith.addf %224, %225 : vector<20x160xf32>
    %227 = arith.mulf %226, %219 : vector<20x160xf32>
    %cst_155 = arith.constant -0.284496725 : f32
    %228 = vector.broadcast %cst_155 : f32 to vector<20x160xf32>
    %229 = arith.addf %227, %228 : vector<20x160xf32>
    %230 = arith.mulf %229, %219 : vector<20x160xf32>
    %cst_156 = arith.constant 0.254829586 : f32
    %231 = vector.broadcast %cst_156 : f32 to vector<20x160xf32>
    %232 = arith.addf %230, %231 : vector<20x160xf32>
    %233 = arith.mulf %232, %219 : vector<20x160xf32>
    %cst_157 = arith.constant 0.000000e+00 : f32
    %234 = vector.broadcast %cst_157 : f32 to vector<20x160xf32>
    %235 = arith.subf %234, %213 : vector<20x160xf32>
    %236 = arith.mulf %235, %213 : vector<20x160xf32>
    %237 = math.exp %236 : vector<20x160xf32>
    %238 = arith.mulf %233, %237 : vector<20x160xf32>
    %cst_158 = arith.constant 1.000000e+00 : f32
    %239 = vector.broadcast %cst_158 : f32 to vector<20x160xf32>
    %240 = arith.subf %239, %238 : vector<20x160xf32>
    %cst_159 = arith.constant 0.000000e+00 : f32
    %241 = vector.broadcast %cst_159 : f32 to vector<20x160xf32>
    %242 = arith.cmpf oge, %212, %241 : vector<20x160xf32>
    %cst_160 = arith.constant 0.000000e+00 : f32
    %243 = vector.broadcast %cst_160 : f32 to vector<20x160xf32>
    %244 = arith.subf %243, %240 : vector<20x160xf32>
    %245 = arith.select %242, %240, %244 : vector<20x160xi1>, vector<20x160xf32>
    %cst_161 = arith.constant 1.000000e+00 : f32
    %246 = vector.broadcast %cst_161 : f32 to vector<20x160xf32>
    %247 = arith.addf %246, %245 : vector<20x160xf32>
    %248 = arith.mulf %210, %247 : vector<20x160xf32>
    %c0_162 = arith.constant 0 : index
    %c0_163 = arith.constant 0 : index
    %249 = vector.load %arg15[%c0_162, %c0_163] : memref<12x96xf32, #tpu.memory_space<vmem>>, vector<12x96xf32>
    %c0_164 = arith.constant 0 : index
    %c0_165 = arith.constant 0 : index
    %c0_166 = arith.constant 0 : index
    %250 = vector.load %arg13[%c0_164, %c0_165, %c0_166] : memref<3x12x20xf32, #tpu.memory_space<vmem>>, vector<1x12x20xf32>
    %251 = vector.shape_cast %250 : vector<1x12x20xf32> to vector<12x20xf32>
    %cst_167 = arith.constant dense<0.000000e+00> : vector<12x160xf32>
    %252 = tpu.matmul %251, %248, %cst_167 {dimension_numbers = #tpu.dot_dimension_numbers<[1], [0], [0], [1], [0, 0, 1, 1], [], []>} : vector<12x20xf32>, vector<20x160xf32>, vector<12x160xf32> -> vector<12x160xf32>
    %c0_168 = arith.constant 0 : index
    %c0_169 = arith.constant 0 : index
    %c0_170 = arith.constant 0 : index
    %253 = vector.load %arg14[%c0_168, %c0_169, %c0_170] : memref<3x160x96xf32, #tpu.memory_space<vmem>>, vector<1x160x96xf32>
    %254 = vector.shape_cast %253 : vector<1x160x96xf32> to vector<160x96xf32>
    %cst_171 = arith.constant dense<0.000000e+00> : vector<12x96xf32>
    %255 = tpu.matmul %252, %254, %cst_171 {dimension_numbers = #tpu.dot_dimension_numbers<[1], [0], [0], [1], [0, 0, 1, 1], [], []>} : vector<12x160xf32>, vector<160x96xf32>, vector<12x96xf32> -> vector<12x96xf32>
    %256 = arith.addf %249, %255 : vector<12x96xf32>
    %c1_172 = arith.constant 1 : index
    %c0_173 = arith.constant 0 : index
    %c0_174 = arith.constant 0 : index
    %257 = vector.load %arg13[%c1_172, %c0_173, %c0_174] : memref<3x12x20xf32, #tpu.memory_space<vmem>>, vector<1x12x20xf32>
    %258 = vector.shape_cast %257 : vector<1x12x20xf32> to vector<12x20xf32>
    %cst_175 = arith.constant dense<0.000000e+00> : vector<12x160xf32>
    %259 = tpu.matmul %258, %248, %cst_175 {dimension_numbers = #tpu.dot_dimension_numbers<[1], [0], [0], [1], [0, 0, 1, 1], [], []>} : vector<12x20xf32>, vector<20x160xf32>, vector<12x160xf32> -> vector<12x160xf32>
    %c1_176 = arith.constant 1 : index
    %c0_177 = arith.constant 0 : index
    %c0_178 = arith.constant 0 : index
    %260 = vector.load %arg14[%c1_176, %c0_177, %c0_178] : memref<3x160x96xf32, #tpu.memory_space<vmem>>, vector<1x160x96xf32>
    %261 = vector.shape_cast %260 : vector<1x160x96xf32> to vector<160x96xf32>
    %cst_179 = arith.constant dense<0.000000e+00> : vector<12x96xf32>
    %262 = tpu.matmul %259, %261, %cst_179 {dimension_numbers = #tpu.dot_dimension_numbers<[1], [0], [0], [1], [0, 0, 1, 1], [], []>} : vector<12x160xf32>, vector<160x96xf32>, vector<12x96xf32> -> vector<12x96xf32>
    %263 = arith.addf %256, %262 : vector<12x96xf32>
    %c2_180 = arith.constant 2 : index
    %c0_181 = arith.constant 0 : index
    %c0_182 = arith.constant 0 : index
    %264 = vector.load %arg13[%c2_180, %c0_181, %c0_182] : memref<3x12x20xf32, #tpu.memory_space<vmem>>, vector<1x12x20xf32>
    %265 = vector.shape_cast %264 : vector<1x12x20xf32> to vector<12x20xf32>
    %cst_183 = arith.constant dense<0.000000e+00> : vector<12x160xf32>
    %266 = tpu.matmul %265, %248, %cst_183 {dimension_numbers = #tpu.dot_dimension_numbers<[1], [0], [0], [1], [0, 0, 1, 1], [], []>} : vector<12x20xf32>, vector<20x160xf32>, vector<12x160xf32> -> vector<12x160xf32>
    %c2_184 = arith.constant 2 : index
    %c0_185 = arith.constant 0 : index
    %c0_186 = arith.constant 0 : index
    %267 = vector.load %arg14[%c2_184, %c0_185, %c0_186] : memref<3x160x96xf32, #tpu.memory_space<vmem>>, vector<1x160x96xf32>
    %268 = vector.shape_cast %267 : vector<1x160x96xf32> to vector<160x96xf32>
    %cst_187 = arith.constant dense<0.000000e+00> : vector<12x96xf32>
    %269 = tpu.matmul %266, %268, %cst_187 {dimension_numbers = #tpu.dot_dimension_numbers<[1], [0], [0], [1], [0, 0, 1, 1], [], []>} : vector<12x160xf32>, vector<160x96xf32>, vector<12x96xf32> -> vector<12x96xf32>
    %270 = arith.addf %263, %269 : vector<12x96xf32>
    %cst_188 = arith.constant 5.000000e-01 : f32
    %271 = vector.broadcast %cst_188 : f32 to vector<12x96xf32>
    %272 = arith.mulf %271, %270 : vector<12x96xf32>
    %cst_189 = arith.constant 0.707106769 : f32
    %273 = vector.broadcast %cst_189 : f32 to vector<12x96xf32>
    %274 = arith.mulf %270, %273 : vector<12x96xf32>
    %275 = math.absf %274 : vector<12x96xf32>
    %cst_190 = arith.constant 0.327591091 : f32
    %276 = vector.broadcast %cst_190 : f32 to vector<12x96xf32>
    %277 = arith.mulf %276, %275 : vector<12x96xf32>
    %cst_191 = arith.constant 1.000000e+00 : f32
    %278 = vector.broadcast %cst_191 : f32 to vector<12x96xf32>
    %279 = arith.addf %278, %277 : vector<12x96xf32>
    %cst_192 = arith.constant 1.000000e+00 : f32
    %280 = vector.broadcast %cst_192 : f32 to vector<12x96xf32>
    %281 = arith.divf %280, %279 : vector<12x96xf32>
    %cst_193 = arith.constant 1.06140542 : f32
    %282 = vector.broadcast %cst_193 : f32 to vector<12x96xf32>
    %283 = arith.mulf %282, %281 : vector<12x96xf32>
    %cst_194 = arith.constant -1.45315206 : f32
    %284 = vector.broadcast %cst_194 : f32 to vector<12x96xf32>
    %285 = arith.addf %283, %284 : vector<12x96xf32>
    %286 = arith.mulf %285, %281 : vector<12x96xf32>
    %cst_195 = arith.constant 1.42141378 : f32
    %287 = vector.broadcast %cst_195 : f32 to vector<12x96xf32>
    %288 = arith.addf %286, %287 : vector<12x96xf32>
    %289 = arith.mulf %288, %281 : vector<12x96xf32>
    %cst_196 = arith.constant -0.284496725 : f32
    %290 = vector.broadcast %cst_196 : f32 to vector<12x96xf32>
    %291 = arith.addf %289, %290 : vector<12x96xf32>
    %292 = arith.mulf %291, %281 : vector<12x96xf32>
    %cst_197 = arith.constant 0.254829586 : f32
    %293 = vector.broadcast %cst_197 : f32 to vector<12x96xf32>
    %294 = arith.addf %292, %293 : vector<12x96xf32>
    %295 = arith.mulf %294, %281 : vector<12x96xf32>
    %cst_198 = arith.constant 0.000000e+00 : f32
    %296 = vector.broadcast %cst_198 : f32 to vector<12x96xf32>
    %297 = arith.subf %296, %275 : vector<12x96xf32>
    %298 = arith.mulf %297, %275 : vector<12x96xf32>
    %299 = math.exp %298 : vector<12x96xf32>
    %300 = arith.mulf %295, %299 : vector<12x96xf32>
    %cst_199 = arith.constant 1.000000e+00 : f32
    %301 = vector.broadcast %cst_199 : f32 to vector<12x96xf32>
    %302 = arith.subf %301, %300 : vector<12x96xf32>
    %cst_200 = arith.constant 0.000000e+00 : f32
    %303 = vector.broadcast %cst_200 : f32 to vector<12x96xf32>
    %304 = arith.cmpf oge, %274, %303 : vector<12x96xf32>
    %cst_201 = arith.constant 0.000000e+00 : f32
    %305 = vector.broadcast %cst_201 : f32 to vector<12x96xf32>
    %306 = arith.subf %305, %302 : vector<12x96xf32>
    %307 = arith.select %304, %302, %306 : vector<12x96xi1>, vector<12x96xf32>
    %cst_202 = arith.constant 1.000000e+00 : f32
    %308 = vector.broadcast %cst_202 : f32 to vector<12x96xf32>
    %309 = arith.addf %308, %307 : vector<12x96xf32>
    %310 = arith.mulf %272, %309 : vector<12x96xf32>
    %cst_203 = arith.constant 0.000000e+00 : f32
    %311 = vector.broadcast %cst_203 : f32 to vector<2x16xf32>
    %c0_204 = arith.constant 0 : index
    %c0_205 = arith.constant 0 : index
    %312 = vector.load %arg18[%c0_204, %c0_205] : memref<1x16xf32, #tpu.memory_space<vmem>>, vector<1x16xf32>
    %313 = vector.broadcast %312 : vector<1x16xf32> to vector<2x16xf32>
    %314 = arith.addf %311, %313 : vector<2x16xf32>
    %c0_206 = arith.constant 0 : index
    %c0_207 = arith.constant 0 : index
    %c0_208 = arith.constant 0 : index
    %315 = vector.load %arg16[%c0_206, %c0_207, %c0_208] : memref<4x2x12xf32, #tpu.memory_space<vmem>>, vector<1x2x12xf32>
    %316 = vector.shape_cast %315 : vector<1x2x12xf32> to vector<2x12xf32>
    %cst_209 = arith.constant dense<0.000000e+00> : vector<2x96xf32>
    %317 = tpu.matmul %316, %310, %cst_209 {dimension_numbers = #tpu.dot_dimension_numbers<[1], [0], [0], [1], [0, 0, 1, 1], [], []>} : vector<2x12xf32>, vector<12x96xf32>, vector<2x96xf32> -> vector<2x96xf32>
    %c0_210 = arith.constant 0 : index
    %c0_211 = arith.constant 0 : index
    %c0_212 = arith.constant 0 : index
    %318 = vector.load %arg17[%c0_210, %c0_211, %c0_212] : memref<4x96x16xf32, #tpu.memory_space<vmem>>, vector<1x96x16xf32>
    %319 = vector.shape_cast %318 : vector<1x96x16xf32> to vector<96x16xf32>
    %cst_213 = arith.constant dense<0.000000e+00> : vector<2x16xf32>
    %320 = tpu.matmul %317, %319, %cst_213 {dimension_numbers = #tpu.dot_dimension_numbers<[1], [0], [0], [1], [0, 0, 1, 1], [], []>} : vector<2x96xf32>, vector<96x16xf32>, vector<2x16xf32> -> vector<2x16xf32>
    %321 = arith.addf %314, %320 : vector<2x16xf32>
    %c1_214 = arith.constant 1 : index
    %c0_215 = arith.constant 0 : index
    %c0_216 = arith.constant 0 : index
    %322 = vector.load %arg16[%c1_214, %c0_215, %c0_216] : memref<4x2x12xf32, #tpu.memory_space<vmem>>, vector<1x2x12xf32>
    %323 = vector.shape_cast %322 : vector<1x2x12xf32> to vector<2x12xf32>
    %cst_217 = arith.constant dense<0.000000e+00> : vector<2x96xf32>
    %324 = tpu.matmul %323, %310, %cst_217 {dimension_numbers = #tpu.dot_dimension_numbers<[1], [0], [0], [1], [0, 0, 1, 1], [], []>} : vector<2x12xf32>, vector<12x96xf32>, vector<2x96xf32> -> vector<2x96xf32>
    %c1_218 = arith.constant 1 : index
    %c0_219 = arith.constant 0 : index
    %c0_220 = arith.constant 0 : index
    %325 = vector.load %arg17[%c1_218, %c0_219, %c0_220] : memref<4x96x16xf32, #tpu.memory_space<vmem>>, vector<1x96x16xf32>
    %326 = vector.shape_cast %325 : vector<1x96x16xf32> to vector<96x16xf32>
    %cst_221 = arith.constant dense<0.000000e+00> : vector<2x16xf32>
    %327 = tpu.matmul %324, %326, %cst_221 {dimension_numbers = #tpu.dot_dimension_numbers<[1], [0], [0], [1], [0, 0, 1, 1], [], []>} : vector<2x96xf32>, vector<96x16xf32>, vector<2x16xf32> -> vector<2x16xf32>
    %328 = arith.addf %321, %327 : vector<2x16xf32>
    %c2_222 = arith.constant 2 : index
    %c0_223 = arith.constant 0 : index
    %c0_224 = arith.constant 0 : index
    %329 = vector.load %arg16[%c2_222, %c0_223, %c0_224] : memref<4x2x12xf32, #tpu.memory_space<vmem>>, vector<1x2x12xf32>
    %330 = vector.shape_cast %329 : vector<1x2x12xf32> to vector<2x12xf32>
    %cst_225 = arith.constant dense<0.000000e+00> : vector<2x96xf32>
    %331 = tpu.matmul %330, %310, %cst_225 {dimension_numbers = #tpu.dot_dimension_numbers<[1], [0], [0], [1], [0, 0, 1, 1], [], []>} : vector<2x12xf32>, vector<12x96xf32>, vector<2x96xf32> -> vector<2x96xf32>
    %c2_226 = arith.constant 2 : index
    %c0_227 = arith.constant 0 : index
    %c0_228 = arith.constant 0 : index
    %332 = vector.load %arg17[%c2_226, %c0_227, %c0_228] : memref<4x96x16xf32, #tpu.memory_space<vmem>>, vector<1x96x16xf32>
    %333 = vector.shape_cast %332 : vector<1x96x16xf32> to vector<96x16xf32>
    %cst_229 = arith.constant dense<0.000000e+00> : vector<2x16xf32>
    %334 = tpu.matmul %331, %333, %cst_229 {dimension_numbers = #tpu.dot_dimension_numbers<[1], [0], [0], [1], [0, 0, 1, 1], [], []>} : vector<2x96xf32>, vector<96x16xf32>, vector<2x16xf32> -> vector<2x16xf32>
    %335 = arith.addf %328, %334 : vector<2x16xf32>
    %c3 = arith.constant 3 : index
    %c0_230 = arith.constant 0 : index
    %c0_231 = arith.constant 0 : index
    %336 = vector.load %arg16[%c3, %c0_230, %c0_231] : memref<4x2x12xf32, #tpu.memory_space<vmem>>, vector<1x2x12xf32>
    %337 = vector.shape_cast %336 : vector<1x2x12xf32> to vector<2x12xf32>
    %cst_232 = arith.constant dense<0.000000e+00> : vector<2x96xf32>
    %338 = tpu.matmul %337, %310, %cst_232 {dimension_numbers = #tpu.dot_dimension_numbers<[1], [0], [0], [1], [0, 0, 1, 1], [], []>} : vector<2x12xf32>, vector<12x96xf32>, vector<2x96xf32> -> vector<2x96xf32>
    %c3_233 = arith.constant 3 : index
    %c0_234 = arith.constant 0 : index
    %c0_235 = arith.constant 0 : index
    %339 = vector.load %arg17[%c3_233, %c0_234, %c0_235] : memref<4x96x16xf32, #tpu.memory_space<vmem>>, vector<1x96x16xf32>
    %340 = vector.shape_cast %339 : vector<1x96x16xf32> to vector<96x16xf32>
    %cst_236 = arith.constant dense<0.000000e+00> : vector<2x16xf32>
    %341 = tpu.matmul %338, %340, %cst_236 {dimension_numbers = #tpu.dot_dimension_numbers<[1], [0], [0], [1], [0, 0, 1, 1], [], []>} : vector<2x96xf32>, vector<96x16xf32>, vector<2x16xf32> -> vector<2x16xf32>
    %342 = arith.addf %335, %341 : vector<2x16xf32>
    %c0_237 = arith.constant 0 : index
    %c0_238 = arith.constant 0 : index
    %343 = vector.load %arg19[%c0_237, %c0_238] : memref<2x16xf32, #tpu.memory_space<vmem>>, vector<2x16xf32>
    tpu.vector_store %arg19[%c0_237, %c0_238], %342 {strides = array<i32>} : memref<2x16xf32, #tpu.memory_space<vmem>>, vector<2x16xf32>,
    return
  }
}

</mosaic_0001>

<llo_original>
// kernel: cnn_encoder_forward.1
$region0: #{cnn_encoder_forward.1}
  #allocation0 [shape = 'u32[]', space=smem, size = 0x4, offset = 0x4, fixed_abs, tag = 'smem constant byte address 0x4 - core index']
  #allocation1 [shape = 'u32[144,128]{1,0:T(1,128)}', space=vmem, size = 0x12000, scoped, tag = 'internal scratch']
  %s0 = inlined_call_operand.hbm [shape: f32[64,32], index: 0, kind: input, shape index: {}]
  %s1 = inlined_call_operand.hbm [shape: f32[3,36,64], index: 1, kind: input, shape index: {}]
  %s2 = inlined_call_operand.hbm [shape: f32[3,32,144], index: 2, kind: input, shape index: {}]
  %s3 = inlined_call_operand.hbm [shape: f32[36,144], index: 3, kind: input, shape index: {}]
  %s4 = inlined_call_operand.hbm [shape: f32[3,36,36], index: 4, kind: input, shape index: {}]
  %s5 = inlined_call_operand.hbm [shape: f32[3,144,144], index: 5, kind: input, shape index: {}]
  %s6 = inlined_call_operand.hbm [shape: f32[36,144], index: 6, kind: input, shape index: {}]
  %s7 = inlined_call_operand.hbm [shape: f32[3,20,36], index: 7, kind: input, shape index: {}]
  %s8 = inlined_call_operand.hbm [shape: f32[3,144,160], index: 8, kind: input, shape index: {}]
  %s9 = inlined_call_operand.hbm [shape: f32[20,160], index: 9, kind: input, shape index: {}]
  %s10 = inlined_call_operand.hbm [shape: f32[3,20,20], index: 10, kind: input, shape index: {}]
  %s11 = inlined_call_operand.hbm [shape: f32[3,160,160], index: 11, kind: input, shape index: {}]
  %s12 = inlined_call_operand.hbm [shape: f32[20,160], index: 12, kind: input, shape index: {}]
  %s13 = inlined_call_operand.hbm [shape: f32[3,12,20], index: 13, kind: input, shape index: {}]
  %s14 = inlined_call_operand.vmem [shape: f32[3,160,96], index: 14, kind: input, shape index: {}]
  %s15 = inlined_call_operand.vmem [shape: f32[12,96], index: 15, kind: input, shape index: {}]
  %s16 = inlined_call_operand.vmem [shape: f32[4,2,12], index: 16, kind: input, shape index: {}]
  %s17 = inlined_call_operand.vmem [shape: f32[4,96,16], index: 17, kind: input, shape index: {}]
  %s18 = inlined_call_operand.vmem [shape: f32[1,16], index: 18, kind: input, shape index: {}]
  %s19 = inlined_call_operand.vmem [shape: f32[2,16], index: 19, kind: output, shape index: {}]
  %s20 = sld [smem:[#allocation0]]
  $region142: #{cnn_encoder_forward.1} parent=0
    _
  %s22 = ssub.s32 1, %s20
  %s23 = scalar_select 0, %s22, %s20
  $region1: #{cnn_encoder_forward.1} parent=0
    #allocation2 [shape = 'u8[32768]{0}', space=vmem, size = 0x8000, scoped, tag = 'input window, operand 0, single buffered']
    #allocation3 [shape = 's32[1]{0}', space=sflag, size = 0x4, scoped, tag = 'scoped memory for cnn_encoder_forward.1']
    #allocation4 [shape = 'u8[61440]{0}', space=vmem, size = 0xf000, scoped, tag = 'input window, operand 1, single buffered']
    #allocation5 [shape = 's32[1]{0}', space=sflag, size = 0x4, scoped, tag = 'scoped memory for cnn_encoder_forward.1']
    #allocation6 [shape = 'u8[98304]{0}', space=vmem, size = 0x18000, scoped, tag = 'input window, operand 2, single buffered']
    #allocation7 [shape = 'u8[40960]{0}', space=vmem, size = 0xa000, scoped, tag = 'input window, operand 3, single buffered']
    #allocation8 [shape = 's32[1]{0}', space=sflag, size = 0x4, scoped, tag = 'scoped memory for cnn_encoder_forward.1']
    #allocation9 [shape = 'u8[61440]{0}', space=vmem, size = 0xf000, scoped, tag = 'input window, operand 4, single buffered']
    #allocation10 [shape = 'u8[442368]{0}', space=vmem, size = 0x6c000, scoped, tag = 'input window, operand 5, single buffered']
    #allocation11 [shape = 's32[1]{0}', space=sflag, size = 0x4, scoped, tag = 'scoped memory for cnn_encoder_forward.1']
    #allocation12 [shape = 'u8[40960]{0}', space=vmem, size = 0xa000, scoped, tag = 'input window, operand 6, single buffered']
    #allocation13 [shape = 'u8[36864]{0}', space=vmem, size = 0x9000, scoped, tag = 'input window, operand 7, single buffered']
    #allocation14 [shape = 's32[1]{0}', space=sflag, size = 0x4, scoped, tag = 'scoped memory for cnn_encoder_forward.1']
    #allocation15 [shape = 'u8[442368]{0}', space=vmem, size = 0x6c000, scoped, tag = 'input window, operand 8, single buffered']
    #allocation16 [shape = 'u8[24576]{0}', space=vmem, size = 0x6000, scoped, tag = 'input window, operand 9, single buffered']
    #allocation17 [shape = 's32[1]{0}', space=sflag, size = 0x4, scoped, tag = 'scoped memory for cnn_encoder_forward.1']
    #allocation18 [shape = 'u8[36864]{0}', space=vmem, size = 0x9000, scoped, tag = 'input window, operand 10, single buffered']
    #allocation19 [shape = 'u8[491520]{0}', space=vmem, size = 0x78000, scoped, tag = 'input window, operand 11, single buffered']
    #allocation20 [shape = 's32[1]{0}', space=sflag, size = 0x4, scoped, tag = 'scoped memory for cnn_encoder_forward.1']
    #allocation21 [shape = 'u8[24576]{0}', space=vmem, size = 0x6000, scoped, tag = 'input window, operand 12, single buffered']
    #allocation22 [shape = 'u8[24576]{0}', space=vmem, size = 0x6000, scoped, tag = 'input window, operand 13, single buffered']
    #allocation23 [shape = 's32[1]{0}', space=sflag, size = 0x4, scoped, tag = 'scoped memory for cnn_encoder_forward.1']
    %24 = vsyncpa [#allocation3], 0
    %25 = vsyncpa [#allocation5], 0
    %26 = vsyncpa [#allocation8], 0
    %27 = vsyncpa [#allocation11], 0
    %28 = vsyncpa [#allocation14], 0
    %29 = vsyncpa [#allocation17], 0
    %30 = vsyncpa [#allocation20], 0
    %31 = vsyncpa [#allocation23], 0
    // Predicated region
    $region2: #{cnn_encoder_forward.1} parent=1 // pred_check
      _
    $region3: #{cnn_encoder_forward.1} parent=1 // pred_check_branch
      %33 = sbr.rel (0) target = $region5
    $region4: #{cnn_encoder_forward.1} parent=1 // pred_region
      %s35 = ssub.s32 1024, 1024
      %36 = vsyncadd [#allocation3], %s35
      %s37 = sshll.u32 [#allocation2], 4
      %s38 = int_to_ptr.vmem [resolvable:$true] %s37
      %43 = dma.hbm_to_vmem [thread:$0]  %s0, 1024, %s38, [#allocation3], 128, 128, 8
    $region5: #{cnn_encoder_forward.1} parent=1 // pred_fallthru
      _
    // Predicated region
    $region6: #{cnn_encoder_forward.1} parent=1 // pred_check
      _
    $region7: #{cnn_encoder_forward.1} parent=1 // pred_check_branch
      %45 = sbr.rel (0) target = $region9
    $region8: #{cnn_encoder_forward.1} parent=1 // pred_region
      %s47 = ssub.s32 1920, 1920
      %48 = vsyncadd [#allocation5], %s47
      %s49 = sshll.u32 [#allocation4], 4
      %s50 = int_to_ptr.vmem [resolvable:$true] %s49
      %55 = dma.hbm_to_vmem [thread:$0]  %s1, 1920, %s50, [#allocation5], 128, 128, 8
    $region9: #{cnn_encoder_forward.1} parent=1 // pred_fallthru
      _
    // Predicated region
    $region10: #{cnn_encoder_forward.1} parent=1 // pred_check
      _
    $region11: #{cnn_encoder_forward.1} parent=1 // pred_check_branch
      %57 = sbr.rel (0) target = $region13
    $region12: #{cnn_encoder_forward.1} parent=1 // pred_region
      %s59 = ssub.s32 3072, 3072
      %60 = vsyncadd [#allocation5], %s59
      %s61 = sshll.u32 [#allocation6], 4
      %s62 = int_to_ptr.vmem [resolvable:$true] %s61
      %67 = dma.hbm_to_vmem [thread:$0]  %s2, 3072, %s62, [#allocation5], 256, 256, 16
    $region13: #{cnn_encoder_forward.1} parent=1 // pred_fallthru
      _
    // Predicated region
    $region14: #{cnn_encoder_forward.1} parent=1 // pred_check
      _
    $region15: #{cnn_encoder_forward.1} parent=1 // pred_check_branch
      %69 = sbr.rel (0) target = $region17
    $region16: #{cnn_encoder_forward.1} parent=1 // pred_region
      %s71 = ssub.s32 1280, 1280
      %72 = vsyncadd [#allocation8], %s71
      %s73 = sshll.u32 [#allocation7], 4
      %s74 = int_to_ptr.vmem [resolvable:$true] %s73
      %79 = dma.hbm_to_vmem [thread:$0]  %s3, 1280, %s74, [#allocation8], 256, 256, 16
    $region17: #{cnn_encoder_forward.1} parent=1 // pred_fallthru
      _
    // Predicated region
    $region18: #{cnn_encoder_forward.1} parent=1 // pred_check
      _
    $region19: #{cnn_encoder_forward.1} parent=1 // pred_check_branch
      %81 = sbr.rel (0) target = $region21
    $region20: #{cnn_encoder_forward.1} parent=1 // pred_region
      %s83 = ssub.s32 1920, 1920
      %84 = vsyncadd [#allocation8], %s83
      %s85 = sshll.u32 [#allocation9], 4
      %s86 = int_to_ptr.vmem [resolvable:$true] %s85
      %91 = dma.hbm_to_vmem [thread:$0]  %s4, 1920, %s86, [#allocation8], 128, 128, 8
    $region21: #{cnn_encoder_forward.1} parent=1 // pred_fallthru
      _
    // Predicated region
    $region22: #{cnn_encoder_forward.1} parent=1 // pred_check
      _
    $region23: #{cnn_encoder_forward.1} parent=1 // pred_check_branch
      %93 = sbr.rel (0) target = $region25
    $region24: #{cnn_encoder_forward.1} parent=1 // pred_region
      %s95 = ssub.s32 13824, 13824
      %96 = vsyncadd [#allocation11], %s95
      %s97 = sshll.u32 [#allocation10], 4
      %s98 = int_to_ptr.vmem [resolvable:$true] %s97
      %103 = dma.hbm_to_vmem [thread:$0]  %s5, 13824, %s98, [#allocation11], 256, 256, 16
    $region25: #{cnn_encoder_forward.1} parent=1 // pred_fallthru
      _
    // Predicated region
    $region26: #{cnn_encoder_forward.1} parent=1 // pred_check
      _
    $region27: #{cnn_encoder_forward.1} parent=1 // pred_check_branch
      %105 = sbr.rel (0) target = $region29
    $region28: #{cnn_encoder_forward.1} parent=1 // pred_region
      %s107 = ssub.s32 1280, 1280
      %108 = vsyncadd [#allocation11], %s107
      %s109 = sshll.u32 [#allocation12], 4
      %s110 = int_to_ptr.vmem [resolvable:$true] %s109
      %115 = dma.hbm_to_vmem [thread:$0]  %s6, 1280, %s110, [#allocation11], 256, 256, 16
    $region29: #{cnn_encoder_forward.1} parent=1 // pred_fallthru
      _
    // Predicated region
    $region30: #{cnn_encoder_forward.1} parent=1 // pred_check
      _
    $region31: #{cnn_encoder_forward.1} parent=1 // pred_check_branch
      %117 = sbr.rel (0) target = $region33
    $region32: #{cnn_encoder_forward.1} parent=1 // pred_region
      %s119 = ssub.s32 1152, 1152
      %120 = vsyncadd [#allocation14], %s119
      %s121 = sshll.u32 [#allocation13], 4
      %s122 = int_to_ptr.vmem [resolvable:$true] %s121
      %127 = dma.hbm_to_vmem [thread:$0]  %s7, 1152, %s122, [#allocation14], 128, 128, 8
    $region33: #{cnn_encoder_forward.1} parent=1 // pred_fallthru
      _
    // Predicated region
    $region34: #{cnn_encoder_forward.1} parent=1 // pred_check
      _
    $region35: #{cnn_encoder_forward.1} parent=1 // pred_check_branch
      %129 = sbr.rel (0) target = $region37
    $region36: #{cnn_encoder_forward.1} parent=1 // pred_region
      %s131 = ssub.s32 13824, 13824
      %132 = vsyncadd [#allocation14], %s131
      %s133 = sshll.u32 [#allocation15], 4
      %s134 = int_to_ptr.vmem [resolvable:$true] %s133
      %139 = dma.hbm_to_vmem [thread:$0]  %s8, 13824, %s134, [#allocation14], 256, 256, 16
    $region37: #{cnn_encoder_forward.1} parent=1 // pred_fallthru
      _
    // Predicated region
    $region38: #{cnn_encoder_forward.1} parent=1 // pred_check
      _
    $region39: #{cnn_encoder_forward.1} parent=1 // pred_check_branch
      %141 = sbr.rel (0) target = $region41
    $region40: #{cnn_encoder_forward.1} parent=1 // pred_region
      %s143 = ssub.s32 768, 768
      %144 = vsyncadd [#allocation17], %s143
      %s145 = sshll.u32 [#allocation16], 4
      %s146 = int_to_ptr.vmem [resolvable:$true] %s145
      %151 = dma.hbm_to_vmem [thread:$0]  %s9, 768, %s146, [#allocation17], 256, 256, 16
    $region41: #{cnn_encoder_forward.1} parent=1 // pred_fallthru
      _
    // Predicated region
    $region42: #{cnn_encoder_forward.1} parent=1 // pred_check
      _
    $region43: #{cnn_encoder_forward.1} parent=1 // pred_check_branch
      %153 = sbr.rel (0) target = $region45
    $region44: #{cnn_encoder_forward.1} parent=1 // pred_region
      %s155 = ssub.s32 1152, 1152
      %156 = vsyncadd [#allocation17], %s155
      %s157 = sshll.u32 [#allocation18], 4
      %s158 = int_to_ptr.vmem [resolvable:$true] %s157
      %163 = dma.hbm_to_vmem [thread:$0]  %s10, 1152, %s158, [#allocation17], 128, 128, 8
    $region45: #{cnn_encoder_forward.1} parent=1 // pred_fallthru
      _
    // Predicated region
    $region46: #{cnn_encoder_forward.1} parent=1 // pred_check
      _
    $region47: #{cnn_encoder_forward.1} parent=1 // pred_check_branch
      %165 = sbr.rel (0) target = $region49
    $region48: #{cnn_encoder_forward.1} parent=1 // pred_region
      %s167 = ssub.s32 15360, 15360
      %168 = vsyncadd [#allocation20], %s167
      %s169 = sshll.u32 [#allocation19], 4
      %s170 = int_to_ptr.vmem [resolvable:$true] %s169
      %175 = dma.hbm_to_vmem [thread:$0]  %s11, 15360, %s170, [#allocation20], 256, 256, 16
    $region49: #{cnn_encoder_forward.1} parent=1 // pred_fallthru
      _
    // Predicated region
    $region50: #{cnn_encoder_forward.1} parent=1 // pred_check
      _
    $region51: #{cnn_encoder_forward.1} parent=1 // pred_check_branch
      %177 = sbr.rel (0) target = $region53
    $region52: #{cnn_encoder_forward.1} parent=1 // pred_region
      %s179 = ssub.s32 768, 768
      %180 = vsyncadd [#allocation20], %s179
      %s181 = sshll.u32 [#allocation21], 4
      %s182 = int_to_ptr.vmem [resolvable:$true] %s181
      %187 = dma.hbm_to_vmem [thread:$0]  %s12, 768, %s182, [#allocation20], 256, 256, 16
    $region53: #{cnn_encoder_forward.1} parent=1 // pred_fallthru
      _
    // Predicated region
    $region54: #{cnn_encoder_forward.1} parent=1 // pred_check
      _
    $region55: #{cnn_encoder_forward.1} parent=1 // pred_check_branch
      %189 = sbr.rel (0) target = $region57
    $region56: #{cnn_encoder_forward.1} parent=1 // pred_region
      %s191 = ssub.s32 768, 768
      %192 = vsyncadd [#allocation23], %s191
      %s193 = sshll.u32 [#allocation22], 4
      %s194 = int_to_ptr.vmem [resolvable:$true] %s193
      %199 = dma.hbm_to_vmem [thread:$0]  %s13, 768, %s194, [#allocation23], 128, 128, 8
    $region57: #{cnn_encoder_forward.1} parent=1 // pred_fallthru
      _
    // Predicated region
    $region58: #{cnn_encoder_forward.1} parent=1 // pred_check
      _
    $region59: #{cnn_encoder_forward.1} parent=1 // pred_check_branch
      %201 = sbr.rel (0) target = $region61
    $region60: #{cnn_encoder_forward.1} parent=1 // pred_region
      _
    $region61: #{cnn_encoder_forward.1} parent=1 // pred_fallthru
      _
    // Predicated region
    $region62: #{cnn_encoder_forward.1} parent=1 // pred_check
      _
    $region63: #{cnn_encoder_forward.1} parent=1 // pred_check_branch
      %203 = sbr.rel (0) target = $region65
    $region64: #{cnn_encoder_forward.1} parent=1 // pred_region
      _
    $region65: #{cnn_encoder_forward.1} parent=1 // pred_fallthru
      _
    // Predicated region
    $region66: #{cnn_encoder_forward.1} parent=1 // pred_check
      _
    $region67: #{cnn_encoder_forward.1} parent=1 // pred_check_branch
      %205 = sbr.rel (0) target = $region69
    $region68: #{cnn_encoder_forward.1} parent=1 // pred_region
      _
    $region69: #{cnn_encoder_forward.1} parent=1 // pred_fallthru
      _
    // Predicated region
    $region70: #{cnn_encoder_forward.1} parent=1 // pred_check
      _
    $region71: #{cnn_encoder_forward.1} parent=1 // pred_check_branch
      %207 = sbr.rel (0) target = $region73
    $region72: #{cnn_encoder_forward.1} parent=1 // pred_region
      _
    $region73: #{cnn_encoder_forward.1} parent=1 // pred_fallthru
      _
    // Predicated region
    $region74: #{cnn_encoder_forward.1} parent=1 // pred_check
      _
    $region75: #{cnn_encoder_forward.1} parent=1 // pred_check_branch
      %209 = sbr.rel (0) target = $region77
    $region76: #{cnn_encoder_forward.1} parent=1 // pred_region
      _
    $region77: #{cnn_encoder_forward.1} parent=1 // pred_fallthru
      _
    // Predicated region
    $region78: #{cnn_encoder_forward.1} parent=1 // pred_check
      _
    $region79: #{cnn_encoder_forward.1} parent=1 // pred_check_branch
      %211 = sbr.rel (0) target = $region81
    $region80: #{cnn_encoder_forward.1} parent=1 // pred_region
      %212 = dma.done [#allocation3], 1024
    $region81: #{cnn_encoder_forward.1} parent=1 // pred_fallthru
      _
    // Predicated region
    $region82: #{cnn_encoder_forward.1} parent=1 // pred_check
      _
    $region83: #{cnn_encoder_forward.1} parent=1 // pred_check_branch
      %214 = sbr.rel (0) target = $region85
    $region84: #{cnn_encoder_forward.1} parent=1 // pred_region
      %215 = dma.done [#allocation5], 1920
    $region85: #{cnn_encoder_forward.1} parent=1 // pred_fallthru
      _
    // Predicated region
    $region86: #{cnn_encoder_forward.1} parent=1 // pred_check
      _
    $region87: #{cnn_encoder_forward.1} parent=1 // pred_check_branch
      %217 = sbr.rel (0) target = $region89
    $region88: #{cnn_encoder_forward.1} parent=1 // pred_region
      %218 = dma.done [#allocation5], 3072
    $region89: #{cnn_encoder_forward.1} parent=1 // pred_fallthru
      _
    // Predicated region
    $region90: #{cnn_encoder_forward.1} parent=1 // pred_check
      _
    $region91: #{cnn_encoder_forward.1} parent=1 // pred_check_branch
      %220 = sbr.rel (0) target = $region93
    $region92: #{cnn_encoder_forward.1} parent=1 // pred_region
      %221 = dma.done [#allocation8], 1280
    $region93: #{cnn_encoder_forward.1} parent=1 // pred_fallthru
      _
    // Predicated region
    $region94: #{cnn_encoder_forward.1} parent=1 // pred_check
      _
    $region95: #{cnn_encoder_forward.1} parent=1 // pred_check_branch
      %223 = sbr.rel (0) target = $region97
    $region96: #{cnn_encoder_forward.1} parent=1 // pred_region
      %224 = dma.done [#allocation8], 1920
    $region97: #{cnn_encoder_forward.1} parent=1 // pred_fallthru
      _
    // Predicated region
    $region98: #{cnn_encoder_forward.1} parent=1 // pred_check
      _
    $region99: #{cnn_encoder_forward.1} parent=1 // pred_check_branch
      %226 = sbr.rel (0) target = $region101
    $region100: #{cnn_encoder_forward.1} parent=1 // pred_region
      %227 = dma.done [#allocation11], 13824
    $region101: #{cnn_encoder_forward.1} parent=1 // pred_fallthru
      _
    // Predicated region
    $region102: #{cnn_encoder_forward.1} parent=1 // pred_check
      _
    $region103: #{cnn_encoder_forward.1} parent=1 // pred_check_branch
      %229 = sbr.rel (0) target = $region105
    $region104: #{cnn_encoder_forward.1} parent=1 // pred_region
      %230 = dma.done [#allocation11], 1280
    $region105: #{cnn_encoder_forward.1} parent=1 // pred_fallthru
      _
    // Predicated region
    $region106: #{cnn_encoder_forward.1} parent=1 // pred_check
      _
    $region107: #{cnn_encoder_forward.1} parent=1 // pred_check_branch
      %232 = sbr.rel (0) target = $region109
    $region108: #{cnn_encoder_forward.1} parent=1 // pred_region
      %233 = dma.done [#allocation14], 1152
    $region109: #{cnn_encoder_forward.1} parent=1 // pred_fallthru
      _
    // Predicated region
    $region110: #{cnn_encoder_forward.1} parent=1 // pred_check
      _
    $region111: #{cnn_encoder_forward.1} parent=1 // pred_check_branch
      %235 = sbr.rel (0) target = $region113
    $region112: #{cnn_encoder_forward.1} parent=1 // pred_region
      %236 = dma.done [#allocation14], 13824
    $region113: #{cnn_encoder_forward.1} parent=1 // pred_fallthru
      _
    // Predicated region
    $region114: #{cnn_encoder_forward.1} parent=1 // pred_check
      _
    $region115: #{cnn_encoder_forward.1} parent=1 // pred_check_branch
      %238 = sbr.rel (0) target = $region117
    $region116: #{cnn_encoder_forward.1} parent=1 // pred_region
      %239 = dma.done [#allocation17], 768
    $region117: #{cnn_encoder_forward.1} parent=1 // pred_fallthru
      _
    // Predicated region
    $region118: #{cnn_encoder_forward.1} parent=1 // pred_check
      _
    $region119: #{cnn_encoder_forward.1} parent=1 // pred_check_branch
      %241 = sbr.rel (0) target = $region121
    $region120: #{cnn_encoder_forward.1} parent=1 // pred_region
      %242 = dma.done [#allocation17], 1152
    $region121: #{cnn_encoder_forward.1} parent=1 // pred_fallthru
      _
    // Predicated region
    $region122: #{cnn_encoder_forward.1} parent=1 // pred_check
      _
    $region123: #{cnn_encoder_forward.1} parent=1 // pred_check_branch
      %244 = sbr.rel (0) target = $region125
    $region124: #{cnn_encoder_forward.1} parent=1 // pred_region
      %245 = dma.done [#allocation20], 15360
    $region125: #{cnn_encoder_forward.1} parent=1 // pred_fallthru
      _
    // Predicated region
    $region126: #{cnn_encoder_forward.1} parent=1 // pred_check
      _
    $region127: #{cnn_encoder_forward.1} parent=1 // pred_check_branch
      %247 = sbr.rel (0) target = $region129
    $region128: #{cnn_encoder_forward.1} parent=1 // pred_region
      %248 = dma.done [#allocation20], 768
    $region129: #{cnn_encoder_forward.1} parent=1 // pred_fallthru
      _
    // Predicated region
    $region130: #{cnn_encoder_forward.1} parent=1 // pred_check
      _
    $region131: #{cnn_encoder_forward.1} parent=1 // pred_check_branch
      %250 = sbr.rel (0) target = $region133
    $region132: #{cnn_encoder_forward.1} parent=1 // pred_region
      %251 = dma.done [#allocation23], 768
    $region133: #{cnn_encoder_forward.1} parent=1 // pred_fallthru
      _
    %v252 = vld [vmem:[#allocation2] sm:$0xff]
    %v253 = vld [vmem:[#allocation2 + $0x8] sm:$0xff]
    %v254 = vld [vmem:[#allocation2 + $0x10] sm:$0xff]
    %v255 = vld [vmem:[#allocation2 + $0x18] sm:$0xff]
    %v256 = vld [vmem:[#allocation2 + $0x20] sm:$0xff]
    %v257 = vld [vmem:[#allocation2 + $0x28] sm:$0xff]
    %v258 = vld [vmem:[#allocation2 + $0x30] sm:$0xff]
    %v259 = vld [vmem:[#allocation2 + $0x38] sm:$0xff]
    %v260 = vld [vmem:[#allocation7] sm:$0xff]
    %v261 = vld [vmem:[#allocation7 + $0x8] sm:$0xff]
    %v262 = vld [vmem:[#allocation7 + $0x10] sm:$0xff]
    %v263 = vld [vmem:[#allocation7 + $0x18] sm:$0xff]
    %v264 = vld [vmem:[#allocation7 + $0x20] sm:$0xff]
    %v265 = vld [vmem:[#allocation7 + $0x28] sm:$0xff]
    %v266 = vld [vmem:[#allocation7 + $0x30] sm:$0xff]
    %v267 = vld [vmem:[#allocation7 + $0x38] sm:$0xff]
    %v268 = vld [vmem:[#allocation7 + $0x40] sm:$0xf]
    %v269 = vld [vmem:[#allocation7 + $0x48] sm:$0xf]
    %v270 = vld [vmem:[#allocation4] sm:$0xff]
    %v271 = vld [vmem:[#allocation4 + $0x8] sm:$0xff]
    %v272 = vld [vmem:[#allocation4 + $0x10] sm:$0xff]
    %v273 = vld [vmem:[#allocation4 + $0x18] sm:$0xff]
    %v274 = vld [vmem:[#allocation4 + $0x20] sm:$0xf]
    %vm275 = vcmask 523264
    %v277 = vsel %vm275, %v270, 0
    %v280 = vsel %vm275, %v271, 0
    %v283 = vsel %vm275, %v272, 0
    %v286 = vsel %vm275, %v273, 0
    %v289 = vsel %vm275, %v274, 0
    %291 = vmatprep.subr.mxu0 0.0
    %292 = vmatpush1.msra.mxu0 %v252
    %293 = vmatprep.subr.mxu0 0.0
    %294 = vmatpush1.msra.mxu0 %v253
    %295 = vmatprep.subr.mxu0 0.0
    %296 = vmatpush1.msra.mxu0 %v254
    %297 = vmatprep.subr.mxu0 0.0
    %298 = vmatpush1.msra.mxu0 %v255
    %299 = vmatprep.subr.mxu0 0.0
    %300 = vmatpush1.msra.mxu0 %v256
    %301 = vmatprep.subr.mxu0 0.0
    %302 = vmatpush1.msra.mxu0 %v257
    %303 = vmatprep.subr.mxu0 0.0
    %304 = vmatpush1.msra.mxu0 %v258
    %305 = vmatprep.subr.mxu0 0.0
    %306 = vmatpush1.msra.mxu0 %v259
    %307 = vmatprep.subr.mxu0 0.0
    %308 = vmatpush1.msra.mxu0 0.0
    %309 = vmatprep.subr.mxu0 0.0
    %310 = vmatpush1.msra.mxu0 0.0
    %311 = vmatprep.subr.mxu0 0.0
    %312 = vmatpush1.msra.mxu0 0.0
    %313 = vmatprep.subr.mxu0 0.0
    %314 = vmatpush1.msra.mxu0 0.0
    %315 = vmatprep.subr.mxu0 0.0
    %316 = vmatpush1.msra.mxu0 0.0
    %317 = vmatprep.subr.mxu0 0.0
    %318 = vmatpush1.msra.mxu0 0.0
    %319 = vmatprep.subr.mxu0 0.0
    %320 = vmatpush1.msra.mxu0 0.0
    %321 = vmatprep.subr.mxu0 0.0
    %322 = vmatpush1.msra.mxu0 0.0
    %323 = vmatprep.subr.mxu0 0.0
    %324 = vmatpush1.msra.mxu0 0.0
    %325 = vmatprep.subr.mxu0 0.0
    %326 = vmatpush1.msra.mxu0 0.0
    %327 = vmatprep.subr.mxu0 0.0
    %328 = vmatpush1.msra.mxu0 0.0
    %329 = vmatprep.subr.mxu0 0.0
    %330 = vmatpush1.msra.mxu0 0.0
    %331 = vmatprep.subr.mxu0 0.0
    %332 = vmatpush1.msra.mxu0 0.0
    %333 = vmatprep.subr.mxu0 0.0
    %334 = vmatpush1.msra.mxu0 0.0
    %335 = vmatprep.subr.mxu0 0.0
    %336 = vmatpush1.msra.mxu0 0.0
    %337 = vmatprep.subr.mxu0 0.0
    %338 = vmatpush1.msra.mxu0 0.0
    %339 = vmatprep.subr.mxu0 0.0
    %340 = vmatpush1.msra.mxu0 0.0
    %341 = vmatprep.subr.mxu0 0.0
    %342 = vmatpush1.msra.mxu0 0.0
    %343 = vmatprep.subr.mxu0 0.0
    %344 = vmatpush1.msra.mxu0 0.0
    %345 = vmatprep.subr.mxu0 0.0
    %346 = vmatpush1.msra.mxu0 0.0
    %347 = vmatprep.subr.mxu0 0.0
    %348 = vmatpush1.msra.mxu0 0.0
    %349 = vmatprep.subr.mxu0 0.0
    %350 = vmatpush1.msra.mxu0 0.0
    %351 = vmatprep.subr.mxu0 0.0
    %352 = vmatpush1.msra.mxu0 0.0
    %353 = vmatprep.subr.mxu0 0.0
    %354 = vmatpush1.msra.mxu0 0.0
    %355 = vmatprep.mubr.f32.mxu0 0.0
    %356 = vmatmul.mubr.f32.gmra.mrb[0].mxu0 %v277
    %v357 = vpop.f32.mrb[0].mxu0
    %v358 = vadd.f32 0.0, %v357
    %v359 = vpop.f32.mrb[0].mxu0
    %360 = vmatprep.mubr.f32.mxu0 0.0
    %361 = vmatmul.mubr.f32.gmra.mrb[0].mxu0 %v280
    %v362 = vpop.f32.mrb[0].mxu0
    %v363 = vadd.f32 0.0, %v362
    %v364 = vpop.f32.mrb[0].mxu0
    %365 = vmatprep.mubr.f32.mxu0 0.0
    %366 = vmatmul.mubr.f32.gmra.mrb[0].mxu0 %v283
    %v367 = vpop.f32.mrb[0].mxu0
    %v368 = vadd.f32 0.0, %v367
    %v369 = vpop.f32.mrb[0].mxu0
    %370 = vmatprep.mubr.f32.mxu0 0.0
    %371 = vmatmul.mubr.f32.gmra.mrb[0].mxu0 %v286
    %v372 = vpop.f32.mrb[0].mxu0
    %v373 = vadd.f32 0.0, %v372
    %v374 = vpop.f32.mrb[0].mxu0
    %375 = vmatprep.mubr.f32.mxu0 0.0
    %376 = vmatmul.mubr.f32.gmra.mrb[0].mxu0 %v289
    %v377 = vpop.f32.mrb[0].mxu0
    %v378 = vadd.f32 0.0, %v377
    %v379 = vpop.f32.mrb[0].mxu0
    %380 = vdwg.mxu0
    %v381 = vld [vmem:[#allocation6] sm:$0xff]
    %v382 = vld [vmem:[#allocation6 + $0x8] sm:$0xff]
    %v383 = vld [vmem:[#allocation6 + $0x10] sm:$0xff]
    %v384 = vld [vmem:[#allocation6 + $0x18] sm:$0xff]
    %v385 = vld [vmem:[#allocation6 + $0x20] sm:$0xff]
    %v386 = vld [vmem:[#allocation6 + $0x28] sm:$0xff]
    %v387 = vld [vmem:[#allocation6 + $0x30] sm:$0xff]
    %v388 = vld [vmem:[#allocation6 + $0x38] sm:$0xff]
    %vm389 = vcmask 261120
    %v391 = vsel %vm389, %v358, 0
    %v394 = vsel %vm389, %v363, 0
    %v397 = vsel %vm389, %v368, 0
    %v400 = vsel %vm389, %v373, 0
    %v403 = vsel %vm389, %v378, 0
    %405 = vmatprep.subr.mxu0 %v382
    %406 = vmatpush1.msra.mxu0 %v381
    %407 = vmatprep.subr.mxu0 %v384
    %408 = vmatpush1.msra.mxu0 %v383
    %409 = vmatprep.subr.mxu0 %v386
    %410 = vmatpush1.msra.mxu0 %v385
    %411 = vmatprep.subr.mxu0 %v388
    %412 = vmatpush1.msra.mxu0 %v387
    %413 = vmatprep.subr.mxu0 0.0
    %414 = vmatpush1.msra.mxu0 0.0
    %415 = vmatprep.subr.mxu0 0.0
    %416 = vmatpush1.msra.mxu0 0.0
    %417 = vmatprep.subr.mxu0 0.0
    %418 = vmatpush1.msra.mxu0 0.0
    %419 = vmatprep.subr.mxu0 0.0
    %420 = vmatpush1.msra.mxu0 0.0
    %421 = vmatprep.subr.mxu0 0.0
    %422 = vmatpush1.msra.mxu0 0.0
    %423 = vmatprep.subr.mxu0 0.0
    %424 = vmatpush1.msra.mxu0 0.0
    %425 = vmatprep.subr.mxu0 0.0
    %426 = vmatpush1.msra.mxu0 0.0
    %427 = vmatprep.subr.mxu0 0.0
    %428 = vmatpush1.msra.mxu0 0.0
    %429 = vmatprep.subr.mxu0 0.0
    %430 = vmatpush1.msra.mxu0 0.0
    %431 = vmatprep.subr.mxu0 0.0
    %432 = vmatpush1.msra.mxu0 0.0
    %433 = vmatprep.subr.mxu0 0.0
    %434 = vmatpush1.msra.mxu0 0.0
    %435 = vmatprep.subr.mxu0 0.0
    %436 = vmatpush1.msra.mxu0 0.0
    %437 = vmatprep.subr.mxu0 0.0
    %438 = vmatpush1.msra.mxu0 0.0
    %439 = vmatprep.subr.mxu0 0.0
    %440 = vmatpush1.msra.mxu0 0.0
    %441 = vmatprep.subr.mxu0 0.0
    %442 = vmatpush1.msra.mxu0 0.0
    %443 = vmatprep.subr.mxu0 0.0
    %444 = vmatpush1.msra.mxu0 0.0
    %445 = vmatprep.subr.mxu0 0.0
    %446 = vmatpush1.msra.mxu0 0.0
    %447 = vmatprep.subr.mxu0 0.0
    %448 = vmatpush1.msra.mxu0 0.0
    %449 = vmatprep.subr.mxu0 0.0
    %450 = vmatpush1.msra.mxu0 0.0
    %451 = vmatprep.subr.mxu0 0.0
    %452 = vmatpush1.msra.mxu0 0.0
    %453 = vmatprep.subr.mxu0 0.0
    %454 = vmatpush1.msra.mxu0 0.0
    %455 = vmatprep.subr.mxu0 0.0
    %456 = vmatpush1.msra.mxu0 0.0
    %457 = vmatprep.subr.mxu0 0.0
    %458 = vmatpush1.msra.mxu0 0.0
    %459 = vmatprep.subr.mxu0 0.0
    %460 = vmatpush1.msra.mxu0 0.0
    %461 = vmatprep.subr.mxu0 0.0
    %462 = vmatpush1.msra.mxu0 0.0
    %463 = vmatprep.subr.mxu0 0.0
    %464 = vmatpush1.msra.mxu0 0.0
    %465 = vmatprep.subr.mxu0 0.0
    %466 = vmatpush1.msra.mxu0 0.0
    %467 = vmatprep.subr.mxu0 0.0
    %468 = vmatpush1.msra.mxu0 0.0
    %469 = vmatprep.mubr.f32.mxu0 0.0
    %470 = vmatmul.mubr.f32.gmra.mrb[0].mxu0 %v391
    %v471 = vpop.f32.mrb[0].mxu0
    %v472 = vadd.f32 0.0, %v471
    %v473 = vpop.f32.mrb[0].mxu0
    %v474 = vadd.f32 0.0, %v473
    %475 = vmatprep.mubr.f32.mxu0 0.0
    %476 = vmatmul.mubr.f32.gmra.mrb[0].mxu0 %v394
    %v477 = vpop.f32.mrb[0].mxu0
    %v478 = vadd.f32 0.0, %v477
    %v479 = vpop.f32.mrb[0].mxu0
    %v480 = vadd.f32 0.0, %v479
    %481 = vmatprep.mubr.f32.mxu0 0.0
    %482 = vmatmul.mubr.f32.gmra.mrb[0].mxu0 %v397
    %v483 = vpop.f32.mrb[0].mxu0
    %v484 = vadd.f32 0.0, %v483
    %v485 = vpop.f32.mrb[0].mxu0
    %v486 = vadd.f32 0.0, %v485
    %487 = vmatprep.mubr.f32.mxu0 0.0
    %488 = vmatmul.mubr.f32.gmra.mrb[0].mxu0 %v400
    %v489 = vpop.f32.mrb[0].mxu0
    %v490 = vadd.f32 0.0, %v489
    %v491 = vpop.f32.mrb[0].mxu0
    %v492 = vadd.f32 0.0, %v491
    %493 = vmatprep.mubr.f32.mxu0 0.0
    %494 = vmatmul.mubr.f32.gmra.mrb[0].mxu0 %v403
    %v495 = vpop.f32.mrb[0].mxu0
    %v496 = vadd.f32 0.0, %v495
    %v497 = vpop.f32.mrb[0].mxu0
    %v498 = vadd.f32 0.0, %v497
    %499 = vdwg.mxu0
    %v500 = vadd.f32 %v260, %v472
    %v501 = vadd.f32 %v261, %v474
    %v502 = vadd.f32 %v262, %v478
    %v503 = vadd.f32 %v263, %v480
    %v504 = vadd.f32 %v264, %v484
    %v505 = vadd.f32 %v265, %v486
    %v506 = vadd.f32 %v266, %v490
    %v507 = vadd.f32 %v267, %v492
    %v508 = vadd.f32 %v268, %v496
    %v509 = vadd.f32 %v269, %v498
    %s510 = scalar_lea.vmem [#allocation4], 40
    %v511 = vld [vmem:[%s510] sm:$0xff]
    %v512 = vld [vmem:[%s510 + $0x8] sm:$0xff]
    %v513 = vld [vmem:[%s510 + $0x10] sm:$0xff]
    %v514 = vld [vmem:[%s510 + $0x18] sm:$0xff]
    %v515 = vld [vmem:[%s510 + $0x20] sm:$0xf]
    %v517 = vsel %vm275, %v511, 0
    %v520 = vsel %vm275, %v512, 0
    %v523 = vsel %vm275, %v513, 0
    %v526 = vsel %vm275, %v514, 0
    %v529 = vsel %vm275, %v515, 0
    %531 = vmatprep.subr.mxu0 0.0
    %532 = vmatpush1.msra.mxu0 %v252
    %533 = vmatprep.subr.mxu0 0.0
    %534 = vmatpush1.msra.mxu0 %v253
    %535 = vmatprep.subr.mxu0 0.0
    %536 = vmatpush1.msra.mxu0 %v254
    %537 = vmatprep.subr.mxu0 0.0
    %538 = vmatpush1.msra.mxu0 %v255
    %539 = vmatprep.subr.mxu0 0.0
    %540 = vmatpush1.msra.mxu0 %v256
    %541 = vmatprep.subr.mxu0 0.0
    %542 = vmatpush1.msra.mxu0 %v257
    %543 = vmatprep.subr.mxu0 0.0
    %544 = vmatpush1.msra.mxu0 %v258
    %545 = vmatprep.subr.mxu0 0.0
    %546 = vmatpush1.msra.mxu0 %v259
    %547 = vmatprep.subr.mxu0 0.0
    %548 = vmatpush1.msra.mxu0 0.0
    %549 = vmatprep.subr.mxu0 0.0
    %550 = vmatpush1.msra.mxu0 0.0
    %551 = vmatprep.subr.mxu0 0.0
    %552 = vmatpush1.msra.mxu0 0.0
    %553 = vmatprep.subr.mxu0 0.0
    %554 = vmatpush1.msra.mxu0 0.0
    %555 = vmatprep.subr.mxu0 0.0
    %556 = vmatpush1.msra.mxu0 0.0
    %557 = vmatprep.subr.mxu0 0.0
    %558 = vmatpush1.msra.mxu0 0.0
    %559 = vmatprep.subr.mxu0 0.0
    %560 = vmatpush1.msra.mxu0 0.0
    %561 = vmatprep.subr.mxu0 0.0
    %562 = vmatpush1.msra.mxu0 0.0
    %563 = vmatprep.subr.mxu0 0.0
    %564 = vmatpush1.msra.mxu0 0.0
    %565 = vmatprep.subr.mxu0 0.0
    %566 = vmatpush1.msra.mxu0 0.0
    %567 = vmatprep.subr.mxu0 0.0
    %568 = vmatpush1.msra.mxu0 0.0
    %569 = vmatprep.subr.mxu0 0.0
    %570 = vmatpush1.msra.mxu0 0.0
    %571 = vmatprep.subr.mxu0 0.0
    %572 = vmatpush1.msra.mxu0 0.0
    %573 = vmatprep.subr.mxu0 0.0
    %574 = vmatpush1.msra.mxu0 0.0
    %575 = vmatprep.subr.mxu0 0.0
    %576 = vmatpush1.msra.mxu0 0.0
    %577 = vmatprep.subr.mxu0 0.0
    %578 = vmatpush1.msra.mxu0 0.0
    %579 = vmatprep.subr.mxu0 0.0
    %580 = vmatpush1.msra.mxu0 0.0
    %581 = vmatprep.subr.mxu0 0.0
    %582 = vmatpush1.msra.mxu0 0.0
    %583 = vmatprep.subr.mxu0 0.0
    %584 = vmatpush1.msra.mxu0 0.0
    %585 = vmatprep.subr.mxu0 0.0
    %586 = vmatpush1.msra.mxu0 0.0
    %587 = vmatprep.subr.mxu0 0.0
    %588 = vmatpush1.msra.mxu0 0.0
    %589 = vmatprep.subr.mxu0 0.0
    %590 = vmatpush1.msra.mxu0 0.0
    %591 = vmatprep.subr.mxu0 0.0
    %592 = vmatpush1.msra.mxu0 0.0
    %593 = vmatprep.subr.mxu0 0.0
    %594 = vmatpush1.msra.mxu0 0.0
    %595 = vmatprep.mubr.f32.mxu0 0.0
    %596 = vmatmul.mubr.f32.gmra.mrb[0].mxu0 %v517
    %v597 = vpop.f32.mrb[0].mxu0
    %v598 = vadd.f32 0.0, %v597
    %v599 = vpop.f32.mrb[0].mxu0
    %600 = vmatprep.mubr.f32.mxu0 0.0
    %601 = vmatmul.mubr.f32.gmra.mrb[0].mxu0 %v520
    %v602 = vpop.f32.mrb[0].mxu0
    %v603 = vadd.f32 0.0, %v602
    %v604 = vpop.f32.mrb[0].mxu0
    %605 = vmatprep.mubr.f32.mxu0 0.0
    %606 = vmatmul.mubr.f32.gmra.mrb[0].mxu0 %v523
    %v607 = vpop.f32.mrb[0].mxu0
    %v608 = vadd.f32 0.0, %v607
    %v609 = vpop.f32.mrb[0].mxu0
    %610 = vmatprep.mubr.f32.mxu0 0.0
    %611 = vmatmul.mubr.f32.gmra.mrb[0].mxu0 %v526
    %v612 = vpop.f32.mrb[0].mxu0
    %v613 = vadd.f32 0.0, %v612
    %v614 = vpop.f32.mrb[0].mxu0
    %615 = vmatprep.mubr.f32.mxu0 0.0
    %616 = vmatmul.mubr.f32.gmra.mrb[0].mxu0 %v529
    %v617 = vpop.f32.mrb[0].mxu0
    %v618 = vadd.f32 0.0, %v617
    %v619 = vpop.f32.mrb[0].mxu0
    %620 = vdwg.mxu0
    %s621 = scalar_lea.vmem [#allocation6], 64
    %v622 = vld [vmem:[%s621] sm:$0xff]
    %v623 = vld [vmem:[%s621 + $0x8] sm:$0xff]
    %v624 = vld [vmem:[%s621 + $0x10] sm:$0xff]
    %v625 = vld [vmem:[%s621 + $0x18] sm:$0xff]
    %v626 = vld [vmem:[%s621 + $0x20] sm:$0xff]
    %v627 = vld [vmem:[%s621 + $0x28] sm:$0xff]
    %v628 = vld [vmem:[%s621 + $0x30] sm:$0xff]
    %v629 = vld [vmem:[%s621 + $0x38] sm:$0xff]
    %v631 = vsel %vm389, %v598, 0
    %v634 = vsel %vm389, %v603, 0
    %v637 = vsel %vm389, %v608, 0
    %v640 = vsel %vm389, %v613, 0
    %v643 = vsel %vm389, %v618, 0
    %645 = vmatprep.subr.mxu0 %v623
    %646 = vmatpush1.msra.mxu0 %v622
    %647 = vmatprep.subr.mxu0 %v625
    %648 = vmatpush1.msra.mxu0 %v624
    %649 = vmatprep.subr.mxu0 %v627
    %650 = vmatpush1.msra.mxu0 %v626
    %651 = vmatprep.subr.mxu0 %v629
    %652 = vmatpush1.msra.mxu0 %v628
    %653 = vmatprep.subr.mxu0 0.0
    %654 = vmatpush1.msra.mxu0 0.0
    %655 = vmatprep.subr.mxu0 0.0
    %656 = vmatpush1.msra.mxu0 0.0
    %657 = vmatprep.subr.mxu0 0.0
    %658 = vmatpush1.msra.mxu0 0.0
    %659 = vmatprep.subr.mxu0 0.0
    %660 = vmatpush1.msra.mxu0 0.0
    %661 = vmatprep.subr.mxu0 0.0
    %662 = vmatpush1.msra.mxu0 0.0
    %663 = vmatprep.subr.mxu0 0.0
    %664 = vmatpush1.msra.mxu0 0.0
    %665 = vmatprep.subr.mxu0 0.0
    %666 = vmatpush1.msra.mxu0 0.0
    %667 = vmatprep.subr.mxu0 0.0
    %668 = vmatpush1.msra.mxu0 0.0
    %669 = vmatprep.subr.mxu0 0.0
    %670 = vmatpush1.msra.mxu0 0.0
    %671 = vmatprep.subr.mxu0 0.0
    %672 = vmatpush1.msra.mxu0 0.0
    %673 = vmatprep.subr.mxu0 0.0
    %674 = vmatpush1.msra.mxu0 0.0
    %675 = vmatprep.subr.mxu0 0.0
    %676 = vmatpush1.msra.mxu0 0.0
    %677 = vmatprep.subr.mxu0 0.0
    %678 = vmatpush1.msra.mxu0 0.0
    %679 = vmatprep.subr.mxu0 0.0
    %680 = vmatpush1.msra.mxu0 0.0
    %681 = vmatprep.subr.mxu0 0.0
    %682 = vmatpush1.msra.mxu0 0.0
    %683 = vmatprep.subr.mxu0 0.0
    %684 = vmatpush1.msra.mxu0 0.0
    %685 = vmatprep.subr.mxu0 0.0
    %686 = vmatpush1.msra.mxu0 0.0
    %687 = vmatprep.subr.mxu0 0.0
    %688 = vmatpush1.msra.mxu0 0.0
    %689 = vmatprep.subr.mxu0 0.0
    %690 = vmatpush1.msra.mxu0 0.0
    %691 = vmatprep.subr.mxu0 0.0
    %692 = vmatpush1.msra.mxu0 0.0
    %693 = vmatprep.subr.mxu0 0.0
    %694 = vmatpush1.msra.mxu0 0.0
    %695 = vmatprep.subr.mxu0 0.0
    %696 = vmatpush1.msra.mxu0 0.0
    %697 = vmatprep.subr.mxu0 0.0
    %698 = vmatpush1.msra.mxu0 0.0
    %699 = vmatprep.subr.mxu0 0.0
    %700 = vmatpush1.msra.mxu0 0.0
    %701 = vmatprep.subr.mxu0 0.0
    %702 = vmatpush1.msra.mxu0 0.0
    %703 = vmatprep.subr.mxu0 0.0
    %704 = vmatpush1.msra.mxu0 0.0
    %705 = vmatprep.subr.mxu0 0.0
    %706 = vmatpush1.msra.mxu0 0.0
    %707 = vmatprep.subr.mxu0 0.0
    %708 = vmatpush1.msra.mxu0 0.0
    %709 = vmatprep.mubr.f32.mxu0 0.0
    %710 = vmatmul.mubr.f32.gmra.mrb[0].mxu0 %v631
    %v711 = vpop.f32.mrb[0].mxu0
    %v712 = vadd.f32 0.0, %v711
    %v713 = vpop.f32.mrb[0].mxu0
    %v714 = vadd.f32 0.0, %v713
    %715 = vmatprep.mubr.f32.mxu0 0.0
    %716 = vmatmul.mubr.f32.gmra.mrb[0].mxu0 %v634
    %v717 = vpop.f32.mrb[0].mxu0
    %v718 = vadd.f32 0.0, %v717
    %v719 = vpop.f32.mrb[0].mxu0
    %v720 = vadd.f32 0.0, %v719
    %721 = vmatprep.mubr.f32.mxu0 0.0
    %722 = vmatmul.mubr.f32.gmra.mrb[0].mxu0 %v637
    %v723 = vpop.f32.mrb[0].mxu0
    %v724 = vadd.f32 0.0, %v723
    %v725 = vpop.f32.mrb[0].mxu0
    %v726 = vadd.f32 0.0, %v725
    %727 = vmatprep.mubr.f32.mxu0 0.0
    %728 = vmatmul.mubr.f32.gmra.mrb[0].mxu0 %v640
    %v729 = vpop.f32.mrb[0].mxu0
    %v730 = vadd.f32 0.0, %v729
    %v731 = vpop.f32.mrb[0].mxu0
    %v732 = vadd.f32 0.0, %v731
    %733 = vmatprep.mubr.f32.mxu0 0.0
    %734 = vmatmul.mubr.f32.gmra.mrb[0].mxu0 %v643
    %v735 = vpop.f32.mrb[0].mxu0
    %v736 = vadd.f32 0.0, %v735
    %v737 = vpop.f32.mrb[0].mxu0
    %v738 = vadd.f32 0.0, %v737
    %739 = vdwg.mxu0
    %v740 = vadd.f32 %v500, %v712
    %v741 = vadd.f32 %v501, %v714
    %v742 = vadd.f32 %v502, %v718
    %v743 = vadd.f32 %v503, %v720
    %v744 = vadd.f32 %v504, %v724
    %v745 = vadd.f32 %v505, %v726
    %v746 = vadd.f32 %v506, %v730
    %v747 = vadd.f32 %v507, %v732
    %v748 = vadd.f32 %v508, %v736
    %v749 = vadd.f32 %v509, %v738
    %s750 = scalar_lea.vmem [#allocation4], 80
    %v751 = vld [vmem:[%s750] sm:$0xff]
    %v752 = vld [vmem:[%s750 + $0x8] sm:$0xff]
    %v753 = vld [vmem:[%s750 + $0x10] sm:$0xff]
    %v754 = vld [vmem:[%s750 + $0x18] sm:$0xff]
    %v755 = vld [vmem:[%s750 + $0x20] sm:$0xf]
    %v757 = vsel %vm275, %v751, 0
    %v760 = vsel %vm275, %v752, 0
    %v763 = vsel %vm275, %v753, 0
    %v766 = vsel %vm275, %v754, 0
    %v769 = vsel %vm275, %v755, 0
    %771 = vmatprep.subr.mxu0 0.0
    %772 = vmatpush1.msra.mxu0 %v252
    %773 = vmatprep.subr.mxu0 0.0
    %774 = vmatpush1.msra.mxu0 %v253
    %775 = vmatprep.subr.mxu0 0.0
    %776 = vmatpush1.msra.mxu0 %v254
    %777 = vmatprep.subr.mxu0 0.0
    %778 = vmatpush1.msra.mxu0 %v255
    %779 = vmatprep.subr.mxu0 0.0
    %780 = vmatpush1.msra.mxu0 %v256
    %781 = vmatprep.subr.mxu0 0.0
    %782 = vmatpush1.msra.mxu0 %v257
    %783 = vmatprep.subr.mxu0 0.0
    %784 = vmatpush1.msra.mxu0 %v258
    %785 = vmatprep.subr.mxu0 0.0
    %786 = vmatpush1.msra.mxu0 %v259
    %787 = vmatprep.subr.mxu0 0.0
    %788 = vmatpush1.msra.mxu0 0.0
    %789 = vmatprep.subr.mxu0 0.0
    %790 = vmatpush1.msra.mxu0 0.0
    %791 = vmatprep.subr.mxu0 0.0
    %792 = vmatpush1.msra.mxu0 0.0
    %793 = vmatprep.subr.mxu0 0.0
    %794 = vmatpush1.msra.mxu0 0.0
    %795 = vmatprep.subr.mxu0 0.0
    %796 = vmatpush1.msra.mxu0 0.0
    %797 = vmatprep.subr.mxu0 0.0
    %798 = vmatpush1.msra.mxu0 0.0
    %799 = vmatprep.subr.mxu0 0.0
    %800 = vmatpush1.msra.mxu0 0.0
    %801 = vmatprep.subr.mxu0 0.0
    %802 = vmatpush1.msra.mxu0 0.0
    %803 = vmatprep.subr.mxu0 0.0
    %804 = vmatpush1.msra.mxu0 0.0
    %805 = vmatprep.subr.mxu0 0.0
    %806 = vmatpush1.msra.mxu0 0.0
    %807 = vmatprep.subr.mxu0 0.0
    %808 = vmatpush1.msra.mxu0 0.0
    %809 = vmatprep.subr.mxu0 0.0
    %810 = vmatpush1.msra.mxu0 0.0
    %811 = vmatprep.subr.mxu0 0.0
    %812 = vmatpush1.msra.mxu0 0.0
    %813 = vmatprep.subr.mxu0 0.0
    %814 = vmatpush1.msra.mxu0 0.0
    %815 = vmatprep.subr.mxu0 0.0
    %816 = vmatpush1.msra.mxu0 0.0
    %817 = vmatprep.subr.mxu0 0.0
    %818 = vmatpush1.msra.mxu0 0.0
    %819 = vmatprep.subr.mxu0 0.0
    %820 = vmatpush1.msra.mxu0 0.0
    %821 = vmatprep.subr.mxu0 0.0
    %822 = vmatpush1.msra.mxu0 0.0
    %823 = vmatprep.subr.mxu0 0.0
    %824 = vmatpush1.msra.mxu0 0.0
    %825 = vmatprep.subr.mxu0 0.0
    %826 = vmatpush1.msra.mxu0 0.0
    %827 = vmatprep.subr.mxu0 0.0
    %828 = vmatpush1.msra.mxu0 0.0
    %829 = vmatprep.subr.mxu0 0.0
    %830 = vmatpush1.msra.mxu0 0.0
    %831 = vmatprep.subr.mxu0 0.0
    %832 = vmatpush1.msra.mxu0 0.0
    %833 = vmatprep.subr.mxu0 0.0
    %834 = vmatpush1.msra.mxu0 0.0
    %835 = vmatprep.mubr.f32.mxu0 0.0
    %836 = vmatmul.mubr.f32.gmra.mrb[0].mxu0 %v757
    %v837 = vpop.f32.mrb[0].mxu0
    %v838 = vadd.f32 0.0, %v837
    %v839 = vpop.f32.mrb[0].mxu0
    %840 = vmatprep.mubr.f32.mxu0 0.0
    %841 = vmatmul.mubr.f32.gmra.mrb[0].mxu0 %v760
    %v842 = vpop.f32.mrb[0].mxu0
    %v843 = vadd.f32 0.0, %v842
    %v844 = vpop.f32.mrb[0].mxu0
    %845 = vmatprep.mubr.f32.mxu0 0.0
    %846 = vmatmul.mubr.f32.gmra.mrb[0].mxu0 %v763
    %v847 = vpop.f32.mrb[0].mxu0
    %v848 = vadd.f32 0.0, %v847
    %v849 = vpop.f32.mrb[0].mxu0
    %850 = vmatprep.mubr.f32.mxu0 0.0
    %851 = vmatmul.mubr.f32.gmra.mrb[0].mxu0 %v766
    %v852 = vpop.f32.mrb[0].mxu0
    %v853 = vadd.f32 0.0, %v852
    %v854 = vpop.f32.mrb[0].mxu0
    %855 = vmatprep.mubr.f32.mxu0 0.0
    %856 = vmatmul.mubr.f32.gmra.mrb[0].mxu0 %v769
    %v857 = vpop.f32.mrb[0].mxu0
    %v858 = vadd.f32 0.0, %v857
    %v859 = vpop.f32.mrb[0].mxu0
    %860 = vdwg.mxu0
    %s861 = scalar_lea.vmem [#allocation6], 128
    %v862 = vld [vmem:[%s861] sm:$0xff]
    %v863 = vld [vmem:[%s861 + $0x8] sm:$0xff]
    %v864 = vld [vmem:[%s861 + $0x10] sm:$0xff]
    %v865 = vld [vmem:[%s861 + $0x18] sm:$0xff]
    %v866 = vld [vmem:[%s861 + $0x20] sm:$0xff]
    %v867 = vld [vmem:[%s861 + $0x28] sm:$0xff]
    %v868 = vld [vmem:[%s861 + $0x30] sm:$0xff]
    %v869 = vld [vmem:[%s861 + $0x38] sm:$0xff]
    %v871 = vsel %vm389, %v838, 0
    %v874 = vsel %vm389, %v843, 0
    %v877 = vsel %vm389, %v848, 0
    %v880 = vsel %vm389, %v853, 0
    %v883 = vsel %vm389, %v858, 0
    %885 = vmatprep.subr.mxu0 %v863
    %886 = vmatpush1.msra.mxu0 %v862
    %887 = vmatprep.subr.mxu0 %v865
    %888 = vmatpush1.msra.mxu0 %v864
    %889 = vmatprep.subr.mxu0 %v867
    %890 = vmatpush1.msra.mxu0 %v866
    %891 = vmatprep.subr.mxu0 %v869
    %892 = vmatpush1.msra.mxu0 %v868
    %893 = vmatprep.subr.mxu0 0.0
    %894 = vmatpush1.msra.mxu0 0.0
    %895 = vmatprep.subr.mxu0 0.0
    %896 = vmatpush1.msra.mxu0 0.0
    %897 = vmatprep.subr.mxu0 0.0
    %898 = vmatpush1.msra.mxu0 0.0
    %899 = vmatprep.subr.mxu0 0.0
    %900 = vmatpush1.msra.mxu0 0.0
    %901 = vmatprep.subr.mxu0 0.0
    %902 = vmatpush1.msra.mxu0 0.0
    %903 = vmatprep.subr.mxu0 0.0
    %904 = vmatpush1.msra.mxu0 0.0
    %905 = vmatprep.subr.mxu0 0.0
    %906 = vmatpush1.msra.mxu0 0.0
    %907 = vmatprep.subr.mxu0 0.0
    %908 = vmatpush1.msra.mxu0 0.0
    %909 = vmatprep.subr.mxu0 0.0
    %910 = vmatpush1.msra.mxu0 0.0
    %911 = vmatprep.subr.mxu0 0.0
    %912 = vmatpush1.msra.mxu0 0.0
    %913 = vmatprep.subr.mxu0 0.0
    %914 = vmatpush1.msra.mxu0 0.0
    %915 = vmatprep.subr.mxu0 0.0
    %916 = vmatpush1.msra.mxu0 0.0
    %917 = vmatprep.subr.mxu0 0.0
    %918 = vmatpush1.msra.mxu0 0.0
    %919 = vmatprep.subr.mxu0 0.0
    %920 = vmatpush1.msra.mxu0 0.0
    %921 = vmatprep.subr.mxu0 0.0
    %922 = vmatpush1.msra.mxu0 0.0
    %923 = vmatprep.subr.mxu0 0.0
    %924 = vmatpush1.msra.mxu0 0.0
    %925 = vmatprep.subr.mxu0 0.0
    %926 = vmatpush1.msra.mxu0 0.0
    %927 = vmatprep.subr.mxu0 0.0
    %928 = vmatpush1.msra.mxu0 0.0
    %929 = vmatprep.subr.mxu0 0.0
    %930 = vmatpush1.msra.mxu0 0.0
    %931 = vmatprep.subr.mxu0 0.0
    %932 = vmatpush1.msra.mxu0 0.0
    %933 = vmatprep.subr.mxu0 0.0
    %934 = vmatpush1.msra.mxu0 0.0
    %935 = vmatprep.subr.mxu0 0.0
    %936 = vmatpush1.msra.mxu0 0.0
    %937 = vmatprep.subr.mxu0 0.0
    %938 = vmatpush1.msra.mxu0 0.0
    %939 = vmatprep.subr.mxu0 0.0
    %940 = vmatpush1.msra.mxu0 0.0
    %941 = vmatprep.subr.mxu0 0.0
    %942 = vmatpush1.msra.mxu0 0.0
    %943 = vmatprep.subr.mxu0 0.0
    %944 = vmatpush1.msra.mxu0 0.0
    %945 = vmatprep.subr.mxu0 0.0
    %946 = vmatpush1.msra.mxu0 0.0
    %947 = vmatprep.subr.mxu0 0.0
    %948 = vmatpush1.msra.mxu0 0.0
    %949 = vmatprep.mubr.f32.mxu0 0.0
    %950 = vmatmul.mubr.f32.gmra.mrb[0].mxu0 %v871
    %v951 = vpop.f32.mrb[0].mxu0
    %v952 = vadd.f32 0.0, %v951
    %v953 = vpop.f32.mrb[0].mxu0
    %v954 = vadd.f32 0.0, %v953
    %955 = vmatprep.mubr.f32.mxu0 0.0
    %956 = vmatmul.mubr.f32.gmra.mrb[0].mxu0 %v874
    %v957 = vpop.f32.mrb[0].mxu0
    %v958 = vadd.f32 0.0, %v957
    %v959 = vpop.f32.mrb[0].mxu0
    %v960 = vadd.f32 0.0, %v959
    %961 = vmatprep.mubr.f32.mxu0 0.0
    %962 = vmatmul.mubr.f32.gmra.mrb[0].mxu0 %v877
    %v963 = vpop.f32.mrb[0].mxu0
    %v964 = vadd.f32 0.0, %v963
    %v965 = vpop.f32.mrb[0].mxu0
    %v966 = vadd.f32 0.0, %v965
    %967 = vmatprep.mubr.f32.mxu0 0.0
    %968 = vmatmul.mubr.f32.gmra.mrb[0].mxu0 %v880
    %v969 = vpop.f32.mrb[0].mxu0
    %v970 = vadd.f32 0.0, %v969
    %v971 = vpop.f32.mrb[0].mxu0
    %v972 = vadd.f32 0.0, %v971
    %973 = vmatprep.mubr.f32.mxu0 0.0
    %974 = vmatmul.mubr.f32.gmra.mrb[0].mxu0 %v883
    %v975 = vpop.f32.mrb[0].mxu0
    %v976 = vadd.f32 0.0, %v975
    %v977 = vpop.f32.mrb[0].mxu0
    %v978 = vadd.f32 0.0, %v977
    %979 = vdwg.mxu0
    %v980 = vadd.f32 %v740, %v952
    %v981 = vadd.f32 %v741, %v954
    %v982 = vadd.f32 %v742, %v958
    %v983 = vadd.f32 %v743, %v960
    %v984 = vadd.f32 %v744, %v964
    %v985 = vadd.f32 %v745, %v966
    %v986 = vadd.f32 %v746, %v970
    %v987 = vadd.f32 %v747, %v972
    %v988 = vadd.f32 %v748, %v976
    %v989 = vadd.f32 %v749, %v978
    %v990 = vmul.f32 %v980, 0.5
    %v991 = vmul.f32 %v981, 0.5
    %v992 = vmul.f32 %v982, 0.5
    %v993 = vmul.f32 %v983, 0.5
    %v994 = vmul.f32 %v984, 0.5
    %v995 = vmul.f32 %v985, 0.5
    %v996 = vmul.f32 %v986, 0.5
    %v997 = vmul.f32 %v987, 0.5
    %v998 = vmul.f32 %v988, 0.5
    %v999 = vmul.f32 %v989, 0.5
    %v1000 = vmul.f32 %v980, 0.70710677
    %v1001 = vmul.f32 %v981, 0.70710677
    %v1002 = vmul.f32 %v982, 0.70710677
    %v1003 = vmul.f32 %v983, 0.70710677
    %v1004 = vmul.f32 %v984, 0.70710677
    %v1005 = vmul.f32 %v985, 0.70710677
    %v1006 = vmul.f32 %v986, 0.70710677
    %v1007 = vmul.f32 %v987, 0.70710677
    %v1008 = vmul.f32 %v988, 0.70710677
    %v1009 = vmul.f32 %v989, 0.70710677
    %v1010 = vand.u32 2147483647, %v1000
    %v1011 = vand.u32 2147483647, %v1001
    %v1012 = vand.u32 2147483647, %v1002
    %v1013 = vand.u32 2147483647, %v1003
    %v1014 = vand.u32 2147483647, %v1004
    %v1015 = vand.u32 2147483647, %v1005
    %v1016 = vand.u32 2147483647, %v1006
    %v1017 = vand.u32 2147483647, %v1007
    %v1018 = vand.u32 2147483647, %v1008
    %v1019 = vand.u32 2147483647, %v1009
    %v1020 = vmul.f32 %v1010, 0.3275911
    %v1021 = vmul.f32 %v1011, 0.3275911
    %v1022 = vmul.f32 %v1012, 0.3275911
    %v1023 = vmul.f32 %v1013, 0.3275911
    %v1024 = vmul.f32 %v1014, 0.3275911
    %v1025 = vmul.f32 %v1015, 0.3275911
    %v1026 = vmul.f32 %v1016, 0.3275911
    %v1027 = vmul.f32 %v1017, 0.3275911
    %v1028 = vmul.f32 %v1018, 0.3275911
    %v1029 = vmul.f32 %v1019, 0.3275911
    %v1030 = vadd.f32 %v1020, 1.0
    %v1031 = vadd.f32 %v1021, 1.0
    %v1032 = vadd.f32 %v1022, 1.0
    %v1033 = vadd.f32 %v1023, 1.0
    %v1034 = vadd.f32 %v1024, 1.0
    %v1035 = vadd.f32 %v1025, 1.0
    %v1036 = vadd.f32 %v1026, 1.0
    %v1037 = vadd.f32 %v1027, 1.0
    %v1038 = vadd.f32 %v1028, 1.0
    %v1039 = vadd.f32 %v1029, 1.0
    %v1040 = vrcp.pop %v1030
    %v1041 = vmul.f32 1.0, %v1040
    %v1042 = vrcp.pop %v1031
    %v1043 = vmul.f32 1.0, %v1042
    %v1044 = vrcp.pop %v1032
    %v1045 = vmul.f32 1.0, %v1044
    %v1046 = vrcp.pop %v1033
    %v1047 = vmul.f32 1.0, %v1046
    %v1048 = vrcp.pop %v1034
    %v1049 = vmul.f32 1.0, %v1048
    %v1050 = vrcp.pop %v1035
    %v1051 = vmul.f32 1.0, %v1050
    %v1052 = vrcp.pop %v1036
    %v1053 = vmul.f32 1.0, %v1052
    %v1054 = vrcp.pop %v1037
    %v1055 = vmul.f32 1.0, %v1054
    %v1056 = vrcp.pop %v1038
    %v1057 = vmul.f32 1.0, %v1056
    %v1058 = vrcp.pop %v1039
    %v1059 = vmul.f32 1.0, %v1058
    %v1060 = vmul.f32 %v1041, 1.0614054
    %v1061 = vmul.f32 %v1043, 1.0614054
    %v1062 = vmul.f32 %v1045, 1.0614054
    %v1063 = vmul.f32 %v1047, 1.0614054
    %v1064 = vmul.f32 %v1049, 1.0614054
    %v1065 = vmul.f32 %v1051, 1.0614054
    %v1066 = vmul.f32 %v1053, 1.0614054
    %v1067 = vmul.f32 %v1055, 1.0614054
    %v1068 = vmul.f32 %v1057, 1.0614054
    %v1069 = vmul.f32 %v1059, 1.0614054
    %v1070 = vadd.f32 %v1060, -1.4531521
    %v1071 = vadd.f32 %v1061, -1.4531521
    %v1072 = vadd.f32 %v1062, -1.4531521
    %v1073 = vadd.f32 %v1063, -1.4531521
    %v1074 = vadd.f32 %v1064, -1.4531521
    %v1075 = vadd.f32 %v1065, -1.4531521
    %v1076 = vadd.f32 %v1066, -1.4531521
    %v1077 = vadd.f32 %v1067, -1.4531521
    %v1078 = vadd.f32 %v1068, -1.4531521
    %v1079 = vadd.f32 %v1069, -1.4531521
    %v1080 = vmul.f32 %v1070, %v1041
    %v1081 = vmul.f32 %v1071, %v1043
    %v1082 = vmul.f32 %v1072, %v1045
    %v1083 = vmul.f32 %v1073, %v1047
    %v1084 = vmul.f32 %v1074, %v1049
    %v1085 = vmul.f32 %v1075, %v1051
    %v1086 = vmul.f32 %v1076, %v1053
    %v1087 = vmul.f32 %v1077, %v1055
    %v1088 = vmul.f32 %v1078, %v1057
    %v1089 = vmul.f32 %v1079, %v1059
    %v1090 = vadd.f32 %v1080, 1.4214138
    %v1091 = vadd.f32 %v1081, 1.4214138
    %v1092 = vadd.f32 %v1082, 1.4214138
    %v1093 = vadd.f32 %v1083, 1.4214138
    %v1094 = vadd.f32 %v1084, 1.4214138
    %v1095 = vadd.f32 %v1085, 1.4214138
    %v1096 = vadd.f32 %v1086, 1.4214138
    %v1097 = vadd.f32 %v1087, 1.4214138
    %v1098 = vadd.f32 %v1088, 1.4214138
    %v1099 = vadd.f32 %v1089, 1.4214138
    %v1100 = vmul.f32 %v1090, %v1041
    %v1101 = vmul.f32 %v1091, %v1043
    %v1102 = vmul.f32 %v1092, %v1045
    %v1103 = vmul.f32 %v1093, %v1047
    %v1104 = vmul.f32 %v1094, %v1049
    %v1105 = vmul.f32 %v1095, %v1051
    %v1106 = vmul.f32 %v1096, %v1053
    %v1107 = vmul.f32 %v1097, %v1055
    %v1108 = vmul.f32 %v1098, %v1057
    %v1109 = vmul.f32 %v1099, %v1059
    %v1110 = vadd.f32 %v1100, -0.28449672
    %v1111 = vadd.f32 %v1101, -0.28449672
    %v1112 = vadd.f32 %v1102, -0.28449672
    %v1113 = vadd.f32 %v1103, -0.28449672
    %v1114 = vadd.f32 %v1104, -0.28449672
    %v1115 = vadd.f32 %v1105, -0.28449672
    %v1116 = vadd.f32 %v1106, -0.28449672
    %v1117 = vadd.f32 %v1107, -0.28449672
    %v1118 = vadd.f32 %v1108, -0.28449672
    %v1119 = vadd.f32 %v1109, -0.28449672
    %v1120 = vmul.f32 %v1110, %v1041
    %v1121 = vmul.f32 %v1111, %v1043
    %v1122 = vmul.f32 %v1112, %v1045
    %v1123 = vmul.f32 %v1113, %v1047
    %v1124 = vmul.f32 %v1114, %v1049
    %v1125 = vmul.f32 %v1115, %v1051
    %v1126 = vmul.f32 %v1116, %v1053
    %v1127 = vmul.f32 %v1117, %v1055
    %v1128 = vmul.f32 %v1118, %v1057
    %v1129 = vmul.f32 %v1119, %v1059
    %v1130 = vadd.f32 %v1120, 0.2548296
    %v1131 = vadd.f32 %v1121, 0.2548296
    %v1132 = vadd.f32 %v1122, 0.2548296
    %v1133 = vadd.f32 %v1123, 0.2548296
    %v1134 = vadd.f32 %v1124, 0.2548296
    %v1135 = vadd.f32 %v1125, 0.2548296
    %v1136 = vadd.f32 %v1126, 0.2548296
    %v1137 = vadd.f32 %v1127, 0.2548296
    %v1138 = vadd.f32 %v1128, 0.2548296
    %v1139 = vadd.f32 %v1129, 0.2548296
    %v1140 = vmul.f32 %v1130, %v1041
    %v1141 = vmul.f32 %v1131, %v1043
    %v1142 = vmul.f32 %v1132, %v1045
    %v1143 = vmul.f32 %v1133, %v1047
    %v1144 = vmul.f32 %v1134, %v1049
    %v1145 = vmul.f32 %v1135, %v1051
    %v1146 = vmul.f32 %v1136, %v1053
    %v1147 = vmul.f32 %v1137, %v1055
    %v1148 = vmul.f32 %v1138, %v1057
    %v1149 = vmul.f32 %v1139, %v1059
    %v1150 = vsub.f32 0.0, %v1010
    %v1151 = vsub.f32 0.0, %v1011
    %v1152 = vsub.f32 0.0, %v1012
    %v1153 = vsub.f32 0.0, %v1013
    %v1154 = vsub.f32 0.0, %v1014
    %v1155 = vsub.f32 0.0, %v1015
    %v1156 = vsub.f32 0.0, %v1016
    %v1157 = vsub.f32 0.0, %v1017
    %v1158 = vsub.f32 0.0, %v1018
    %v1159 = vsub.f32 0.0, %v1019
    %v1160 = vmul.f32 %v1150, %v1010
    %v1161 = vmul.f32 %v1151, %v1011
    %v1162 = vmul.f32 %v1152, %v1012
    %v1163 = vmul.f32 %v1153, %v1013
    %v1164 = vmul.f32 %v1154, %v1014
    %v1165 = vmul.f32 %v1155, %v1015
    %v1166 = vmul.f32 %v1156, %v1016
    %v1167 = vmul.f32 %v1157, %v1017
    %v1168 = vmul.f32 %v1158, %v1018
    %v1169 = vmul.f32 %v1159, %v1019
    %v1170 = vmul.f32 %v1160, 1.442695
    %v1171 = vpow.pop %v1170
    %v1172 = vmul.f32 %v1161, 1.442695
    %v1173 = vpow.pop %v1172
    %v1174 = vmul.f32 %v1162, 1.442695
    %v1175 = vpow.pop %v1174
    %v1176 = vmul.f32 %v1163, 1.442695
    %v1177 = vpow.pop %v1176
    %v1178 = vmul.f32 %v1164, 1.442695
    %v1179 = vpow.pop %v1178
    %v1180 = vmul.f32 %v1165, 1.442695
    %v1181 = vpow.pop %v1180
    %v1182 = vmul.f32 %v1166, 1.442695
    %v1183 = vpow.pop %v1182
    %v1184 = vmul.f32 %v1167, 1.442695
    %v1185 = vpow.pop %v1184
    %v1186 = vmul.f32 %v1168, 1.442695
    %v1187 = vpow.pop %v1186
    %v1188 = vmul.f32 %v1169, 1.442695
    %v1189 = vpow.pop %v1188
    %v1190 = vmul.f32 %v1140, %v1171
    %v1191 = vmul.f32 %v1141, %v1173
    %v1192 = vmul.f32 %v1142, %v1175
    %v1193 = vmul.f32 %v1143, %v1177
    %v1194 = vmul.f32 %v1144, %v1179
    %v1195 = vmul.f32 %v1145, %v1181
    %v1196 = vmul.f32 %v1146, %v1183
    %v1197 = vmul.f32 %v1147, %v1185
    %v1198 = vmul.f32 %v1148, %v1187
    %v1199 = vmul.f32 %v1149, %v1189
    %v1200 = vsub.f32 1.0, %v1190
    %v1201 = vsub.f32 1.0, %v1191
    %v1202 = vsub.f32 1.0, %v1192
    %v1203 = vsub.f32 1.0, %v1193
    %v1204 = vsub.f32 1.0, %v1194
    %v1205 = vsub.f32 1.0, %v1195
    %v1206 = vsub.f32 1.0, %v1196
    %v1207 = vsub.f32 1.0, %v1197
    %v1208 = vsub.f32 1.0, %v1198
    %v1209 = vsub.f32 1.0, %v1199
    %vm1210 = vcmp.ge.f32.partialorder %v1000, 0.0
    %vm1211 = vcmp.ge.f32.partialorder %v1001, 0.0
    %vm1212 = vcmp.ge.f32.partialorder %v1002, 0.0
    %vm1213 = vcmp.ge.f32.partialorder %v1003, 0.0
    %vm1214 = vcmp.ge.f32.partialorder %v1004, 0.0
    %vm1215 = vcmp.ge.f32.partialorder %v1005, 0.0
    %vm1216 = vcmp.ge.f32.partialorder %v1006, 0.0
    %vm1217 = vcmp.ge.f32.partialorder %v1007, 0.0
    %vm1218 = vcmp.ge.f32.partialorder %v1008, 0.0
    %vm1219 = vcmp.ge.f32.partialorder %v1009, 0.0
    %v1220 = vsub.f32 0.0, %v1200
    %v1221 = vsub.f32 0.0, %v1201
    %v1222 = vsub.f32 0.0, %v1202
    %v1223 = vsub.f32 0.0, %v1203
    %v1224 = vsub.f32 0.0, %v1204
    %v1225 = vsub.f32 0.0, %v1205
    %v1226 = vsub.f32 0.0, %v1206
    %v1227 = vsub.f32 0.0, %v1207
    %v1228 = vsub.f32 0.0, %v1208
    %v1229 = vsub.f32 0.0, %v1209
    %v1230 = vsel %vm1210, %v1200, %v1220
    %v1231 = vsel %vm1211, %v1201, %v1221
    %v1232 = vsel %vm1212, %v1202, %v1222
    %v1233 = vsel %vm1213, %v1203, %v1223
    %v1234 = vsel %vm1214, %v1204, %v1224
    %v1235 = vsel %vm1215, %v1205, %v1225
    %v1236 = vsel %vm1216, %v1206, %v1226
    %v1237 = vsel %vm1217, %v1207, %v1227
    %v1238 = vsel %vm1218, %v1208, %v1228
    %v1239 = vsel %vm1219, %v1209, %v1229
    %v1240 = vadd.f32 %v1230, 1.0
    %v1241 = vadd.f32 %v1231, 1.0
    %v1242 = vadd.f32 %v1232, 1.0
    %v1243 = vadd.f32 %v1233, 1.0
    %v1244 = vadd.f32 %v1234, 1.0
    %v1245 = vadd.f32 %v1235, 1.0
    %v1246 = vadd.f32 %v1236, 1.0
    %v1247 = vadd.f32 %v1237, 1.0
    %v1248 = vadd.f32 %v1238, 1.0
    %v1249 = vadd.f32 %v1239, 1.0
    %v1250 = vmul.f32 %v990, %v1240
    %v1251 = vmul.f32 %v991, %v1241
    %v1252 = vmul.f32 %v992, %v1242
    %v1253 = vmul.f32 %v993, %v1243
    %v1254 = vmul.f32 %v994, %v1244
    %v1255 = vmul.f32 %v995, %v1245
    %v1256 = vmul.f32 %v996, %v1246
    %v1257 = vmul.f32 %v997, %v1247
    %v1258 = vmul.f32 %v998, %v1248
    %v1259 = vmul.f32 %v999, %v1249
    %v1260 = vld [vmem:[#allocation12] sm:$0xff]
    %v1261 = vld [vmem:[#allocation12 + $0x8] sm:$0xff]
    %v1262 = vld [vmem:[#allocation12 + $0x10] sm:$0xff]
    %v1263 = vld [vmem:[#allocation12 + $0x18] sm:$0xff]
    %v1264 = vld [vmem:[#allocation12 + $0x20] sm:$0xff]
    %v1265 = vld [vmem:[#allocation12 + $0x28] sm:$0xff]
    %v1266 = vld [vmem:[#allocation12 + $0x30] sm:$0xff]
    %v1267 = vld [vmem:[#allocation12 + $0x38] sm:$0xff]
    %v1268 = vld [vmem:[#allocation12 + $0x40] sm:$0xf]
    %v1269 = vld [vmem:[#allocation12 + $0x48] sm:$0xf]
    %v1270 = vld [vmem:[#allocation9] sm:$0xff]
    %v1271 = vld [vmem:[#allocation9 + $0x8] sm:$0xff]
    %v1272 = vld [vmem:[#allocation9 + $0x10] sm:$0xff]
    %v1273 = vld [vmem:[#allocation9 + $0x18] sm:$0xff]
    %v1274 = vld [vmem:[#allocation9 + $0x20] sm:$0xf]
    %vm1275 = vcmask 293888
    %v1277 = vsel %vm1275, %v1270, 0
    %v1280 = vsel %vm1275, %v1271, 0
    %v1283 = vsel %vm1275, %v1272, 0
    %v1286 = vsel %vm1275, %v1273, 0
    %v1289 = vsel %vm1275, %v1274, 0
    %vm1291 = vcmask 1043456
    %v1293 = vsel %vm1291, %v1258, 0
    %v1296 = vsel %vm1291, %v1259, 0
    %1298 = vmatprep.subr.mxu0 %v1251
    %1299 = vmatpush1.msra.mxu0 %v1250
    %1300 = vmatprep.subr.mxu0 %v1253
    %1301 = vmatpush1.msra.mxu0 %v1252
    %1302 = vmatprep.subr.mxu0 %v1255
    %1303 = vmatpush1.msra.mxu0 %v1254
    %1304 = vmatprep.subr.mxu0 %v1257
    %1305 = vmatpush1.msra.mxu0 %v1256
    %1306 = vmatprep.subr.mxu0 %v1296
    %1307 = vmatpush1.msra.mxu0 %v1293
    %1308 = vmatprep.subr.mxu0 0.0
    %1309 = vmatpush1.msra.mxu0 0.0
    %1310 = vmatprep.subr.mxu0 0.0
    %1311 = vmatpush1.msra.mxu0 0.0
    %1312 = vmatprep.subr.mxu0 0.0
    %1313 = vmatpush1.msra.mxu0 0.0
    %1314 = vmatprep.subr.mxu0 0.0
    %1315 = vmatpush1.msra.mxu0 0.0
    %1316 = vmatprep.subr.mxu0 0.0
    %1317 = vmatpush1.msra.mxu0 0.0
    %1318 = vmatprep.subr.mxu0 0.0
    %1319 = vmatpush1.msra.mxu0 0.0
    %1320 = vmatprep.subr.mxu0 0.0
    %1321 = vmatpush1.msra.mxu0 0.0
    %1322 = vmatprep.subr.mxu0 0.0
    %1323 = vmatpush1.msra.mxu0 0.0
    %1324 = vmatprep.subr.mxu0 0.0
    %1325 = vmatpush1.msra.mxu0 0.0
    %1326 = vmatprep.subr.mxu0 0.0
    %1327 = vmatpush1.msra.mxu0 0.0
    %1328 = vmatprep.subr.mxu0 0.0
    %1329 = vmatpush1.msra.mxu0 0.0
    %1330 = vmatprep.subr.mxu0 0.0
    %1331 = vmatpush1.msra.mxu0 0.0
    %1332 = vmatprep.subr.mxu0 0.0
    %1333 = vmatpush1.msra.mxu0 0.0
    %1334 = vmatprep.subr.mxu0 0.0
    %1335 = vmatpush1.msra.mxu0 0.0
    %1336 = vmatprep.subr.mxu0 0.0
    %1337 = vmatpush1.msra.mxu0 0.0
    %1338 = vmatprep.subr.mxu0 0.0
    %1339 = vmatpush1.msra.mxu0 0.0
    %1340 = vmatprep.subr.mxu0 0.0
    %1341 = vmatpush1.msra.mxu0 0.0
    %1342 = vmatprep.subr.mxu0 0.0
    %1343 = vmatpush1.msra.mxu0 0.0
    %1344 = vmatprep.subr.mxu0 0.0
    %1345 = vmatpush1.msra.mxu0 0.0
    %1346 = vmatprep.subr.mxu0 0.0
    %1347 = vmatpush1.msra.mxu0 0.0
    %1348 = vmatprep.subr.mxu0 0.0
    %1349 = vmatpush1.msra.mxu0 0.0
    %1350 = vmatprep.subr.mxu0 0.0
    %1351 = vmatpush1.msra.mxu0 0.0
    %1352 = vmatprep.subr.mxu0 0.0
    %1353 = vmatpush1.msra.mxu0 0.0
    %1354 = vmatprep.subr.mxu0 0.0
    %1355 = vmatpush1.msra.mxu0 0.0
    %1356 = vmatprep.subr.mxu0 0.0
    %1357 = vmatpush1.msra.mxu0 0.0
    %1358 = vmatprep.subr.mxu0 0.0
    %1359 = vmatpush1.msra.mxu0 0.0
    %1360 = vmatprep.subr.mxu0 0.0
    %1361 = vmatpush1.msra.mxu0 0.0
    %1362 = vmatprep.mubr.f32.mxu0 0.0
    %1363 = vmatmul.mubr.f32.gmra.mrb[0].mxu0 %v1277
    %v1364 = vpop.f32.mrb[0].mxu0
    %v1365 = vadd.f32 0.0, %v1364
    %v1366 = vpop.f32.mrb[0].mxu0
    %v1367 = vadd.f32 0.0, %v1366
    %1368 = vmatprep.mubr.f32.mxu0 0.0
    %1369 = vmatmul.mubr.f32.gmra.mrb[0].mxu0 %v1280
    %v1370 = vpop.f32.mrb[0].mxu0
    %v1371 = vadd.f32 0.0, %v1370
    %v1372 = vpop.f32.mrb[0].mxu0
    %v1373 = vadd.f32 0.0, %v1372
    %1374 = vmatprep.mubr.f32.mxu0 0.0
    %1375 = vmatmul.mubr.f32.gmra.mrb[0].mxu0 %v1283
    %v1376 = vpop.f32.mrb[0].mxu0
    %v1377 = vadd.f32 0.0, %v1376
    %v1378 = vpop.f32.mrb[0].mxu0
    %v1379 = vadd.f32 0.0, %v1378
    %1380 = vmatprep.mubr.f32.mxu0 0.0
    %1381 = vmatmul.mubr.f32.gmra.mrb[0].mxu0 %v1286
    %v1382 = vpop.f32.mrb[0].mxu0
    %v1383 = vadd.f32 0.0, %v1382
    %v1384 = vpop.f32.mrb[0].mxu0
    %v1385 = vadd.f32 0.0, %v1384
    %1386 = vmatprep.mubr.f32.mxu0 0.0
    %1387 = vmatmul.mubr.f32.gmra.mrb[0].mxu0 %v1289
    %v1388 = vpop.f32.mrb[0].mxu0
    %v1389 = vadd.f32 0.0, %v1388
    %v1390 = vpop.f32.mrb[0].mxu0
    %v1391 = vadd.f32 0.0, %v1390
    %1392 = vdwg.mxu0
    %v1393 = vld [vmem:[#allocation10] sm:$0xff]
    %v1394 = vld [vmem:[#allocation10 + $0x8] sm:$0xff]
    %v1395 = vld [vmem:[#allocation10 + $0x10] sm:$0xff]
    %v1396 = vld [vmem:[#allocation10 + $0x18] sm:$0xff]
    %v1397 = vld [vmem:[#allocation10 + $0x20] sm:$0xff]
    %v1398 = vld [vmem:[#allocation10 + $0x28] sm:$0xff]
    %v1399 = vld [vmem:[#allocation10 + $0x30] sm:$0xff]
    %v1400 = vld [vmem:[#allocation10 + $0x38] sm:$0xff]
    %v1401 = vld [vmem:[#allocation10 + $0x40] sm:$0xff]
    %v1402 = vld [vmem:[#allocation10 + $0x48] sm:$0xff]
    %v1403 = vld [vmem:[#allocation10 + $0x50] sm:$0xff]
    %v1404 = vld [vmem:[#allocation10 + $0x58] sm:$0xff]
    %v1405 = vld [vmem:[#allocation10 + $0x60] sm:$0xff]
    %v1406 = vld [vmem:[#allocation10 + $0x68] sm:$0xff]
    %v1407 = vld [vmem:[#allocation10 + $0x70] sm:$0xff]
    %v1408 = vld [vmem:[#allocation10 + $0x78] sm:$0xff]
    %v1409 = vld [vmem:[#allocation10 + $0x80] sm:$0xff]
    %v1410 = vld [vmem:[#allocation10 + $0x88] sm:$0xff]
    %v1411 = vld [vmem:[#allocation10 + $0x90] sm:$0xff]
    %v1412 = vld [vmem:[#allocation10 + $0x98] sm:$0xff]
    %v1413 = vld [vmem:[#allocation10 + $0xa0] sm:$0xff]
    %v1414 = vld [vmem:[#allocation10 + $0xa8] sm:$0xff]
    %v1415 = vld [vmem:[#allocation10 + $0xb0] sm:$0xff]
    %v1416 = vld [vmem:[#allocation10 + $0xb8] sm:$0xff]
    %v1417 = vld [vmem:[#allocation10 + $0xc0] sm:$0xff]
    %v1418 = vld [vmem:[#allocation10 + $0xc8] sm:$0xff]
    %v1419 = vld [vmem:[#allocation10 + $0xd0] sm:$0xff]
    %v1420 = vld [vmem:[#allocation10 + $0xd8] sm:$0xff]
    %v1421 = vld [vmem:[#allocation10 + $0xe0] sm:$0xff]
    %v1422 = vld [vmem:[#allocation10 + $0xe8] sm:$0xff]
    %v1423 = vld [vmem:[#allocation10 + $0xf0] sm:$0xff]
    %v1424 = vld [vmem:[#allocation10 + $0xf8] sm:$0xff]
    %v1425 = vld [vmem:[#allocation10 + $0x100] sm:$0xff]
    %v1426 = vld [vmem:[#allocation10 + $0x108] sm:$0xff]
    %v1427 = vld [vmem:[#allocation10 + $0x110] sm:$0xff]
    %v1428 = vld [vmem:[#allocation10 + $0x118] sm:$0xff]
    %vm1429 = vcmask 130048
    %v1431 = vsel %vm1429, %v1367, 0
    %v1434 = vsel %vm1429, %v1373, 0
    %v1437 = vsel %vm1429, %v1379, 0
    %v1440 = vsel %vm1429, %v1385, 0
    %v1443 = vsel %vm1429, %v1391, 0
    %1445 = vmatprep.subr.mxu0 %v1394
    %1446 = vmatpush1.msra.mxu0 %v1393
    %1447 = vmatprep.subr.mxu0 %v1396
    %1448 = vmatpush1.msra.mxu0 %v1395
    %1449 = vmatprep.subr.mxu0 %v1398
    %1450 = vmatpush1.msra.mxu0 %v1397
    %1451 = vmatprep.subr.mxu0 %v1400
    %1452 = vmatpush1.msra.mxu0 %v1399
    %1453 = vmatprep.subr.mxu0 %v1402
    %1454 = vmatpush1.msra.mxu0 %v1401
    %1455 = vmatprep.subr.mxu0 %v1404
    %1456 = vmatpush1.msra.mxu0 %v1403
    %1457 = vmatprep.subr.mxu0 %v1406
    %1458 = vmatpush1.msra.mxu0 %v1405
    %1459 = vmatprep.subr.mxu0 %v1408
    %1460 = vmatpush1.msra.mxu0 %v1407
    %1461 = vmatprep.subr.mxu0 %v1410
    %1462 = vmatpush1.msra.mxu0 %v1409
    %1463 = vmatprep.subr.mxu0 %v1412
    %1464 = vmatpush1.msra.mxu0 %v1411
    %1465 = vmatprep.subr.mxu0 %v1414
    %1466 = vmatpush1.msra.mxu0 %v1413
    %1467 = vmatprep.subr.mxu0 %v1416
    %1468 = vmatpush1.msra.mxu0 %v1415
    %1469 = vmatprep.subr.mxu0 %v1418
    %1470 = vmatpush1.msra.mxu0 %v1417
    %1471 = vmatprep.subr.mxu0 %v1420
    %1472 = vmatpush1.msra.mxu0 %v1419
    %1473 = vmatprep.subr.mxu0 %v1422
    %1474 = vmatpush1.msra.mxu0 %v1421
    %1475 = vmatprep.subr.mxu0 %v1424
    %1476 = vmatpush1.msra.mxu0 %v1423
    %1477 = vmatprep.subr.mxu0 %v1426
    %1478 = vmatpush1.msra.mxu0 %v1425
    %1479 = vmatprep.subr.mxu0 %v1428
    %1480 = vmatpush1.msra.mxu0 %v1427
    %1481 = vmatprep.subr.mxu0 0.0
    %1482 = vmatpush1.msra.mxu0 0.0
    %1483 = vmatprep.subr.mxu0 0.0
    %1484 = vmatpush1.msra.mxu0 0.0
    %1485 = vmatprep.subr.mxu0 0.0
    %1486 = vmatpush1.msra.mxu0 0.0
    %1487 = vmatprep.subr.mxu0 0.0
    %1488 = vmatpush1.msra.mxu0 0.0
    %1489 = vmatprep.subr.mxu0 0.0
    %1490 = vmatpush1.msra.mxu0 0.0
    %1491 = vmatprep.subr.mxu0 0.0
    %1492 = vmatpush1.msra.mxu0 0.0
    %1493 = vmatprep.subr.mxu0 0.0
    %1494 = vmatpush1.msra.mxu0 0.0
    %1495 = vmatprep.subr.mxu0 0.0
    %1496 = vmatpush1.msra.mxu0 0.0
    %1497 = vmatprep.subr.mxu0 0.0
    %1498 = vmatpush1.msra.mxu0 0.0
    %1499 = vmatprep.subr.mxu0 0.0
    %1500 = vmatpush1.msra.mxu0 0.0
    %1501 = vmatprep.subr.mxu0 0.0
    %1502 = vmatpush1.msra.mxu0 0.0
    %1503 = vmatprep.subr.mxu0 0.0
    %1504 = vmatpush1.msra.mxu0 0.0
    %1505 = vmatprep.subr.mxu0 0.0
    %1506 = vmatpush1.msra.mxu0 0.0
    %1507 = vmatprep.subr.mxu0 0.0
    %1508 = vmatpush1.msra.mxu0 0.0
    %1509 = vmatprep.mubr.f32.mxu0 %v1431
    %1510 = vmatmul.mubr.f32.gmra.mrb[0].mxu0 %v1365
    %v1511 = vpop.f32.mrb[0].mxu0
    %v1512 = vadd.f32 0.0, %v1511
    %v1513 = vpop.f32.mrb[0].mxu0
    %v1514 = vadd.f32 0.0, %v1513
    %1515 = vmatprep.mubr.f32.mxu0 %v1434
    %1516 = vmatmul.mubr.f32.gmra.mrb[0].mxu0 %v1371
    %v1517 = vpop.f32.mrb[0].mxu0
    %v1518 = vadd.f32 0.0, %v1517
    %v1519 = vpop.f32.mrb[0].mxu0
    %v1520 = vadd.f32 0.0, %v1519
    %1521 = vmatprep.mubr.f32.mxu0 %v1437
    %1522 = vmatmul.mubr.f32.gmra.mrb[0].mxu0 %v1377
    %v1523 = vpop.f32.mrb[0].mxu0
    %v1524 = vadd.f32 0.0, %v1523
    %v1525 = vpop.f32.mrb[0].mxu0
    %v1526 = vadd.f32 0.0, %v1525
    %1527 = vmatprep.mubr.f32.mxu0 %v1440
    %1528 = vmatmul.mubr.f32.gmra.mrb[0].mxu0 %v1383
    %v1529 = vpop.f32.mrb[0].mxu0
    %v1530 = vadd.f32 0.0, %v1529
    %v1531 = vpop.f32.mrb[0].mxu0
    %v1532 = vadd.f32 0.0, %v1531
    %1533 = vmatprep.mubr.f32.mxu0 %v1443
    %1534 = vmatmul.mubr.f32.gmra.mrb[0].mxu0 %v1389
    %v1535 = vpop.f32.mrb[0].mxu0
    %v1536 = vadd.f32 0.0, %v1535
    %v1537 = vpop.f32.mrb[0].mxu0
    %v1538 = vadd.f32 0.0, %v1537
    %1539 = vdwg.mxu0
    %v1540 = vadd.f32 %v1260, %v1512
    %v1541 = vadd.f32 %v1261, %v1514
    %v1542 = vadd.f32 %v1262, %v1518
    %v1543 = vadd.f32 %v1263, %v1520
    %v1544 = vadd.f32 %v1264, %v1524
    %v1545 = vadd.f32 %v1265, %v1526
    %v1546 = vadd.f32 %v1266, %v1530
    %v1547 = vadd.f32 %v1267, %v1532
    %v1548 = vadd.f32 %v1268, %v1536
    %v1549 = vadd.f32 %v1269, %v1538
    %s1550 = scalar_lea.vmem [#allocation9], 40
    %v1551 = vld [vmem:[%s1550] sm:$0xff]
    %v1552 = vld [vmem:[%s1550 + $0x8] sm:$0xff]
    %v1553 = vld [vmem:[%s1550 + $0x10] sm:$0xff]
    %v1554 = vld [vmem:[%s1550 + $0x18] sm:$0xff]
    %v1555 = vld [vmem:[%s1550 + $0x20] sm:$0xf]
    %v1557 = vsel %vm1275, %v1551, 0
    %v1560 = vsel %vm1275, %v1552, 0
    %v1563 = vsel %vm1275, %v1553, 0
    %v1566 = vsel %vm1275, %v1554, 0
    %v1569 = vsel %vm1275, %v1555, 0
    %1571 = vmatprep.subr.mxu0 %v1251
    %1572 = vmatpush1.msra.mxu0 %v1250
    %1573 = vmatprep.subr.mxu0 %v1253
    %1574 = vmatpush1.msra.mxu0 %v1252
    %1575 = vmatprep.subr.mxu0 %v1255
    %1576 = vmatpush1.msra.mxu0 %v1254
    %1577 = vmatprep.subr.mxu0 %v1257
    %1578 = vmatpush1.msra.mxu0 %v1256
    %1579 = vmatprep.subr.mxu0 %v1296
    %1580 = vmatpush1.msra.mxu0 %v1293
    %1581 = vmatprep.subr.mxu0 0.0
    %1582 = vmatpush1.msra.mxu0 0.0
    %1583 = vmatprep.subr.mxu0 0.0
    %1584 = vmatpush1.msra.mxu0 0.0
    %1585 = vmatprep.subr.mxu0 0.0
    %1586 = vmatpush1.msra.mxu0 0.0
    %1587 = vmatprep.subr.mxu0 0.0
    %1588 = vmatpush1.msra.mxu0 0.0
    %1589 = vmatprep.subr.mxu0 0.0
    %1590 = vmatpush1.msra.mxu0 0.0
    %1591 = vmatprep.subr.mxu0 0.0
    %1592 = vmatpush1.msra.mxu0 0.0
    %1593 = vmatprep.subr.mxu0 0.0
    %1594 = vmatpush1.msra.mxu0 0.0
    %1595 = vmatprep.subr.mxu0 0.0
    %1596 = vmatpush1.msra.mxu0 0.0
    %1597 = vmatprep.subr.mxu0 0.0
    %1598 = vmatpush1.msra.mxu0 0.0
    %1599 = vmatprep.subr.mxu0 0.0
    %1600 = vmatpush1.msra.mxu0 0.0
    %1601 = vmatprep.subr.mxu0 0.0
    %1602 = vmatpush1.msra.mxu0 0.0
    %1603 = vmatprep.subr.mxu0 0.0
    %1604 = vmatpush1.msra.mxu0 0.0
    %1605 = vmatprep.subr.mxu0 0.0
    %1606 = vmatpush1.msra.mxu0 0.0
    %1607 = vmatprep.subr.mxu0 0.0
    %1608 = vmatpush1.msra.mxu0 0.0
    %1609 = vmatprep.subr.mxu0 0.0
    %1610 = vmatpush1.msra.mxu0 0.0
    %1611 = vmatprep.subr.mxu0 0.0
    %1612 = vmatpush1.msra.mxu0 0.0
    %1613 = vmatprep.subr.mxu0 0.0
    %1614 = vmatpush1.msra.mxu0 0.0
    %1615 = vmatprep.subr.mxu0 0.0
    %1616 = vmatpush1.msra.mxu0 0.0
    %1617 = vmatprep.subr.mxu0 0.0
    %1618 = vmatpush1.msra.mxu0 0.0
    %1619 = vmatprep.subr.mxu0 0.0
    %1620 = vmatpush1.msra.mxu0 0.0
    %1621 = vmatprep.subr.mxu0 0.0
    %1622 = vmatpush1.msra.mxu0 0.0
    %1623 = vmatprep.subr.mxu0 0.0
    %1624 = vmatpush1.msra.mxu0 0.0
    %1625 = vmatprep.subr.mxu0 0.0
    %1626 = vmatpush1.msra.mxu0 0.0
    %1627 = vmatprep.subr.mxu0 0.0
    %1628 = vmatpush1.msra.mxu0 0.0
    %1629 = vmatprep.subr.mxu0 0.0
    %1630 = vmatpush1.msra.mxu0 0.0
    %1631 = vmatprep.subr.mxu0 0.0
    %1632 = vmatpush1.msra.mxu0 0.0
    %1633 = vmatprep.subr.mxu0 0.0
    %1634 = vmatpush1.msra.mxu0 0.0
    %1635 = vmatprep.mubr.f32.mxu0 0.0
    %1636 = vmatmul.mubr.f32.gmra.mrb[0].mxu0 %v1557
    %v1637 = vpop.f32.mrb[0].mxu0
    %v1638 = vadd.f32 0.0, %v1637
    %v1639 = vpop.f32.mrb[0].mxu0
    %v1640 = vadd.f32 0.0, %v1639
    %1641 = vmatprep.mubr.f32.mxu0 0.0
    %1642 = vmatmul.mubr.f32.gmra.mrb[0].mxu0 %v1560
    %v1643 = vpop.f32.mrb[0].mxu0
    %v1644 = vadd.f32 0.0, %v1643
    %v1645 = vpop.f32.mrb[0].mxu0
    %v1646 = vadd.f32 0.0, %v1645
    %1647 = vmatprep.mubr.f32.mxu0 0.0
    %1648 = vmatmul.mubr.f32.gmra.mrb[0].mxu0 %v1563
    %v1649 = vpop.f32.mrb[0].mxu0
    %v1650 = vadd.f32 0.0, %v1649
    %v1651 = vpop.f32.mrb[0].mxu0
    %v1652 = vadd.f32 0.0, %v1651
    %1653 = vmatprep.mubr.f32.mxu0 0.0
    %1654 = vmatmul.mubr.f32.gmra.mrb[0].mxu0 %v1566
    %v1655 = vpop.f32.mrb[0].mxu0
    %v1656 = vadd.f32 0.0, %v1655
    %v1657 = vpop.f32.mrb[0].mxu0
    %v1658 = vadd.f32 0.0, %v1657
    %1659 = vmatprep.mubr.f32.mxu0 0.0
    %1660 = vmatmul.mubr.f32.gmra.mrb[0].mxu0 %v1569
    %v1661 = vpop.f32.mrb[0].mxu0
    %v1662 = vadd.f32 0.0, %v1661
    %v1663 = vpop.f32.mrb[0].mxu0
    %v1664 = vadd.f32 0.0, %v1663
    %1665 = vdwg.mxu0
    %s1666 = scalar_lea.vmem [#allocation10], 288
    %v1667 = vld [vmem:[%s1666] sm:$0xff]
    %v1668 = vld [vmem:[%s1666 + $0x8] sm:$0xff]
    %v1669 = vld [vmem:[%s1666 + $0x10] sm:$0xff]
    %v1670 = vld [vmem:[%s1666 + $0x18] sm:$0xff]
    %v1671 = vld [vmem:[%s1666 + $0x20] sm:$0xff]
    %v1672 = vld [vmem:[%s1666 + $0x28] sm:$0xff]
    %v1673 = vld [vmem:[%s1666 + $0x30] sm:$0xff]
    %v1674 = vld [vmem:[%s1666 + $0x38] sm:$0xff]
    %v1675 = vld [vmem:[%s1666 + $0x40] sm:$0xff]
    %v1676 = vld [vmem:[%s1666 + $0x48] sm:$0xff]
    %v1677 = vld [vmem:[%s1666 + $0x50] sm:$0xff]
    %v1678 = vld [vmem:[%s1666 + $0x58] sm:$0xff]
    %v1679 = vld [vmem:[%s1666 + $0x60] sm:$0xff]
    %v1680 = vld [vmem:[%s1666 + $0x68] sm:$0xff]
    %v1681 = vld [vmem:[%s1666 + $0x70] sm:$0xff]
    %v1682 = vld [vmem:[%s1666 + $0x78] sm:$0xff]
    %v1683 = vld [vmem:[%s1666 + $0x80] sm:$0xff]
    %v1684 = vld [vmem:[%s1666 + $0x88] sm:$0xff]
    %v1685 = vld [vmem:[%s1666 + $0x90] sm:$0xff]
    %v1686 = vld [vmem:[%s1666 + $0x98] sm:$0xff]
    %v1687 = vld [vmem:[%s1666 + $0xa0] sm:$0xff]
    %v1688 = vld [vmem:[%s1666 + $0xa8] sm:$0xff]
    %v1689 = vld [vmem:[%s1666 + $0xb0] sm:$0xff]
    %v1690 = vld [vmem:[%s1666 + $0xb8] sm:$0xff]
    %v1691 = vld [vmem:[%s1666 + $0xc0] sm:$0xff]
    %v1692 = vld [vmem:[%s1666 + $0xc8] sm:$0xff]
    %v1693 = vld [vmem:[%s1666 + $0xd0] sm:$0xff]
    %v1694 = vld [vmem:[%s1666 + $0xd8] sm:$0xff]
    %v1695 = vld [vmem:[%s1666 + $0xe0] sm:$0xff]
    %v1696 = vld [vmem:[%s1666 + $0xe8] sm:$0xff]
    %v1697 = vld [vmem:[%s1666 + $0xf0] sm:$0xff]
    %v1698 = vld [vmem:[%s1666 + $0xf8] sm:$0xff]
    %v1699 = vld [vmem:[%s1666 + $0x100] sm:$0xff]
    %v1700 = vld [vmem:[%s1666 + $0x108] sm:$0xff]
    %v1701 = vld [vmem:[%s1666 + $0x110] sm:$0xff]
    %v1702 = vld [vmem:[%s1666 + $0x118] sm:$0xff]
    %v1704 = vsel %vm1429, %v1640, 0
    %v1707 = vsel %vm1429, %v1646, 0
    %v1710 = vsel %vm1429, %v1652, 0
    %v1713 = vsel %vm1429, %v1658, 0
    %v1716 = vsel %vm1429, %v1664, 0
    %1718 = vmatprep.subr.mxu0 %v1668
    %1719 = vmatpush1.msra.mxu0 %v1667
    %1720 = vmatprep.subr.mxu0 %v1670
    %1721 = vmatpush1.msra.mxu0 %v1669
    %1722 = vmatprep.subr.mxu0 %v1672
    %1723 = vmatpush1.msra.mxu0 %v1671
    %1724 = vmatprep.subr.mxu0 %v1674
    %1725 = vmatpush1.msra.mxu0 %v1673
    %1726 = vmatprep.subr.mxu0 %v1676
    %1727 = vmatpush1.msra.mxu0 %v1675
    %1728 = vmatprep.subr.mxu0 %v1678
    %1729 = vmatpush1.msra.mxu0 %v1677
    %1730 = vmatprep.subr.mxu0 %v1680
    %1731 = vmatpush1.msra.mxu0 %v1679
    %1732 = vmatprep.subr.mxu0 %v1682
    %1733 = vmatpush1.msra.mxu0 %v1681
    %1734 = vmatprep.subr.mxu0 %v1684
    %1735 = vmatpush1.msra.mxu0 %v1683
    %1736 = vmatprep.subr.mxu0 %v1686
    %1737 = vmatpush1.msra.mxu0 %v1685
    %1738 = vmatprep.subr.mxu0 %v1688
    %1739 = vmatpush1.msra.mxu0 %v1687
    %1740 = vmatprep.subr.mxu0 %v1690
    %1741 = vmatpush1.msra.mxu0 %v1689
    %1742 = vmatprep.subr.mxu0 %v1692
    %1743 = vmatpush1.msra.mxu0 %v1691
    %1744 = vmatprep.subr.mxu0 %v1694
    %1745 = vmatpush1.msra.mxu0 %v1693
    %1746 = vmatprep.subr.mxu0 %v1696
    %1747 = vmatpush1.msra.mxu0 %v1695
    %1748 = vmatprep.subr.mxu0 %v1698
    %1749 = vmatpush1.msra.mxu0 %v1697
    %1750 = vmatprep.subr.mxu0 %v1700
    %1751 = vmatpush1.msra.mxu0 %v1699
    %1752 = vmatprep.subr.mxu0 %v1702
    %1753 = vmatpush1.msra.mxu0 %v1701
    %1754 = vmatprep.subr.mxu0 0.0
    %1755 = vmatpush1.msra.mxu0 0.0
    %1756 = vmatprep.subr.mxu0 0.0
    %1757 = vmatpush1.msra.mxu0 0.0
    %1758 = vmatprep.subr.mxu0 0.0
    %1759 = vmatpush1.msra.mxu0 0.0
    %1760 = vmatprep.subr.mxu0 0.0
    %1761 = vmatpush1.msra.mxu0 0.0
    %1762 = vmatprep.subr.mxu0 0.0
    %1763 = vmatpush1.msra.mxu0 0.0
    %1764 = vmatprep.subr.mxu0 0.0
    %1765 = vmatpush1.msra.mxu0 0.0
    %1766 = vmatprep.subr.mxu0 0.0
    %1767 = vmatpush1.msra.mxu0 0.0
    %1768 = vmatprep.subr.mxu0 0.0
    %1769 = vmatpush1.msra.mxu0 0.0
    %1770 = vmatprep.subr.mxu0 0.0
    %1771 = vmatpush1.msra.mxu0 0.0
    %1772 = vmatprep.subr.mxu0 0.0
    %1773 = vmatpush1.msra.mxu0 0.0
    %1774 = vmatprep.subr.mxu0 0.0
    %1775 = vmatpush1.msra.mxu0 0.0
    %1776 = vmatprep.subr.mxu0 0.0
    %1777 = vmatpush1.msra.mxu0 0.0
    %1778 = vmatprep.subr.mxu0 0.0
    %1779 = vmatpush1.msra.mxu0 0.0
    %1780 = vmatprep.subr.mxu0 0.0
    %1781 = vmatpush1.msra.mxu0 0.0
    %1782 = vmatprep.mubr.f32.mxu0 %v1704
    %1783 = vmatmul.mubr.f32.gmra.mrb[0].mxu0 %v1638
    %v1784 = vpop.f32.mrb[0].mxu0
    %v1785 = vadd.f32 0.0, %v1784
    %v1786 = vpop.f32.mrb[0].mxu0
    %v1787 = vadd.f32 0.0, %v1786
    %1788 = vmatprep.mubr.f32.mxu0 %v1707
    %1789 = vmatmul.mubr.f32.gmra.mrb[0].mxu0 %v1644
    %v1790 = vpop.f32.mrb[0].mxu0
    %v1791 = vadd.f32 0.0, %v1790
    %v1792 = vpop.f32.mrb[0].mxu0
    %v1793 = vadd.f32 0.0, %v1792
    %1794 = vmatprep.mubr.f32.mxu0 %v1710
    %1795 = vmatmul.mubr.f32.gmra.mrb[0].mxu0 %v1650
    %v1796 = vpop.f32.mrb[0].mxu0
    %v1797 = vadd.f32 0.0, %v1796
    %v1798 = vpop.f32.mrb[0].mxu0
    %v1799 = vadd.f32 0.0, %v1798
    %1800 = vmatprep.mubr.f32.mxu0 %v1713
    %1801 = vmatmul.mubr.f32.gmra.mrb[0].mxu0 %v1656
    %v1802 = vpop.f32.mrb[0].mxu0
    %v1803 = vadd.f32 0.0, %v1802
    %v1804 = vpop.f32.mrb[0].mxu0
    %v1805 = vadd.f32 0.0, %v1804
    %1806 = vmatprep.mubr.f32.mxu0 %v1716
    %1807 = vmatmul.mubr.f32.gmra.mrb[0].mxu0 %v1662
    %v1808 = vpop.f32.mrb[0].mxu0
    %v1809 = vadd.f32 0.0, %v1808
    %v1810 = vpop.f32.mrb[0].mxu0
    %v1811 = vadd.f32 0.0, %v1810
    %1812 = vdwg.mxu0
    %v1813 = vadd.f32 %v1540, %v1785
    %v1814 = vadd.f32 %v1541, %v1787
    %v1815 = vadd.f32 %v1542, %v1791
    %v1816 = vadd.f32 %v1543, %v1793
    %v1817 = vadd.f32 %v1544, %v1797
    %v1818 = vadd.f32 %v1545, %v1799
    %v1819 = vadd.f32 %v1546, %v1803
    %v1820 = vadd.f32 %v1547, %v1805
    %v1821 = vadd.f32 %v1548, %v1809
    %v1822 = vadd.f32 %v1549, %v1811
    %s1823 = scalar_lea.vmem [#allocation9], 80
    %v1824 = vld [vmem:[%s1823] sm:$0xff]
    %v1825 = vld [vmem:[%s1823 + $0x8] sm:$0xff]
    %v1826 = vld [vmem:[%s1823 + $0x10] sm:$0xff]
    %v1827 = vld [vmem:[%s1823 + $0x18] sm:$0xff]
    %v1828 = vld [vmem:[%s1823 + $0x20] sm:$0xf]
    %v1830 = vsel %vm1275, %v1824, 0
    %v1833 = vsel %vm1275, %v1825, 0
    %v1836 = vsel %vm1275, %v1826, 0
    %v1839 = vsel %vm1275, %v1827, 0
    %v1842 = vsel %vm1275, %v1828, 0
    %1844 = vmatprep.subr.mxu0 %v1251
    %1845 = vmatpush1.msra.mxu0 %v1250
    %1846 = vmatprep.subr.mxu0 %v1253
    %1847 = vmatpush1.msra.mxu0 %v1252
    %1848 = vmatprep.subr.mxu0 %v1255
    %1849 = vmatpush1.msra.mxu0 %v1254
    %1850 = vmatprep.subr.mxu0 %v1257
    %1851 = vmatpush1.msra.mxu0 %v1256
    %1852 = vmatprep.subr.mxu0 %v1296
    %1853 = vmatpush1.msra.mxu0 %v1293
    %1854 = vmatprep.subr.mxu0 0.0
    %1855 = vmatpush1.msra.mxu0 0.0
    %1856 = vmatprep.subr.mxu0 0.0
    %1857 = vmatpush1.msra.mxu0 0.0
    %1858 = vmatprep.subr.mxu0 0.0
    %1859 = vmatpush1.msra.mxu0 0.0
    %1860 = vmatprep.subr.mxu0 0.0
    %1861 = vmatpush1.msra.mxu0 0.0
    %1862 = vmatprep.subr.mxu0 0.0
    %1863 = vmatpush1.msra.mxu0 0.0
    %1864 = vmatprep.subr.mxu0 0.0
    %1865 = vmatpush1.msra.mxu0 0.0
    %1866 = vmatprep.subr.mxu0 0.0
    %1867 = vmatpush1.msra.mxu0 0.0
    %1868 = vmatprep.subr.mxu0 0.0
    %1869 = vmatpush1.msra.mxu0 0.0
    %1870 = vmatprep.subr.mxu0 0.0
    %1871 = vmatpush1.msra.mxu0 0.0
    %1872 = vmatprep.subr.mxu0 0.0
    %1873 = vmatpush1.msra.mxu0 0.0
    %1874 = vmatprep.subr.mxu0 0.0
    %1875 = vmatpush1.msra.mxu0 0.0
    %1876 = vmatprep.subr.mxu0 0.0
    %1877 = vmatpush1.msra.mxu0 0.0
    %1878 = vmatprep.subr.mxu0 0.0
    %1879 = vmatpush1.msra.mxu0 0.0
    %1880 = vmatprep.subr.mxu0 0.0
    %1881 = vmatpush1.msra.mxu0 0.0
    %1882 = vmatprep.subr.mxu0 0.0
    %1883 = vmatpush1.msra.mxu0 0.0
    %1884 = vmatprep.subr.mxu0 0.0
    %1885 = vmatpush1.msra.mxu0 0.0
    %1886 = vmatprep.subr.mxu0 0.0
    %1887 = vmatpush1.msra.mxu0 0.0
    %1888 = vmatprep.subr.mxu0 0.0
    %1889 = vmatpush1.msra.mxu0 0.0
    %1890 = vmatprep.subr.mxu0 0.0
    %1891 = vmatpush1.msra.mxu0 0.0
    %1892 = vmatprep.subr.mxu0 0.0
    %1893 = vmatpush1.msra.mxu0 0.0
    %1894 = vmatprep.subr.mxu0 0.0
    %1895 = vmatpush1.msra.mxu0 0.0
    %1896 = vmatprep.subr.mxu0 0.0
    %1897 = vmatpush1.msra.mxu0 0.0
    %1898 = vmatprep.subr.mxu0 0.0
    %1899 = vmatpush1.msra.mxu0 0.0
    %1900 = vmatprep.subr.mxu0 0.0
    %1901 = vmatpush1.msra.mxu0 0.0
    %1902 = vmatprep.subr.mxu0 0.0
    %1903 = vmatpush1.msra.mxu0 0.0
    %1904 = vmatprep.subr.mxu0 0.0
    %1905 = vmatpush1.msra.mxu0 0.0
    %1906 = vmatprep.subr.mxu0 0.0
    %1907 = vmatpush1.msra.mxu0 0.0
    %1908 = vmatprep.mubr.f32.mxu0 0.0
    %1909 = vmatmul.mubr.f32.gmra.mrb[0].mxu0 %v1830
    %v1910 = vpop.f32.mrb[0].mxu0
    %v1911 = vadd.f32 0.0, %v1910
    %v1912 = vpop.f32.mrb[0].mxu0
    %v1913 = vadd.f32 0.0, %v1912
    %1914 = vmatprep.mubr.f32.mxu0 0.0
    %1915 = vmatmul.mubr.f32.gmra.mrb[0].mxu0 %v1833
    %v1916 = vpop.f32.mrb[0].mxu0
    %v1917 = vadd.f32 0.0, %v1916
    %v1918 = vpop.f32.mrb[0].mxu0
    %v1919 = vadd.f32 0.0, %v1918
    %1920 = vmatprep.mubr.f32.mxu0 0.0
    %1921 = vmatmul.mubr.f32.gmra.mrb[0].mxu0 %v1836
    %v1922 = vpop.f32.mrb[0].mxu0
    %v1923 = vadd.f32 0.0, %v1922
    %v1924 = vpop.f32.mrb[0].mxu0
    %v1925 = vadd.f32 0.0, %v1924
    %1926 = vmatprep.mubr.f32.mxu0 0.0
    %1927 = vmatmul.mubr.f32.gmra.mrb[0].mxu0 %v1839
    %v1928 = vpop.f32.mrb[0].mxu0
    %v1929 = vadd.f32 0.0, %v1928
    %v1930 = vpop.f32.mrb[0].mxu0
    %v1931 = vadd.f32 0.0, %v1930
    %1932 = vmatprep.mubr.f32.mxu0 0.0
    %1933 = vmatmul.mubr.f32.gmra.mrb[0].mxu0 %v1842
    %v1934 = vpop.f32.mrb[0].mxu0
    %v1935 = vadd.f32 0.0, %v1934
    %v1936 = vpop.f32.mrb[0].mxu0
    %v1937 = vadd.f32 0.0, %v1936
    %1938 = vdwg.mxu0
    %s1939 = scalar_lea.vmem [#allocation10], 576
    %v1940 = vld [vmem:[%s1939] sm:$0xff]
    %v1941 = vld [vmem:[%s1939 + $0x8] sm:$0xff]
    %v1942 = vld [vmem:[%s1939 + $0x10] sm:$0xff]
    %v1943 = vld [vmem:[%s1939 + $0x18] sm:$0xff]
    %v1944 = vld [vmem:[%s1939 + $0x20] sm:$0xff]
    %v1945 = vld [vmem:[%s1939 + $0x28] sm:$0xff]
    %v1946 = vld [vmem:[%s1939 + $0x30] sm:$0xff]
    %v1947 = vld [vmem:[%s1939 + $0x38] sm:$0xff]
    %v1948 = vld [vmem:[%s1939 + $0x40] sm:$0xff]
    %v1949 = vld [vmem:[%s1939 + $0x48] sm:$0xff]
    %v1950 = vld [vmem:[%s1939 + $0x50] sm:$0xff]
    %v1951 = vld [vmem:[%s1939 + $0x58] sm:$0xff]
    %v1952 = vld [vmem:[%s1939 + $0x60] sm:$0xff]
    %v1953 = vld [vmem:[%s1939 + $0x68] sm:$0xff]
    %v1954 = vld [vmem:[%s1939 + $0x70] sm:$0xff]
    %v1955 = vld [vmem:[%s1939 + $0x78] sm:$0xff]
    %v1956 = vld [vmem:[%s1939 + $0x80] sm:$0xff]
    %v1957 = vld [vmem:[%s1939 + $0x88] sm:$0xff]
    %v1958 = vld [vmem:[%s1939 + $0x90] sm:$0xff]
    %v1959 = vld [vmem:[%s1939 + $0x98] sm:$0xff]
    %v1960 = vld [vmem:[%s1939 + $0xa0] sm:$0xff]
    %v1961 = vld [vmem:[%s1939 + $0xa8] sm:$0xff]
    %v1962 = vld [vmem:[%s1939 + $0xb0] sm:$0xff]
    %v1963 = vld [vmem:[%s1939 + $0xb8] sm:$0xff]
    %v1964 = vld [vmem:[%s1939 + $0xc0] sm:$0xff]
    %v1965 = vld [vmem:[%s1939 + $0xc8] sm:$0xff]
    %v1966 = vld [vmem:[%s1939 + $0xd0] sm:$0xff]
    %v1967 = vld [vmem:[%s1939 + $0xd8] sm:$0xff]
    %v1968 = vld [vmem:[%s1939 + $0xe0] sm:$0xff]
    %v1969 = vld [vmem:[%s1939 + $0xe8] sm:$0xff]
    %v1970 = vld [vmem:[%s1939 + $0xf0] sm:$0xff]
    %v1971 = vld [vmem:[%s1939 + $0xf8] sm:$0xff]
    %v1972 = vld [vmem:[%s1939 + $0x100] sm:$0xff]
    %v1973 = vld [vmem:[%s1939 + $0x108] sm:$0xff]
    %v1974 = vld [vmem:[%s1939 + $0x110] sm:$0xff]
    %v1975 = vld [vmem:[%s1939 + $0x118] sm:$0xff]
    %v1977 = vsel %vm1429, %v1913, 0
    %v1980 = vsel %vm1429, %v1919, 0
    %v1983 = vsel %vm1429, %v1925, 0
    %v1986 = vsel %vm1429, %v1931, 0
    %v1989 = vsel %vm1429, %v1937, 0
    %1991 = vmatprep.subr.mxu0 %v1941
    %1992 = vmatpush1.msra.mxu0 %v1940
    %1993 = vmatprep.subr.mxu0 %v1943
    %1994 = vmatpush1.msra.mxu0 %v1942
    %1995 = vmatprep.subr.mxu0 %v1945
    %1996 = vmatpush1.msra.mxu0 %v1944
    %1997 = vmatprep.subr.mxu0 %v1947
    %1998 = vmatpush1.msra.mxu0 %v1946
    %1999 = vmatprep.subr.mxu0 %v1949
    %2000 = vmatpush1.msra.mxu0 %v1948
    %2001 = vmatprep.subr.mxu0 %v1951
    %2002 = vmatpush1.msra.mxu0 %v1950
    %2003 = vmatprep.subr.mxu0 %v1953
    %2004 = vmatpush1.msra.mxu0 %v1952
    %2005 = vmatprep.subr.mxu0 %v1955
    %2006 = vmatpush1.msra.mxu0 %v1954
    %2007 = vmatprep.subr.mxu0 %v1957
    %2008 = vmatpush1.msra.mxu0 %v1956
    %2009 = vmatprep.subr.mxu0 %v1959
    %2010 = vmatpush1.msra.mxu0 %v1958
    %2011 = vmatprep.subr.mxu0 %v1961
    %2012 = vmatpush1.msra.mxu0 %v1960
    %2013 = vmatprep.subr.mxu0 %v1963
    %2014 = vmatpush1.msra.mxu0 %v1962
    %2015 = vmatprep.subr.mxu0 %v1965
    %2016 = vmatpush1.msra.mxu0 %v1964
    %2017 = vmatprep.subr.mxu0 %v1967
    %2018 = vmatpush1.msra.mxu0 %v1966
    %2019 = vmatprep.subr.mxu0 %v1969
    %2020 = vmatpush1.msra.mxu0 %v1968
    %2021 = vmatprep.subr.mxu0 %v1971
    %2022 = vmatpush1.msra.mxu0 %v1970
    %2023 = vmatprep.subr.mxu0 %v1973
    %2024 = vmatpush1.msra.mxu0 %v1972
    %2025 = vmatprep.subr.mxu0 %v1975
    %2026 = vmatpush1.msra.mxu0 %v1974
    %2027 = vmatprep.subr.mxu0 0.0
    %2028 = vmatpush1.msra.mxu0 0.0
    %2029 = vmatprep.subr.mxu0 0.0
    %2030 = vmatpush1.msra.mxu0 0.0
    %2031 = vmatprep.subr.mxu0 0.0
    %2032 = vmatpush1.msra.mxu0 0.0
    %2033 = vmatprep.subr.mxu0 0.0
    %2034 = vmatpush1.msra.mxu0 0.0
    %2035 = vmatprep.subr.mxu0 0.0
    %2036 = vmatpush1.msra.mxu0 0.0
    %2037 = vmatprep.subr.mxu0 0.0
    %2038 = vmatpush1.msra.mxu0 0.0
    %2039 = vmatprep.subr.mxu0 0.0
    %2040 = vmatpush1.msra.mxu0 0.0
    %2041 = vmatprep.subr.mxu0 0.0
    %2042 = vmatpush1.msra.mxu0 0.0
    %2043 = vmatprep.subr.mxu0 0.0
    %2044 = vmatpush1.msra.mxu0 0.0
    %2045 = vmatprep.subr.mxu0 0.0
    %2046 = vmatpush1.msra.mxu0 0.0
    %2047 = vmatprep.subr.mxu0 0.0
    %2048 = vmatpush1.msra.mxu0 0.0
    %2049 = vmatprep.subr.mxu0 0.0
    %2050 = vmatpush1.msra.mxu0 0.0
    %2051 = vmatprep.subr.mxu0 0.0
    %2052 = vmatpush1.msra.mxu0 0.0
    %2053 = vmatprep.subr.mxu0 0.0
    %2054 = vmatpush1.msra.mxu0 0.0
    %2055 = vmatprep.mubr.f32.mxu0 %v1977
    %2056 = vmatmul.mubr.f32.gmra.mrb[0].mxu0 %v1911
    %v2057 = vpop.f32.mrb[0].mxu0
    %v2058 = vadd.f32 0.0, %v2057
    %v2059 = vpop.f32.mrb[0].mxu0
    %v2060 = vadd.f32 0.0, %v2059
    %2061 = vmatprep.mubr.f32.mxu0 %v1980
    %2062 = vmatmul.mubr.f32.gmra.mrb[0].mxu0 %v1917
    %v2063 = vpop.f32.mrb[0].mxu0
    %v2064 = vadd.f32 0.0, %v2063
    %v2065 = vpop.f32.mrb[0].mxu0
    %v2066 = vadd.f32 0.0, %v2065
    %2067 = vmatprep.mubr.f32.mxu0 %v1983
    %2068 = vmatmul.mubr.f32.gmra.mrb[0].mxu0 %v1923
    %v2069 = vpop.f32.mrb[0].mxu0
    %v2070 = vadd.f32 0.0, %v2069
    %v2071 = vpop.f32.mrb[0].mxu0
    %v2072 = vadd.f32 0.0, %v2071
    %2073 = vmatprep.mubr.f32.mxu0 %v1986
    %2074 = vmatmul.mubr.f32.gmra.mrb[0].mxu0 %v1929
    %v2075 = vpop.f32.mrb[0].mxu0
    %v2076 = vadd.f32 0.0, %v2075
    %v2077 = vpop.f32.mrb[0].mxu0
    %v2078 = vadd.f32 0.0, %v2077
    %2079 = vmatprep.mubr.f32.mxu0 %v1989
    %2080 = vmatmul.mubr.f32.gmra.mrb[0].mxu0 %v1935
    %v2081 = vpop.f32.mrb[0].mxu0
    %v2082 = vadd.f32 0.0, %v2081
    %v2083 = vpop.f32.mrb[0].mxu0
    %v2084 = vadd.f32 0.0, %v2083
    %2085 = vdwg.mxu0
    %v2086 = vadd.f32 %v1813, %v2058
    %v2087 = vadd.f32 %v1814, %v2060
    %v2088 = vadd.f32 %v1815, %v2064
    %v2089 = vadd.f32 %v1816, %v2066
    %v2090 = vadd.f32 %v1817, %v2070
    %v2091 = vadd.f32 %v1818, %v2072
    %v2092 = vadd.f32 %v1819, %v2076
    %v2093 = vadd.f32 %v1820, %v2078
    %v2094 = vadd.f32 %v1821, %v2082
    %v2095 = vadd.f32 %v1822, %v2084
    %v2096 = vmul.f32 %v2086, 0.5
    %v2097 = vmul.f32 %v2087, 0.5
    %v2098 = vmul.f32 %v2088, 0.5
    %v2099 = vmul.f32 %v2089, 0.5
    %v2100 = vmul.f32 %v2090, 0.5
    %v2101 = vmul.f32 %v2091, 0.5
    %v2102 = vmul.f32 %v2092, 0.5
    %v2103 = vmul.f32 %v2093, 0.5
    %v2104 = vmul.f32 %v2094, 0.5
    %v2105 = vmul.f32 %v2095, 0.5
    %v2106 = vmul.f32 %v2086, 0.70710677
    %v2107 = vmul.f32 %v2087, 0.70710677
    %v2108 = vmul.f32 %v2088, 0.70710677
    %v2109 = vmul.f32 %v2089, 0.70710677
    %v2110 = vmul.f32 %v2090, 0.70710677
    %v2111 = vmul.f32 %v2091, 0.70710677
    %v2112 = vmul.f32 %v2092, 0.70710677
    %v2113 = vmul.f32 %v2093, 0.70710677
    %v2114 = vmul.f32 %v2094, 0.70710677
    %v2115 = vmul.f32 %v2095, 0.70710677
    %v2116 = vand.u32 2147483647, %v2106
    %v2117 = vand.u32 2147483647, %v2107
    %v2118 = vand.u32 2147483647, %v2108
    %v2119 = vand.u32 2147483647, %v2109
    %v2120 = vand.u32 2147483647, %v2110
    %v2121 = vand.u32 2147483647, %v2111
    %v2122 = vand.u32 2147483647, %v2112
    %v2123 = vand.u32 2147483647, %v2113
    %v2124 = vand.u32 2147483647, %v2114
    %v2125 = vand.u32 2147483647, %v2115
    %v2126 = vmul.f32 %v2116, 0.3275911
    %v2127 = vmul.f32 %v2117, 0.3275911
    %v2128 = vmul.f32 %v2118, 0.3275911
    %v2129 = vmul.f32 %v2119, 0.3275911
    %v2130 = vmul.f32 %v2120, 0.3275911
    %v2131 = vmul.f32 %v2121, 0.3275911
    %v2132 = vmul.f32 %v2122, 0.3275911
    %v2133 = vmul.f32 %v2123, 0.3275911
    %v2134 = vmul.f32 %v2124, 0.3275911
    %v2135 = vmul.f32 %v2125, 0.3275911
    %v2136 = vadd.f32 %v2126, 1.0
    %v2137 = vadd.f32 %v2127, 1.0
    %v2138 = vadd.f32 %v2128, 1.0
    %v2139 = vadd.f32 %v2129, 1.0
    %v2140 = vadd.f32 %v2130, 1.0
    %v2141 = vadd.f32 %v2131, 1.0
    %v2142 = vadd.f32 %v2132, 1.0
    %v2143 = vadd.f32 %v2133, 1.0
    %v2144 = vadd.f32 %v2134, 1.0
    %v2145 = vadd.f32 %v2135, 1.0
    %v2146 = vrcp.pop %v2136
    %v2147 = vmul.f32 1.0, %v2146
    %v2148 = vrcp.pop %v2137
    %v2149 = vmul.f32 1.0, %v2148
    %v2150 = vrcp.pop %v2138
    %v2151 = vmul.f32 1.0, %v2150
    %v2152 = vrcp.pop %v2139
    %v2153 = vmul.f32 1.0, %v2152
    %v2154 = vrcp.pop %v2140
    %v2155 = vmul.f32 1.0, %v2154
    %v2156 = vrcp.pop %v2141
    %v2157 = vmul.f32 1.0, %v2156
    %v2158 = vrcp.pop %v2142
    %v2159 = vmul.f32 1.0, %v2158
    %v2160 = vrcp.pop %v2143
    %v2161 = vmul.f32 1.0, %v2160
    %v2162 = vrcp.pop %v2144
    %v2163 = vmul.f32 1.0, %v2162
    %v2164 = vrcp.pop %v2145
    %v2165 = vmul.f32 1.0, %v2164
    %v2166 = vmul.f32 %v2147, 1.0614054
    %v2167 = vmul.f32 %v2149, 1.0614054
    %v2168 = vmul.f32 %v2151, 1.0614054
    %v2169 = vmul.f32 %v2153, 1.0614054
    %v2170 = vmul.f32 %v2155, 1.0614054
    %v2171 = vmul.f32 %v2157, 1.0614054
    %v2172 = vmul.f32 %v2159, 1.0614054
    %v2173 = vmul.f32 %v2161, 1.0614054
    %v2174 = vmul.f32 %v2163, 1.0614054
    %v2175 = vmul.f32 %v2165, 1.0614054
    %v2176 = vadd.f32 %v2166, -1.4531521
    %v2177 = vadd.f32 %v2167, -1.4531521
    %v2178 = vadd.f32 %v2168, -1.4531521
    %v2179 = vadd.f32 %v2169, -1.4531521
    %v2180 = vadd.f32 %v2170, -1.4531521
    %v2181 = vadd.f32 %v2171, -1.4531521
    %v2182 = vadd.f32 %v2172, -1.4531521
    %v2183 = vadd.f32 %v2173, -1.4531521
    %v2184 = vadd.f32 %v2174, -1.4531521
    %v2185 = vadd.f32 %v2175, -1.4531521
    %v2186 = vmul.f32 %v2176, %v2147
    %v2187 = vmul.f32 %v2177, %v2149
    %v2188 = vmul.f32 %v2178, %v2151
    %v2189 = vmul.f32 %v2179, %v2153
    %v2190 = vmul.f32 %v2180, %v2155
    %v2191 = vmul.f32 %v2181, %v2157
    %v2192 = vmul.f32 %v2182, %v2159
    %v2193 = vmul.f32 %v2183, %v2161
    %v2194 = vmul.f32 %v2184, %v2163
    %v2195 = vmul.f32 %v2185, %v2165
    %v2196 = vadd.f32 %v2186, 1.4214138
    %v2197 = vadd.f32 %v2187, 1.4214138
    %v2198 = vadd.f32 %v2188, 1.4214138
    %v2199 = vadd.f32 %v2189, 1.4214138
    %v2200 = vadd.f32 %v2190, 1.4214138
    %v2201 = vadd.f32 %v2191, 1.4214138
    %v2202 = vadd.f32 %v2192, 1.4214138
    %v2203 = vadd.f32 %v2193, 1.4214138
    %v2204 = vadd.f32 %v2194, 1.4214138
    %v2205 = vadd.f32 %v2195, 1.4214138
    %v2206 = vmul.f32 %v2196, %v2147
    %v2207 = vmul.f32 %v2197, %v2149
    %v2208 = vmul.f32 %v2198, %v2151
    %v2209 = vmul.f32 %v2199, %v2153
    %v2210 = vmul.f32 %v2200, %v2155
    %v2211 = vmul.f32 %v2201, %v2157
    %v2212 = vmul.f32 %v2202, %v2159
    %v2213 = vmul.f32 %v2203, %v2161
    %v2214 = vmul.f32 %v2204, %v2163
    %v2215 = vmul.f32 %v2205, %v2165
    %v2216 = vadd.f32 %v2206, -0.28449672
    %v2217 = vadd.f32 %v2207, -0.28449672
    %v2218 = vadd.f32 %v2208, -0.28449672
    %v2219 = vadd.f32 %v2209, -0.28449672
    %v2220 = vadd.f32 %v2210, -0.28449672
    %v2221 = vadd.f32 %v2211, -0.28449672
    %v2222 = vadd.f32 %v2212, -0.28449672
    %v2223 = vadd.f32 %v2213, -0.28449672
    %v2224 = vadd.f32 %v2214, -0.28449672
    %v2225 = vadd.f32 %v2215, -0.28449672
    %v2226 = vmul.f32 %v2216, %v2147
    %v2227 = vmul.f32 %v2217, %v2149
    %v2228 = vmul.f32 %v2218, %v2151
    %v2229 = vmul.f32 %v2219, %v2153
    %v2230 = vmul.f32 %v2220, %v2155
    %v2231 = vmul.f32 %v2221, %v2157
    %v2232 = vmul.f32 %v2222, %v2159
    %v2233 = vmul.f32 %v2223, %v2161
    %v2234 = vmul.f32 %v2224, %v2163
    %v2235 = vmul.f32 %v2225, %v2165
    %v2236 = vadd.f32 %v2226, 0.2548296
    %v2237 = vadd.f32 %v2227, 0.2548296
    %v2238 = vadd.f32 %v2228, 0.2548296
    %v2239 = vadd.f32 %v2229, 0.2548296
    %v2240 = vadd.f32 %v2230, 0.2548296
    %v2241 = vadd.f32 %v2231, 0.2548296
    %v2242 = vadd.f32 %v2232, 0.2548296
    %v2243 = vadd.f32 %v2233, 0.2548296
    %v2244 = vadd.f32 %v2234, 0.2548296
    %v2245 = vadd.f32 %v2235, 0.2548296
    %v2246 = vmul.f32 %v2236, %v2147
    %v2247 = vmul.f32 %v2237, %v2149
    %v2248 = vmul.f32 %v2238, %v2151
    %v2249 = vmul.f32 %v2239, %v2153
    %v2250 = vmul.f32 %v2240, %v2155
    %v2251 = vmul.f32 %v2241, %v2157
    %v2252 = vmul.f32 %v2242, %v2159
    %v2253 = vmul.f32 %v2243, %v2161
    %v2254 = vmul.f32 %v2244, %v2163
    %v2255 = vmul.f32 %v2245, %v2165
    %v2256 = vsub.f32 0.0, %v2116
    %v2257 = vsub.f32 0.0, %v2117
    %v2258 = vsub.f32 0.0, %v2118
    %v2259 = vsub.f32 0.0, %v2119
    %v2260 = vsub.f32 0.0, %v2120
    %v2261 = vsub.f32 0.0, %v2121
    %v2262 = vsub.f32 0.0, %v2122
    %v2263 = vsub.f32 0.0, %v2123
    %v2264 = vsub.f32 0.0, %v2124
    %v2265 = vsub.f32 0.0, %v2125
    %v2266 = vmul.f32 %v2256, %v2116
    %v2267 = vmul.f32 %v2257, %v2117
    %v2268 = vmul.f32 %v2258, %v2118
    %v2269 = vmul.f32 %v2259, %v2119
    %v2270 = vmul.f32 %v2260, %v2120
    %v2271 = vmul.f32 %v2261, %v2121
    %v2272 = vmul.f32 %v2262, %v2122
    %v2273 = vmul.f32 %v2263, %v2123
    %v2274 = vmul.f32 %v2264, %v2124
    %v2275 = vmul.f32 %v2265, %v2125
    %v2276 = vmul.f32 %v2266, 1.442695
    %v2277 = vpow.pop %v2276
    %v2278 = vmul.f32 %v2267, 1.442695
    %v2279 = vpow.pop %v2278
    %v2280 = vmul.f32 %v2268, 1.442695
    %v2281 = vpow.pop %v2280
    %v2282 = vmul.f32 %v2269, 1.442695
    %v2283 = vpow.pop %v2282
    %v2284 = vmul.f32 %v2270, 1.442695
    %v2285 = vpow.pop %v2284
    %v2286 = vmul.f32 %v2271, 1.442695
    %v2287 = vpow.pop %v2286
    %v2288 = vmul.f32 %v2272, 1.442695
    %v2289 = vpow.pop %v2288
    %v2290 = vmul.f32 %v2273, 1.442695
    %v2291 = vpow.pop %v2290
    %v2292 = vmul.f32 %v2274, 1.442695
    %v2293 = vpow.pop %v2292
    %v2294 = vmul.f32 %v2275, 1.442695
    %v2295 = vpow.pop %v2294
    %v2296 = vmul.f32 %v2246, %v2277
    %v2297 = vmul.f32 %v2247, %v2279
    %v2298 = vmul.f32 %v2248, %v2281
    %v2299 = vmul.f32 %v2249, %v2283
    %v2300 = vmul.f32 %v2250, %v2285
    %v2301 = vmul.f32 %v2251, %v2287
    %v2302 = vmul.f32 %v2252, %v2289
    %v2303 = vmul.f32 %v2253, %v2291
    %v2304 = vmul.f32 %v2254, %v2293
    %v2305 = vmul.f32 %v2255, %v2295
    %v2306 = vsub.f32 1.0, %v2296
    %v2307 = vsub.f32 1.0, %v2297
    %v2308 = vsub.f32 1.0, %v2298
    %v2309 = vsub.f32 1.0, %v2299
    %v2310 = vsub.f32 1.0, %v2300
    %v2311 = vsub.f32 1.0, %v2301
    %v2312 = vsub.f32 1.0, %v2302
    %v2313 = vsub.f32 1.0, %v2303
    %v2314 = vsub.f32 1.0, %v2304
    %v2315 = vsub.f32 1.0, %v2305
    %vm2316 = vcmp.ge.f32.partialorder %v2106, 0.0
    %vm2317 = vcmp.ge.f32.partialorder %v2107, 0.0
    %vm2318 = vcmp.ge.f32.partialorder %v2108, 0.0
    %vm2319 = vcmp.ge.f32.partialorder %v2109, 0.0
    %vm2320 = vcmp.ge.f32.partialorder %v2110, 0.0
    %vm2321 = vcmp.ge.f32.partialorder %v2111, 0.0
    %vm2322 = vcmp.ge.f32.partialorder %v2112, 0.0
    %vm2323 = vcmp.ge.f32.partialorder %v2113, 0.0
    %vm2324 = vcmp.ge.f32.partialorder %v2114, 0.0
    %vm2325 = vcmp.ge.f32.partialorder %v2115, 0.0
    %v2326 = vsub.f32 0.0, %v2306
    %v2327 = vsub.f32 0.0, %v2307
    %v2328 = vsub.f32 0.0, %v2308
    %v2329 = vsub.f32 0.0, %v2309
    %v2330 = vsub.f32 0.0, %v2310
    %v2331 = vsub.f32 0.0, %v2311
    %v2332 = vsub.f32 0.0, %v2312
    %v2333 = vsub.f32 0.0, %v2313
    %v2334 = vsub.f32 0.0, %v2314
    %v2335 = vsub.f32 0.0, %v2315
    %v2336 = vsel %vm2316, %v2306, %v2326
    %v2337 = vsel %vm2317, %v2307, %v2327
    %v2338 = vsel %vm2318, %v2308, %v2328
    %v2339 = vsel %vm2319, %v2309, %v2329
    %v2340 = vsel %vm2320, %v2310, %v2330
    %v2341 = vsel %vm2321, %v2311, %v2331
    %v2342 = vsel %vm2322, %v2312, %v2332
    %v2343 = vsel %vm2323, %v2313, %v2333
    %v2344 = vsel %vm2324, %v2314, %v2334
    %v2345 = vsel %vm2325, %v2315, %v2335
    %v2346 = vadd.f32 %v2336, 1.0
    %v2347 = vadd.f32 %v2337, 1.0
    %v2348 = vadd.f32 %v2338, 1.0
    %v2349 = vadd.f32 %v2339, 1.0
    %v2350 = vadd.f32 %v2340, 1.0
    %v2351 = vadd.f32 %v2341, 1.0
    %v2352 = vadd.f32 %v2342, 1.0
    %v2353 = vadd.f32 %v2343, 1.0
    %v2354 = vadd.f32 %v2344, 1.0
    %v2355 = vadd.f32 %v2345, 1.0
    %v2356 = vmul.f32 %v2096, %v2346
    %v2357 = vmul.f32 %v2097, %v2347
    %v2358 = vmul.f32 %v2098, %v2348
    %v2359 = vmul.f32 %v2099, %v2349
    %v2360 = vmul.f32 %v2100, %v2350
    %v2361 = vmul.f32 %v2101, %v2351
    %v2362 = vmul.f32 %v2102, %v2352
    %v2363 = vmul.f32 %v2103, %v2353
    %v2364 = vmul.f32 %v2104, %v2354
    %v2365 = vmul.f32 %v2105, %v2355
    %v2366 = vld [vmem:[#allocation16] sm:$0xff]
    %v2367 = vld [vmem:[#allocation16 + $0x8] sm:$0xff]
    %v2368 = vld [vmem:[#allocation16 + $0x10] sm:$0xff]
    %v2369 = vld [vmem:[#allocation16 + $0x18] sm:$0xff]
    %v2370 = vld [vmem:[#allocation16 + $0x20] sm:$0xf]
    %v2371 = vld [vmem:[#allocation16 + $0x28] sm:$0xf]
    %v2372 = vld [vmem:[#allocation13] sm:$0xff]
    %v2373 = vld [vmem:[#allocation13 + $0x8] sm:$0xff]
    %v2374 = vld [vmem:[#allocation13 + $0x10] sm:$0xf]
    %v2376 = vsel %vm1275, %v2372, 0
    %v2379 = vsel %vm1275, %v2373, 0
    %v2382 = vsel %vm1275, %v2374, 0
    %v2385 = vsel %vm1291, %v2364, 0
    %v2388 = vsel %vm1291, %v2365, 0
    %2390 = vmatprep.subr.mxu0 %v2357
    %2391 = vmatpush1.msra.mxu0 %v2356
    %2392 = vmatprep.subr.mxu0 %v2359
    %2393 = vmatpush1.msra.mxu0 %v2358
    %2394 = vmatprep.subr.mxu0 %v2361
    %2395 = vmatpush1.msra.mxu0 %v2360
    %2396 = vmatprep.subr.mxu0 %v2363
    %2397 = vmatpush1.msra.mxu0 %v2362
    %2398 = vmatprep.subr.mxu0 %v2388
    %2399 = vmatpush1.msra.mxu0 %v2385
    %2400 = vmatprep.subr.mxu0 0.0
    %2401 = vmatpush1.msra.mxu0 0.0
    %2402 = vmatprep.subr.mxu0 0.0
    %2403 = vmatpush1.msra.mxu0 0.0
    %2404 = vmatprep.subr.mxu0 0.0
    %2405 = vmatpush1.msra.mxu0 0.0
    %2406 = vmatprep.subr.mxu0 0.0
    %2407 = vmatpush1.msra.mxu0 0.0
    %2408 = vmatprep.subr.mxu0 0.0
    %2409 = vmatpush1.msra.mxu0 0.0
    %2410 = vmatprep.subr.mxu0 0.0
    %2411 = vmatpush1.msra.mxu0 0.0
    %2412 = vmatprep.subr.mxu0 0.0
    %2413 = vmatpush1.msra.mxu0 0.0
    %2414 = vmatprep.subr.mxu0 0.0
    %2415 = vmatpush1.msra.mxu0 0.0
    %2416 = vmatprep.subr.mxu0 0.0
    %2417 = vmatpush1.msra.mxu0 0.0
    %2418 = vmatprep.subr.mxu0 0.0
    %2419 = vmatpush1.msra.mxu0 0.0
    %2420 = vmatprep.subr.mxu0 0.0
    %2421 = vmatpush1.msra.mxu0 0.0
    %2422 = vmatprep.subr.mxu0 0.0
    %2423 = vmatpush1.msra.mxu0 0.0
    %2424 = vmatprep.subr.mxu0 0.0
    %2425 = vmatpush1.msra.mxu0 0.0
    %2426 = vmatprep.subr.mxu0 0.0
    %2427 = vmatpush1.msra.mxu0 0.0
    %2428 = vmatprep.subr.mxu0 0.0
    %2429 = vmatpush1.msra.mxu0 0.0
    %2430 = vmatprep.subr.mxu0 0.0
    %2431 = vmatpush1.msra.mxu0 0.0
    %2432 = vmatprep.subr.mxu0 0.0
    %2433 = vmatpush1.msra.mxu0 0.0
    %2434 = vmatprep.subr.mxu0 0.0
    %2435 = vmatpush1.msra.mxu0 0.0
    %2436 = vmatprep.subr.mxu0 0.0
    %2437 = vmatpush1.msra.mxu0 0.0
    %2438 = vmatprep.subr.mxu0 0.0
    %2439 = vmatpush1.msra.mxu0 0.0
    %2440 = vmatprep.subr.mxu0 0.0
    %2441 = vmatpush1.msra.mxu0 0.0
    %2442 = vmatprep.subr.mxu0 0.0
    %2443 = vmatpush1.msra.mxu0 0.0
    %2444 = vmatprep.subr.mxu0 0.0
    %2445 = vmatpush1.msra.mxu0 0.0
    %2446 = vmatprep.subr.mxu0 0.0
    %2447 = vmatpush1.msra.mxu0 0.0
    %2448 = vmatprep.subr.mxu0 0.0
    %2449 = vmatpush1.msra.mxu0 0.0
    %2450 = vmatprep.subr.mxu0 0.0
    %2451 = vmatpush1.msra.mxu0 0.0
    %2452 = vmatprep.subr.mxu0 0.0
    %2453 = vmatpush1.msra.mxu0 0.0
    %2454 = vmatprep.mubr.f32.mxu0 0.0
    %2455 = vmatmul.mubr.f32.gmra.mrb[0].mxu0 %v2376
    %v2456 = vpop.f32.mrb[0].mxu0
    %v2457 = vadd.f32 0.0, %v2456
    %v2458 = vpop.f32.mrb[0].mxu0
    %v2459 = vadd.f32 0.0, %v2458
    %2460 = vmatprep.mubr.f32.mxu0 0.0
    %2461 = vmatmul.mubr.f32.gmra.mrb[0].mxu0 %v2379
    %v2462 = vpop.f32.mrb[0].mxu0
    %v2463 = vadd.f32 0.0, %v2462
    %v2464 = vpop.f32.mrb[0].mxu0
    %v2465 = vadd.f32 0.0, %v2464
    %2466 = vmatprep.mubr.f32.mxu0 0.0
    %2467 = vmatmul.mubr.f32.gmra.mrb[0].mxu0 %v2382
    %v2468 = vpop.f32.mrb[0].mxu0
    %v2469 = vadd.f32 0.0, %v2468
    %v2470 = vpop.f32.mrb[0].mxu0
    %v2471 = vadd.f32 0.0, %v2470
    %2472 = vdwg.mxu0
    %v2473 = vld [vmem:[#allocation15] sm:$0xff]
    %v2474 = vld [vmem:[#allocation15 + $0x8] sm:$0xff]
    %v2475 = vld [vmem:[#allocation15 + $0x10] sm:$0xff]
    %v2476 = vld [vmem:[#allocation15 + $0x18] sm:$0xff]
    %v2477 = vld [vmem:[#allocation15 + $0x20] sm:$0xff]
    %v2478 = vld [vmem:[#allocation15 + $0x28] sm:$0xff]
    %v2479 = vld [vmem:[#allocation15 + $0x30] sm:$0xff]
    %v2480 = vld [vmem:[#allocation15 + $0x38] sm:$0xff]
    %v2481 = vld [vmem:[#allocation15 + $0x40] sm:$0xff]
    %v2482 = vld [vmem:[#allocation15 + $0x48] sm:$0xff]
    %v2483 = vld [vmem:[#allocation15 + $0x50] sm:$0xff]
    %v2484 = vld [vmem:[#allocation15 + $0x58] sm:$0xff]
    %v2485 = vld [vmem:[#allocation15 + $0x60] sm:$0xff]
    %v2486 = vld [vmem:[#allocation15 + $0x68] sm:$0xff]
    %v2487 = vld [vmem:[#allocation15 + $0x70] sm:$0xff]
    %v2488 = vld [vmem:[#allocation15 + $0x78] sm:$0xff]
    %v2489 = vld [vmem:[#allocation15 + $0x80] sm:$0xff]
    %v2490 = vld [vmem:[#allocation15 + $0x88] sm:$0xff]
    %v2491 = vld [vmem:[#allocation15 + $0x90] sm:$0xff]
    %v2492 = vld [vmem:[#allocation15 + $0x98] sm:$0xff]
    %v2493 = vld [vmem:[#allocation15 + $0xa0] sm:$0xff]
    %v2494 = vld [vmem:[#allocation15 + $0xa8] sm:$0xff]
    %v2495 = vld [vmem:[#allocation15 + $0xb0] sm:$0xff]
    %v2496 = vld [vmem:[#allocation15 + $0xb8] sm:$0xff]
    %v2497 = vld [vmem:[#allocation15 + $0xc0] sm:$0xff]
    %v2498 = vld [vmem:[#allocation15 + $0xc8] sm:$0xff]
    %v2499 = vld [vmem:[#allocation15 + $0xd0] sm:$0xff]
    %v2500 = vld [vmem:[#allocation15 + $0xd8] sm:$0xff]
    %v2501 = vld [vmem:[#allocation15 + $0xe0] sm:$0xff]
    %v2502 = vld [vmem:[#allocation15 + $0xe8] sm:$0xff]
    %v2503 = vld [vmem:[#allocation15 + $0xf0] sm:$0xff]
    %v2504 = vld [vmem:[#allocation15 + $0xf8] sm:$0xff]
    %v2505 = vld [vmem:[#allocation15 + $0x100] sm:$0xff]
    %v2506 = vld [vmem:[#allocation15 + $0x108] sm:$0xff]
    %v2507 = vld [vmem:[#allocation15 + $0x110] sm:$0xff]
    %v2508 = vld [vmem:[#allocation15 + $0x118] sm:$0xff]
    %v2510 = vsel %vm1429, %v2459, 0
    %v2513 = vsel %vm1429, %v2465, 0
    %v2516 = vsel %vm1429, %v2471, 0
    %2518 = vmatprep.subr.mxu0 %v2474
    %2519 = vmatpush1.msra.mxu0 %v2473
    %2520 = vmatprep.subr.mxu0 %v2476
    %2521 = vmatpush1.msra.mxu0 %v2475
    %2522 = vmatprep.subr.mxu0 %v2478
    %2523 = vmatpush1.msra.mxu0 %v2477
    %2524 = vmatprep.subr.mxu0 %v2480
    %2525 = vmatpush1.msra.mxu0 %v2479
    %2526 = vmatprep.subr.mxu0 %v2482
    %2527 = vmatpush1.msra.mxu0 %v2481
    %2528 = vmatprep.subr.mxu0 %v2484
    %2529 = vmatpush1.msra.mxu0 %v2483
    %2530 = vmatprep.subr.mxu0 %v2486
    %2531 = vmatpush1.msra.mxu0 %v2485
    %2532 = vmatprep.subr.mxu0 %v2488
    %2533 = vmatpush1.msra.mxu0 %v2487
    %2534 = vmatprep.subr.mxu0 %v2490
    %2535 = vmatpush1.msra.mxu0 %v2489
    %2536 = vmatprep.subr.mxu0 %v2492
    %2537 = vmatpush1.msra.mxu0 %v2491
    %2538 = vmatprep.subr.mxu0 %v2494
    %2539 = vmatpush1.msra.mxu0 %v2493
    %2540 = vmatprep.subr.mxu0 %v2496
    %2541 = vmatpush1.msra.mxu0 %v2495
    %2542 = vmatprep.subr.mxu0 %v2498
    %2543 = vmatpush1.msra.mxu0 %v2497
    %2544 = vmatprep.subr.mxu0 %v2500
    %2545 = vmatpush1.msra.mxu0 %v2499
    %2546 = vmatprep.subr.mxu0 %v2502
    %2547 = vmatpush1.msra.mxu0 %v2501
    %2548 = vmatprep.subr.mxu0 %v2504
    %2549 = vmatpush1.msra.mxu0 %v2503
    %2550 = vmatprep.subr.mxu0 %v2506
    %2551 = vmatpush1.msra.mxu0 %v2505
    %2552 = vmatprep.subr.mxu0 %v2508
    %2553 = vmatpush1.msra.mxu0 %v2507
    %2554 = vmatprep.subr.mxu0 0.0
    %2555 = vmatpush1.msra.mxu0 0.0
    %2556 = vmatprep.subr.mxu0 0.0
    %2557 = vmatpush1.msra.mxu0 0.0
    %2558 = vmatprep.subr.mxu0 0.0
    %2559 = vmatpush1.msra.mxu0 0.0
    %2560 = vmatprep.subr.mxu0 0.0
    %2561 = vmatpush1.msra.mxu0 0.0
    %2562 = vmatprep.subr.mxu0 0.0
    %2563 = vmatpush1.msra.mxu0 0.0
    %2564 = vmatprep.subr.mxu0 0.0
    %2565 = vmatpush1.msra.mxu0 0.0
    %2566 = vmatprep.subr.mxu0 0.0
    %2567 = vmatpush1.msra.mxu0 0.0
    %2568 = vmatprep.subr.mxu0 0.0
    %2569 = vmatpush1.msra.mxu0 0.0
    %2570 = vmatprep.subr.mxu0 0.0
    %2571 = vmatpush1.msra.mxu0 0.0
    %2572 = vmatprep.subr.mxu0 0.0
    %2573 = vmatpush1.msra.mxu0 0.0
    %2574 = vmatprep.subr.mxu0 0.0
    %2575 = vmatpush1.msra.mxu0 0.0
    %2576 = vmatprep.subr.mxu0 0.0
    %2577 = vmatpush1.msra.mxu0 0.0
    %2578 = vmatprep.subr.mxu0 0.0
    %2579 = vmatpush1.msra.mxu0 0.0
    %2580 = vmatprep.subr.mxu0 0.0
    %2581 = vmatpush1.msra.mxu0 0.0
    %2582 = vmatprep.mubr.f32.mxu0 %v2510
    %2583 = vmatmul.mubr.f32.gmra.mrb[0].mxu0 %v2457
    %v2584 = vpop.f32.mrb[0].mxu0
    %v2585 = vadd.f32 0.0, %v2584
    %v2586 = vpop.f32.mrb[0].mxu0
    %v2587 = vadd.f32 0.0, %v2586
    %2588 = vmatprep.mubr.f32.mxu0 %v2513
    %2589 = vmatmul.mubr.f32.gmra.mrb[0].mxu0 %v2463
    %v2590 = vpop.f32.mrb[0].mxu0
    %v2591 = vadd.f32 0.0, %v2590
    %v2592 = vpop.f32.mrb[0].mxu0
    %v2593 = vadd.f32 0.0, %v2592
    %2594 = vmatprep.mubr.f32.mxu0 %v2516
    %2595 = vmatmul.mubr.f32.gmra.mrb[0].mxu0 %v2469
    %v2596 = vpop.f32.mrb[0].mxu0
    %v2597 = vadd.f32 0.0, %v2596
    %v2598 = vpop.f32.mrb[0].mxu0
    %v2599 = vadd.f32 0.0, %v2598
    %2600 = vdwg.mxu0
    %v2601 = vadd.f32 %v2366, %v2585
    %v2602 = vadd.f32 %v2367, %v2587
    %v2603 = vadd.f32 %v2368, %v2591
    %v2604 = vadd.f32 %v2369, %v2593
    %v2605 = vadd.f32 %v2370, %v2597
    %v2606 = vadd.f32 %v2371, %v2599
    %s2607 = scalar_lea.vmem [#allocation13], 24
    %v2608 = vld [vmem:[%s2607] sm:$0xff]
    %v2609 = vld [vmem:[%s2607 + $0x8] sm:$0xff]
    %v2610 = vld [vmem:[%s2607 + $0x10] sm:$0xf]
    %v2612 = vsel %vm1275, %v2608, 0
    %v2615 = vsel %vm1275, %v2609, 0
    %v2618 = vsel %vm1275, %v2610, 0
    %2620 = vmatprep.subr.mxu0 %v2357
    %2621 = vmatpush1.msra.mxu0 %v2356
    %2622 = vmatprep.subr.mxu0 %v2359
    %2623 = vmatpush1.msra.mxu0 %v2358
    %2624 = vmatprep.subr.mxu0 %v2361
    %2625 = vmatpush1.msra.mxu0 %v2360
    %2626 = vmatprep.subr.mxu0 %v2363
    %2627 = vmatpush1.msra.mxu0 %v2362
    %2628 = vmatprep.subr.mxu0 %v2388
    %2629 = vmatpush1.msra.mxu0 %v2385
    %2630 = vmatprep.subr.mxu0 0.0
    %2631 = vmatpush1.msra.mxu0 0.0
    %2632 = vmatprep.subr.mxu0 0.0
    %2633 = vmatpush1.msra.mxu0 0.0
    %2634 = vmatprep.subr.mxu0 0.0
    %2635 = vmatpush1.msra.mxu0 0.0
    %2636 = vmatprep.subr.mxu0 0.0
    %2637 = vmatpush1.msra.mxu0 0.0
    %2638 = vmatprep.subr.mxu0 0.0
    %2639 = vmatpush1.msra.mxu0 0.0
    %2640 = vmatprep.subr.mxu0 0.0
    %2641 = vmatpush1.msra.mxu0 0.0
    %2642 = vmatprep.subr.mxu0 0.0
    %2643 = vmatpush1.msra.mxu0 0.0
    %2644 = vmatprep.subr.mxu0 0.0
    %2645 = vmatpush1.msra.mxu0 0.0
    %2646 = vmatprep.subr.mxu0 0.0
    %2647 = vmatpush1.msra.mxu0 0.0
    %2648 = vmatprep.subr.mxu0 0.0
    %2649 = vmatpush1.msra.mxu0 0.0
    %2650 = vmatprep.subr.mxu0 0.0
    %2651 = vmatpush1.msra.mxu0 0.0
    %2652 = vmatprep.subr.mxu0 0.0
    %2653 = vmatpush1.msra.mxu0 0.0
    %2654 = vmatprep.subr.mxu0 0.0
    %2655 = vmatpush1.msra.mxu0 0.0
    %2656 = vmatprep.subr.mxu0 0.0
    %2657 = vmatpush1.msra.mxu0 0.0
    %2658 = vmatprep.subr.mxu0 0.0
    %2659 = vmatpush1.msra.mxu0 0.0
    %2660 = vmatprep.subr.mxu0 0.0
    %2661 = vmatpush1.msra.mxu0 0.0
    %2662 = vmatprep.subr.mxu0 0.0
    %2663 = vmatpush1.msra.mxu0 0.0
    %2664 = vmatprep.subr.mxu0 0.0
    %2665 = vmatpush1.msra.mxu0 0.0
    %2666 = vmatprep.subr.mxu0 0.0
    %2667 = vmatpush1.msra.mxu0 0.0
    %2668 = vmatprep.subr.mxu0 0.0
    %2669 = vmatpush1.msra.mxu0 0.0
    %2670 = vmatprep.subr.mxu0 0.0
    %2671 = vmatpush1.msra.mxu0 0.0
    %2672 = vmatprep.subr.mxu0 0.0
    %2673 = vmatpush1.msra.mxu0 0.0
    %2674 = vmatprep.subr.mxu0 0.0
    %2675 = vmatpush1.msra.mxu0 0.0
    %2676 = vmatprep.subr.mxu0 0.0
    %2677 = vmatpush1.msra.mxu0 0.0
    %2678 = vmatprep.subr.mxu0 0.0
    %2679 = vmatpush1.msra.mxu0 0.0
    %2680 = vmatprep.subr.mxu0 0.0
    %2681 = vmatpush1.msra.mxu0 0.0
    %2682 = vmatprep.subr.mxu0 0.0
    %2683 = vmatpush1.msra.mxu0 0.0
    %2684 = vmatprep.mubr.f32.mxu0 0.0
    %2685 = vmatmul.mubr.f32.gmra.mrb[0].mxu0 %v2612
    %v2686 = vpop.f32.mrb[0].mxu0
    %v2687 = vadd.f32 0.0, %v2686
    %v2688 = vpop.f32.mrb[0].mxu0
    %v2689 = vadd.f32 0.0, %v2688
    %2690 = vmatprep.mubr.f32.mxu0 0.0
    %2691 = vmatmul.mubr.f32.gmra.mrb[0].mxu0 %v2615
    %v2692 = vpop.f32.mrb[0].mxu0
    %v2693 = vadd.f32 0.0, %v2692
    %v2694 = vpop.f32.mrb[0].mxu0
    %v2695 = vadd.f32 0.0, %v2694
    %2696 = vmatprep.mubr.f32.mxu0 0.0
    %2697 = vmatmul.mubr.f32.gmra.mrb[0].mxu0 %v2618
    %v2698 = vpop.f32.mrb[0].mxu0
    %v2699 = vadd.f32 0.0, %v2698
    %v2700 = vpop.f32.mrb[0].mxu0
    %v2701 = vadd.f32 0.0, %v2700
    %2702 = vdwg.mxu0
    %s2703 = scalar_lea.vmem [#allocation15], 288
    %v2704 = vld [vmem:[%s2703] sm:$0xff]
    %v2705 = vld [vmem:[%s2703 + $0x8] sm:$0xff]
    %v2706 = vld [vmem:[%s2703 + $0x10] sm:$0xff]
    %v2707 = vld [vmem:[%s2703 + $0x18] sm:$0xff]
    %v2708 = vld [vmem:[%s2703 + $0x20] sm:$0xff]
    %v2709 = vld [vmem:[%s2703 + $0x28] sm:$0xff]
    %v2710 = vld [vmem:[%s2703 + $0x30] sm:$0xff]
    %v2711 = vld [vmem:[%s2703 + $0x38] sm:$0xff]
    %v2712 = vld [vmem:[%s2703 + $0x40] sm:$0xff]
    %v2713 = vld [vmem:[%s2703 + $0x48] sm:$0xff]
    %v2714 = vld [vmem:[%s2703 + $0x50] sm:$0xff]
    %v2715 = vld [vmem:[%s2703 + $0x58] sm:$0xff]
    %v2716 = vld [vmem:[%s2703 + $0x60] sm:$0xff]
    %v2717 = vld [vmem:[%s2703 + $0x68] sm:$0xff]
    %v2718 = vld [vmem:[%s2703 + $0x70] sm:$0xff]
    %v2719 = vld [vmem:[%s2703 + $0x78] sm:$0xff]
    %v2720 = vld [vmem:[%s2703 + $0x80] sm:$0xff]
    %v2721 = vld [vmem:[%s2703 + $0x88] sm:$0xff]
    %v2722 = vld [vmem:[%s2703 + $0x90] sm:$0xff]
    %v2723 = vld [vmem:[%s2703 + $0x98] sm:$0xff]
    %v2724 = vld [vmem:[%s2703 + $0xa0] sm:$0xff]
    %v2725 = vld [vmem:[%s2703 + $0xa8] sm:$0xff]
    %v2726 = vld [vmem:[%s2703 + $0xb0] sm:$0xff]
    %v2727 = vld [vmem:[%s2703 + $0xb8] sm:$0xff]
    %v2728 = vld [vmem:[%s2703 + $0xc0] sm:$0xff]
    %v2729 = vld [vmem:[%s2703 + $0xc8] sm:$0xff]
    %v2730 = vld [vmem:[%s2703 + $0xd0] sm:$0xff]
    %v2731 = vld [vmem:[%s2703 + $0xd8] sm:$0xff]
    %v2732 = vld [vmem:[%s2703 + $0xe0] sm:$0xff]
    %v2733 = vld [vmem:[%s2703 + $0xe8] sm:$0xff]
    %v2734 = vld [vmem:[%s2703 + $0xf0] sm:$0xff]
    %v2735 = vld [vmem:[%s2703 + $0xf8] sm:$0xff]
    %v2736 = vld [vmem:[%s2703 + $0x100] sm:$0xff]
    %v2737 = vld [vmem:[%s2703 + $0x108] sm:$0xff]
    %v2738 = vld [vmem:[%s2703 + $0x110] sm:$0xff]
    %v2739 = vld [vmem:[%s2703 + $0x118] sm:$0xff]
    %v2741 = vsel %vm1429, %v2689, 0
    %v2744 = vsel %vm1429, %v2695, 0
    %v2747 = vsel %vm1429, %v2701, 0
    %2749 = vmatprep.subr.mxu0 %v2705
    %2750 = vmatpush1.msra.mxu0 %v2704
    %2751 = vmatprep.subr.mxu0 %v2707
    %2752 = vmatpush1.msra.mxu0 %v2706
    %2753 = vmatprep.subr.mxu0 %v2709
    %2754 = vmatpush1.msra.mxu0 %v2708
    %2755 = vmatprep.subr.mxu0 %v2711
    %2756 = vmatpush1.msra.mxu0 %v2710
    %2757 = vmatprep.subr.mxu0 %v2713
    %2758 = vmatpush1.msra.mxu0 %v2712
    %2759 = vmatprep.subr.mxu0 %v2715
    %2760 = vmatpush1.msra.mxu0 %v2714
    %2761 = vmatprep.subr.mxu0 %v2717
    %2762 = vmatpush1.msra.mxu0 %v2716
    %2763 = vmatprep.subr.mxu0 %v2719
    %2764 = vmatpush1.msra.mxu0 %v2718
    %2765 = vmatprep.subr.mxu0 %v2721
    %2766 = vmatpush1.msra.mxu0 %v2720
    %2767 = vmatprep.subr.mxu0 %v2723
    %2768 = vmatpush1.msra.mxu0 %v2722
    %2769 = vmatprep.subr.mxu0 %v2725
    %2770 = vmatpush1.msra.mxu0 %v2724
    %2771 = vmatprep.subr.mxu0 %v2727
    %2772 = vmatpush1.msra.mxu0 %v2726
    %2773 = vmatprep.subr.mxu0 %v2729
    %2774 = vmatpush1.msra.mxu0 %v2728
    %2775 = vmatprep.subr.mxu0 %v2731
    %2776 = vmatpush1.msra.mxu0 %v2730
    %2777 = vmatprep.subr.mxu0 %v2733
    %2778 = vmatpush1.msra.mxu0 %v2732
    %2779 = vmatprep.subr.mxu0 %v2735
    %2780 = vmatpush1.msra.mxu0 %v2734
    %2781 = vmatprep.subr.mxu0 %v2737
    %2782 = vmatpush1.msra.mxu0 %v2736
    %2783 = vmatprep.subr.mxu0 %v2739
    %2784 = vmatpush1.msra.mxu0 %v2738
    %2785 = vmatprep.subr.mxu0 0.0
    %2786 = vmatpush1.msra.mxu0 0.0
    %2787 = vmatprep.subr.mxu0 0.0
    %2788 = vmatpush1.msra.mxu0 0.0
    %2789 = vmatprep.subr.mxu0 0.0
    %2790 = vmatpush1.msra.mxu0 0.0
    %2791 = vmatprep.subr.mxu0 0.0
    %2792 = vmatpush1.msra.mxu0 0.0
    %2793 = vmatprep.subr.mxu0 0.0
    %2794 = vmatpush1.msra.mxu0 0.0
    %2795 = vmatprep.subr.mxu0 0.0
    %2796 = vmatpush1.msra.mxu0 0.0
    %2797 = vmatprep.subr.mxu0 0.0
    %2798 = vmatpush1.msra.mxu0 0.0
    %2799 = vmatprep.subr.mxu0 0.0
    %2800 = vmatpush1.msra.mxu0 0.0
    %2801 = vmatprep.subr.mxu0 0.0
    %2802 = vmatpush1.msra.mxu0 0.0
    %2803 = vmatprep.subr.mxu0 0.0
    %2804 = vmatpush1.msra.mxu0 0.0
    %2805 = vmatprep.subr.mxu0 0.0
    %2806 = vmatpush1.msra.mxu0 0.0
    %2807 = vmatprep.subr.mxu0 0.0
    %2808 = vmatpush1.msra.mxu0 0.0
    %2809 = vmatprep.subr.mxu0 0.0
    %2810 = vmatpush1.msra.mxu0 0.0
    %2811 = vmatprep.subr.mxu0 0.0
    %2812 = vmatpush1.msra.mxu0 0.0
    %2813 = vmatprep.mubr.f32.mxu0 %v2741
    %2814 = vmatmul.mubr.f32.gmra.mrb[0].mxu0 %v2687
    %v2815 = vpop.f32.mrb[0].mxu0
    %v2816 = vadd.f32 0.0, %v2815
    %v2817 = vpop.f32.mrb[0].mxu0
    %v2818 = vadd.f32 0.0, %v2817
    %2819 = vmatprep.mubr.f32.mxu0 %v2744
    %2820 = vmatmul.mubr.f32.gmra.mrb[0].mxu0 %v2693
    %v2821 = vpop.f32.mrb[0].mxu0
    %v2822 = vadd.f32 0.0, %v2821
    %v2823 = vpop.f32.mrb[0].mxu0
    %v2824 = vadd.f32 0.0, %v2823
    %2825 = vmatprep.mubr.f32.mxu0 %v2747
    %2826 = vmatmul.mubr.f32.gmra.mrb[0].mxu0 %v2699
    %v2827 = vpop.f32.mrb[0].mxu0
    %v2828 = vadd.f32 0.0, %v2827
    %v2829 = vpop.f32.mrb[0].mxu0
    %v2830 = vadd.f32 0.0, %v2829
    %2831 = vdwg.mxu0
    %v2832 = vadd.f32 %v2601, %v2816
    %v2833 = vadd.f32 %v2602, %v2818
    %v2834 = vadd.f32 %v2603, %v2822
    %v2835 = vadd.f32 %v2604, %v2824
    %v2836 = vadd.f32 %v2605, %v2828
    %v2837 = vadd.f32 %v2606, %v2830
    %s2838 = scalar_lea.vmem [#allocation13], 48
    %v2839 = vld [vmem:[%s2838] sm:$0xff]
    %v2840 = vld [vmem:[%s2838 + $0x8] sm:$0xff]
    %v2841 = vld [vmem:[%s2838 + $0x10] sm:$0xf]
    %v2843 = vsel %vm1275, %v2839, 0
    %v2846 = vsel %vm1275, %v2840, 0
    %v2849 = vsel %vm1275, %v2841, 0
    %2851 = vmatprep.subr.mxu0 %v2357
    %2852 = vmatpush1.msra.mxu0 %v2356
    %2853 = vmatprep.subr.mxu0 %v2359
    %2854 = vmatpush1.msra.mxu0 %v2358
    %2855 = vmatprep.subr.mxu0 %v2361
    %2856 = vmatpush1.msra.mxu0 %v2360
    %2857 = vmatprep.subr.mxu0 %v2363
    %2858 = vmatpush1.msra.mxu0 %v2362
    %2859 = vmatprep.subr.mxu0 %v2388
    %2860 = vmatpush1.msra.mxu0 %v2385
    %2861 = vmatprep.subr.mxu0 0.0
    %2862 = vmatpush1.msra.mxu0 0.0
    %2863 = vmatprep.subr.mxu0 0.0
    %2864 = vmatpush1.msra.mxu0 0.0
    %2865 = vmatprep.subr.mxu0 0.0
    %2866 = vmatpush1.msra.mxu0 0.0
    %2867 = vmatprep.subr.mxu0 0.0
    %2868 = vmatpush1.msra.mxu0 0.0
    %2869 = vmatprep.subr.mxu0 0.0
    %2870 = vmatpush1.msra.mxu0 0.0
    %2871 = vmatprep.subr.mxu0 0.0
    %2872 = vmatpush1.msra.mxu0 0.0
    %2873 = vmatprep.subr.mxu0 0.0
    %2874 = vmatpush1.msra.mxu0 0.0
    %2875 = vmatprep.subr.mxu0 0.0
    %2876 = vmatpush1.msra.mxu0 0.0
    %2877 = vmatprep.subr.mxu0 0.0
    %2878 = vmatpush1.msra.mxu0 0.0
    %2879 = vmatprep.subr.mxu0 0.0
    %2880 = vmatpush1.msra.mxu0 0.0
    %2881 = vmatprep.subr.mxu0 0.0
    %2882 = vmatpush1.msra.mxu0 0.0
    %2883 = vmatprep.subr.mxu0 0.0
    %2884 = vmatpush1.msra.mxu0 0.0
    %2885 = vmatprep.subr.mxu0 0.0
    %2886 = vmatpush1.msra.mxu0 0.0
    %2887 = vmatprep.subr.mxu0 0.0
    %2888 = vmatpush1.msra.mxu0 0.0
    %2889 = vmatprep.subr.mxu0 0.0
    %2890 = vmatpush1.msra.mxu0 0.0
    %2891 = vmatprep.subr.mxu0 0.0
    %2892 = vmatpush1.msra.mxu0 0.0
    %2893 = vmatprep.subr.mxu0 0.0
    %2894 = vmatpush1.msra.mxu0 0.0
    %2895 = vmatprep.subr.mxu0 0.0
    %2896 = vmatpush1.msra.mxu0 0.0
    %2897 = vmatprep.subr.mxu0 0.0
    %2898 = vmatpush1.msra.mxu0 0.0
    %2899 = vmatprep.subr.mxu0 0.0
    %2900 = vmatpush1.msra.mxu0 0.0
    %2901 = vmatprep.subr.mxu0 0.0
    %2902 = vmatpush1.msra.mxu0 0.0
    %2903 = vmatprep.subr.mxu0 0.0
    %2904 = vmatpush1.msra.mxu0 0.0
    %2905 = vmatprep.subr.mxu0 0.0
    %2906 = vmatpush1.msra.mxu0 0.0
    %2907 = vmatprep.subr.mxu0 0.0
    %2908 = vmatpush1.msra.mxu0 0.0
    %2909 = vmatprep.subr.mxu0 0.0
    %2910 = vmatpush1.msra.mxu0 0.0
    %2911 = vmatprep.subr.mxu0 0.0
    %2912 = vmatpush1.msra.mxu0 0.0
    %2913 = vmatprep.subr.mxu0 0.0
    %2914 = vmatpush1.msra.mxu0 0.0
    %2915 = vmatprep.mubr.f32.mxu0 0.0
    %2916 = vmatmul.mubr.f32.gmra.mrb[0].mxu0 %v2843
    %v2917 = vpop.f32.mrb[0].mxu0
    %v2918 = vadd.f32 0.0, %v2917
    %v2919 = vpop.f32.mrb[0].mxu0
    %v2920 = vadd.f32 0.0, %v2919
    %2921 = vmatprep.mubr.f32.mxu0 0.0
    %2922 = vmatmul.mubr.f32.gmra.mrb[0].mxu0 %v2846
    %v2923 = vpop.f32.mrb[0].mxu0
    %v2924 = vadd.f32 0.0, %v2923
    %v2925 = vpop.f32.mrb[0].mxu0
    %v2926 = vadd.f32 0.0, %v2925
    %2927 = vmatprep.mubr.f32.mxu0 0.0
    %2928 = vmatmul.mubr.f32.gmra.mrb[0].mxu0 %v2849
    %v2929 = vpop.f32.mrb[0].mxu0
    %v2930 = vadd.f32 0.0, %v2929
    %v2931 = vpop.f32.mrb[0].mxu0
    %v2932 = vadd.f32 0.0, %v2931
    %2933 = vdwg.mxu0
    %s2934 = scalar_lea.vmem [#allocation15], 576
    %v2935 = vld [vmem:[%s2934] sm:$0xff]
    %v2936 = vld [vmem:[%s2934 + $0x8] sm:$0xff]
    %v2937 = vld [vmem:[%s2934 + $0x10] sm:$0xff]
    %v2938 = vld [vmem:[%s2934 + $0x18] sm:$0xff]
    %v2939 = vld [vmem:[%s2934 + $0x20] sm:$0xff]
    %v2940 = vld [vmem:[%s2934 + $0x28] sm:$0xff]
    %v2941 = vld [vmem:[%s2934 + $0x30] sm:$0xff]
    %v2942 = vld [vmem:[%s2934 + $0x38] sm:$0xff]
    %v2943 = vld [vmem:[%s2934 + $0x40] sm:$0xff]
    %v2944 = vld [vmem:[%s2934 + $0x48] sm:$0xff]
    %v2945 = vld [vmem:[%s2934 + $0x50] sm:$0xff]
    %v2946 = vld [vmem:[%s2934 + $0x58] sm:$0xff]
    %v2947 = vld [vmem:[%s2934 + $0x60] sm:$0xff]
    %v2948 = vld [vmem:[%s2934 + $0x68] sm:$0xff]
    %v2949 = vld [vmem:[%s2934 + $0x70] sm:$0xff]
    %v2950 = vld [vmem:[%s2934 + $0x78] sm:$0xff]
    %v2951 = vld [vmem:[%s2934 + $0x80] sm:$0xff]
    %v2952 = vld [vmem:[%s2934 + $0x88] sm:$0xff]
    %v2953 = vld [vmem:[%s2934 + $0x90] sm:$0xff]
    %v2954 = vld [vmem:[%s2934 + $0x98] sm:$0xff]
    %v2955 = vld [vmem:[%s2934 + $0xa0] sm:$0xff]
    %v2956 = vld [vmem:[%s2934 + $0xa8] sm:$0xff]
    %v2957 = vld [vmem:[%s2934 + $0xb0] sm:$0xff]
    %v2958 = vld [vmem:[%s2934 + $0xb8] sm:$0xff]
    %v2959 = vld [vmem:[%s2934 + $0xc0] sm:$0xff]
    %v2960 = vld [vmem:[%s2934 + $0xc8] sm:$0xff]
    %v2961 = vld [vmem:[%s2934 + $0xd0] sm:$0xff]
    %v2962 = vld [vmem:[%s2934 + $0xd8] sm:$0xff]
    %v2963 = vld [vmem:[%s2934 + $0xe0] sm:$0xff]
    %v2964 = vld [vmem:[%s2934 + $0xe8] sm:$0xff]
    %v2965 = vld [vmem:[%s2934 + $0xf0] sm:$0xff]
    %v2966 = vld [vmem:[%s2934 + $0xf8] sm:$0xff]
    %v2967 = vld [vmem:[%s2934 + $0x100] sm:$0xff]
    %v2968 = vld [vmem:[%s2934 + $0x108] sm:$0xff]
    %v2969 = vld [vmem:[%s2934 + $0x110] sm:$0xff]
    %v2970 = vld [vmem:[%s2934 + $0x118] sm:$0xff]
    %v2972 = vsel %vm1429, %v2920, 0
    %v2975 = vsel %vm1429, %v2926, 0
    %v2978 = vsel %vm1429, %v2932, 0
    %2980 = vmatprep.subr.mxu0 %v2936
    %2981 = vmatpush1.msra.mxu0 %v2935
    %2982 = vmatprep.subr.mxu0 %v2938
    %2983 = vmatpush1.msra.mxu0 %v2937
    %2984 = vmatprep.subr.mxu0 %v2940
    %2985 = vmatpush1.msra.mxu0 %v2939
    %2986 = vmatprep.subr.mxu0 %v2942
    %2987 = vmatpush1.msra.mxu0 %v2941
    %2988 = vmatprep.subr.mxu0 %v2944
    %2989 = vmatpush1.msra.mxu0 %v2943
    %2990 = vmatprep.subr.mxu0 %v2946
    %2991 = vmatpush1.msra.mxu0 %v2945
    %2992 = vmatprep.subr.mxu0 %v2948
    %2993 = vmatpush1.msra.mxu0 %v2947
    %2994 = vmatprep.subr.mxu0 %v2950
    %2995 = vmatpush1.msra.mxu0 %v2949
    %2996 = vmatprep.subr.mxu0 %v2952
    %2997 = vmatpush1.msra.mxu0 %v2951
    %2998 = vmatprep.subr.mxu0 %v2954
    %2999 = vmatpush1.msra.mxu0 %v2953
    %3000 = vmatprep.subr.mxu0 %v2956
    %3001 = vmatpush1.msra.mxu0 %v2955
    %3002 = vmatprep.subr.mxu0 %v2958
    %3003 = vmatpush1.msra.mxu0 %v2957
    %3004 = vmatprep.subr.mxu0 %v2960
    %3005 = vmatpush1.msra.mxu0 %v2959
    %3006 = vmatprep.subr.mxu0 %v2962
    %3007 = vmatpush1.msra.mxu0 %v2961
    %3008 = vmatprep.subr.mxu0 %v2964
    %3009 = vmatpush1.msra.mxu0 %v2963
    %3010 = vmatprep.subr.mxu0 %v2966
    %3011 = vmatpush1.msra.mxu0 %v2965
    %3012 = vmatprep.subr.mxu0 %v2968
    %3013 = vmatpush1.msra.mxu0 %v2967
    %3014 = vmatprep.subr.mxu0 %v2970
    %3015 = vmatpush1.msra.mxu0 %v2969
    %3016 = vmatprep.subr.mxu0 0.0
    %3017 = vmatpush1.msra.mxu0 0.0
    %3018 = vmatprep.subr.mxu0 0.0
    %3019 = vmatpush1.msra.mxu0 0.0
    %3020 = vmatprep.subr.mxu0 0.0
    %3021 = vmatpush1.msra.mxu0 0.0
    %3022 = vmatprep.subr.mxu0 0.0
    %3023 = vmatpush1.msra.mxu0 0.0
    %3024 = vmatprep.subr.mxu0 0.0
    %3025 = vmatpush1.msra.mxu0 0.0
    %3026 = vmatprep.subr.mxu0 0.0
    %3027 = vmatpush1.msra.mxu0 0.0
    %3028 = vmatprep.subr.mxu0 0.0
    %3029 = vmatpush1.msra.mxu0 0.0
    %3030 = vmatprep.subr.mxu0 0.0
    %3031 = vmatpush1.msra.mxu0 0.0
    %3032 = vmatprep.subr.mxu0 0.0
    %3033 = vmatpush1.msra.mxu0 0.0
    %3034 = vmatprep.subr.mxu0 0.0
    %3035 = vmatpush1.msra.mxu0 0.0
    %3036 = vmatprep.subr.mxu0 0.0
    %3037 = vmatpush1.msra.mxu0 0.0
    %3038 = vmatprep.subr.mxu0 0.0
    %3039 = vmatpush1.msra.mxu0 0.0
    %3040 = vmatprep.subr.mxu0 0.0
    %3041 = vmatpush1.msra.mxu0 0.0
    %3042 = vmatprep.subr.mxu0 0.0
    %3043 = vmatpush1.msra.mxu0 0.0
    %3044 = vmatprep.mubr.f32.mxu0 %v2972
    %3045 = vmatmul.mubr.f32.gmra.mrb[0].mxu0 %v2918
    %v3046 = vpop.f32.mrb[0].mxu0
    %v3047 = vadd.f32 0.0, %v3046
    %v3048 = vpop.f32.mrb[0].mxu0
    %v3049 = vadd.f32 0.0, %v3048
    %3050 = vmatprep.mubr.f32.mxu0 %v2975
    %3051 = vmatmul.mubr.f32.gmra.mrb[0].mxu0 %v2924
    %v3052 = vpop.f32.mrb[0].mxu0
    %v3053 = vadd.f32 0.0, %v3052
    %v3054 = vpop.f32.mrb[0].mxu0
    %v3055 = vadd.f32 0.0, %v3054
    %3056 = vmatprep.mubr.f32.mxu0 %v2978
    %3057 = vmatmul.mubr.f32.gmra.mrb[0].mxu0 %v2930
    %v3058 = vpop.f32.mrb[0].mxu0
    %v3059 = vadd.f32 0.0, %v3058
    %v3060 = vpop.f32.mrb[0].mxu0
    %v3061 = vadd.f32 0.0, %v3060
    %3062 = vdwg.mxu0
    %v3063 = vadd.f32 %v2832, %v3047
    %v3064 = vadd.f32 %v2833, %v3049
    %v3065 = vadd.f32 %v2834, %v3053
    %v3066 = vadd.f32 %v2835, %v3055
    %v3067 = vadd.f32 %v2836, %v3059
    %v3068 = vadd.f32 %v2837, %v3061
    %v3069 = vmul.f32 %v3063, 0.5
    %v3070 = vmul.f32 %v3064, 0.5
    %v3071 = vmul.f32 %v3065, 0.5
    %v3072 = vmul.f32 %v3066, 0.5
    %v3073 = vmul.f32 %v3067, 0.5
    %v3074 = vmul.f32 %v3068, 0.5
    %v3075 = vmul.f32 %v3063, 0.70710677
    %v3076 = vmul.f32 %v3064, 0.70710677
    %v3077 = vmul.f32 %v3065, 0.70710677
    %v3078 = vmul.f32 %v3066, 0.70710677
    %v3079 = vmul.f32 %v3067, 0.70710677
    %v3080 = vmul.f32 %v3068, 0.70710677
    %v3081 = vand.u32 2147483647, %v3075
    %v3082 = vand.u32 2147483647, %v3076
    %v3083 = vand.u32 2147483647, %v3077
    %v3084 = vand.u32 2147483647, %v3078
    %v3085 = vand.u32 2147483647, %v3079
    %v3086 = vand.u32 2147483647, %v3080
    %v3087 = vmul.f32 %v3081, 0.3275911
    %v3088 = vmul.f32 %v3082, 0.3275911
    %v3089 = vmul.f32 %v3083, 0.3275911
    %v3090 = vmul.f32 %v3084, 0.3275911
    %v3091 = vmul.f32 %v3085, 0.3275911
    %v3092 = vmul.f32 %v3086, 0.3275911
    %v3093 = vadd.f32 %v3087, 1.0
    %v3094 = vadd.f32 %v3088, 1.0
    %v3095 = vadd.f32 %v3089, 1.0
    %v3096 = vadd.f32 %v3090, 1.0
    %v3097 = vadd.f32 %v3091, 1.0
    %v3098 = vadd.f32 %v3092, 1.0
    %v3099 = vrcp.pop %v3093
    %v3100 = vmul.f32 1.0, %v3099
    %v3101 = vrcp.pop %v3094
    %v3102 = vmul.f32 1.0, %v3101
    %v3103 = vrcp.pop %v3095
    %v3104 = vmul.f32 1.0, %v3103
    %v3105 = vrcp.pop %v3096
    %v3106 = vmul.f32 1.0, %v3105
    %v3107 = vrcp.pop %v3097
    %v3108 = vmul.f32 1.0, %v3107
    %v3109 = vrcp.pop %v3098
    %v3110 = vmul.f32 1.0, %v3109
    %v3111 = vmul.f32 %v3100, 1.0614054
    %v3112 = vmul.f32 %v3102, 1.0614054
    %v3113 = vmul.f32 %v3104, 1.0614054
    %v3114 = vmul.f32 %v3106, 1.0614054
    %v3115 = vmul.f32 %v3108, 1.0614054
    %v3116 = vmul.f32 %v3110, 1.0614054
    %v3117 = vadd.f32 %v3111, -1.4531521
    %v3118 = vadd.f32 %v3112, -1.4531521
    %v3119 = vadd.f32 %v3113, -1.4531521
    %v3120 = vadd.f32 %v3114, -1.4531521
    %v3121 = vadd.f32 %v3115, -1.4531521
    %v3122 = vadd.f32 %v3116, -1.4531521
    %v3123 = vmul.f32 %v3117, %v3100
    %v3124 = vmul.f32 %v3118, %v3102
    %v3125 = vmul.f32 %v3119, %v3104
    %v3126 = vmul.f32 %v3120, %v3106
    %v3127 = vmul.f32 %v3121, %v3108
    %v3128 = vmul.f32 %v3122, %v3110
    %v3129 = vadd.f32 %v3123, 1.4214138
    %v3130 = vadd.f32 %v3124, 1.4214138
    %v3131 = vadd.f32 %v3125, 1.4214138
    %v3132 = vadd.f32 %v3126, 1.4214138
    %v3133 = vadd.f32 %v3127, 1.4214138
    %v3134 = vadd.f32 %v3128, 1.4214138
    %v3135 = vmul.f32 %v3129, %v3100
    %v3136 = vmul.f32 %v3130, %v3102
    %v3137 = vmul.f32 %v3131, %v3104
    %v3138 = vmul.f32 %v3132, %v3106
    %v3139 = vmul.f32 %v3133, %v3108
    %v3140 = vmul.f32 %v3134, %v3110
    %v3141 = vadd.f32 %v3135, -0.28449672
    %v3142 = vadd.f32 %v3136, -0.28449672
    %v3143 = vadd.f32 %v3137, -0.28449672
    %v3144 = vadd.f32 %v3138, -0.28449672
    %v3145 = vadd.f32 %v3139, -0.28449672
    %v3146 = vadd.f32 %v3140, -0.28449672
    %v3147 = vmul.f32 %v3141, %v3100
    %v3148 = vmul.f32 %v3142, %v3102
    %v3149 = vmul.f32 %v3143, %v3104
    %v3150 = vmul.f32 %v3144, %v3106
    %v3151 = vmul.f32 %v3145, %v3108
    %v3152 = vmul.f32 %v3146, %v3110
    %v3153 = vadd.f32 %v3147, 0.2548296
    %v3154 = vadd.f32 %v3148, 0.2548296
    %v3155 = vadd.f32 %v3149, 0.2548296
    %v3156 = vadd.f32 %v3150, 0.2548296
    %v3157 = vadd.f32 %v3151, 0.2548296
    %v3158 = vadd.f32 %v3152, 0.2548296
    %v3159 = vmul.f32 %v3153, %v3100
    %v3160 = vmul.f32 %v3154, %v3102
    %v3161 = vmul.f32 %v3155, %v3104
    %v3162 = vmul.f32 %v3156, %v3106
    %v3163 = vmul.f32 %v3157, %v3108
    %v3164 = vmul.f32 %v3158, %v3110
    %v3165 = vsub.f32 0.0, %v3081
    %v3166 = vsub.f32 0.0, %v3082
    %v3167 = vsub.f32 0.0, %v3083
    %v3168 = vsub.f32 0.0, %v3084
    %v3169 = vsub.f32 0.0, %v3085
    %v3170 = vsub.f32 0.0, %v3086
    %v3171 = vmul.f32 %v3165, %v3081
    %v3172 = vmul.f32 %v3166, %v3082
    %v3173 = vmul.f32 %v3167, %v3083
    %v3174 = vmul.f32 %v3168, %v3084
    %v3175 = vmul.f32 %v3169, %v3085
    %v3176 = vmul.f32 %v3170, %v3086
    %v3177 = vmul.f32 %v3171, 1.442695
    %v3178 = vpow.pop %v3177
    %v3179 = vmul.f32 %v3172, 1.442695
    %v3180 = vpow.pop %v3179
    %v3181 = vmul.f32 %v3173, 1.442695
    %v3182 = vpow.pop %v3181
    %v3183 = vmul.f32 %v3174, 1.442695
    %v3184 = vpow.pop %v3183
    %v3185 = vmul.f32 %v3175, 1.442695
    %v3186 = vpow.pop %v3185
    %v3187 = vmul.f32 %v3176, 1.442695
    %v3188 = vpow.pop %v3187
    %v3189 = vmul.f32 %v3159, %v3178
    %v3190 = vmul.f32 %v3160, %v3180
    %v3191 = vmul.f32 %v3161, %v3182
    %v3192 = vmul.f32 %v3162, %v3184
    %v3193 = vmul.f32 %v3163, %v3186
    %v3194 = vmul.f32 %v3164, %v3188
    %v3195 = vsub.f32 1.0, %v3189
    %v3196 = vsub.f32 1.0, %v3190
    %v3197 = vsub.f32 1.0, %v3191
    %v3198 = vsub.f32 1.0, %v3192
    %v3199 = vsub.f32 1.0, %v3193
    %v3200 = vsub.f32 1.0, %v3194
    %vm3201 = vcmp.ge.f32.partialorder %v3075, 0.0
    %vm3202 = vcmp.ge.f32.partialorder %v3076, 0.0
    %vm3203 = vcmp.ge.f32.partialorder %v3077, 0.0
    %vm3204 = vcmp.ge.f32.partialorder %v3078, 0.0
    %vm3205 = vcmp.ge.f32.partialorder %v3079, 0.0
    %vm3206 = vcmp.ge.f32.partialorder %v3080, 0.0
    %v3207 = vsub.f32 0.0, %v3195
    %v3208 = vsub.f32 0.0, %v3196
    %v3209 = vsub.f32 0.0, %v3197
    %v3210 = vsub.f32 0.0, %v3198
    %v3211 = vsub.f32 0.0, %v3199
    %v3212 = vsub.f32 0.0, %v3200
    %v3213 = vsel %vm3201, %v3195, %v3207
    %v3214 = vsel %vm3202, %v3196, %v3208
    %v3215 = vsel %vm3203, %v3197, %v3209
    %v3216 = vsel %vm3204, %v3198, %v3210
    %v3217 = vsel %vm3205, %v3199, %v3211
    %v3218 = vsel %vm3206, %v3200, %v3212
    %v3219 = vadd.f32 %v3213, 1.0
    %v3220 = vadd.f32 %v3214, 1.0
    %v3221 = vadd.f32 %v3215, 1.0
    %v3222 = vadd.f32 %v3216, 1.0
    %v3223 = vadd.f32 %v3217, 1.0
    %v3224 = vadd.f32 %v3218, 1.0
    %v3225 = vmul.f32 %v3069, %v3219
    %v3226 = vmul.f32 %v3070, %v3220
    %v3227 = vmul.f32 %v3071, %v3221
    %v3228 = vmul.f32 %v3072, %v3222
    %v3229 = vmul.f32 %v3073, %v3223
    %v3230 = vmul.f32 %v3074, %v3224
    %v3231 = vld [vmem:[#allocation21] sm:$0xff]
    %v3232 = vld [vmem:[#allocation21 + $0x8] sm:$0xff]
    %v3233 = vld [vmem:[#allocation21 + $0x10] sm:$0xff]
    %v3234 = vld [vmem:[#allocation21 + $0x18] sm:$0xff]
    %v3235 = vld [vmem:[#allocation21 + $0x20] sm:$0xf]
    %v3236 = vld [vmem:[#allocation21 + $0x28] sm:$0xf]
    %v3237 = vld [vmem:[#allocation18] sm:$0xff]
    %v3238 = vld [vmem:[#allocation18 + $0x8] sm:$0xff]
    %v3239 = vld [vmem:[#allocation18 + $0x10] sm:$0xf]
    %vm3240 = vcmask 162816
    %v3242 = vsel %vm3240, %v3237, 0
    %v3245 = vsel %vm3240, %v3238, 0
    %v3248 = vsel %vm3240, %v3239, 0
    %v3251 = vsel %vm1291, %v3229, 0
    %v3254 = vsel %vm1291, %v3230, 0
    %3256 = vmatprep.subr.mxu0 %v3226
    %3257 = vmatpush1.msra.mxu0 %v3225
    %3258 = vmatprep.subr.mxu0 %v3228
    %3259 = vmatpush1.msra.mxu0 %v3227
    %3260 = vmatprep.subr.mxu0 %v3254
    %3261 = vmatpush1.msra.mxu0 %v3251
    %3262 = vmatprep.subr.mxu0 0.0
    %3263 = vmatpush1.msra.mxu0 0.0
    %3264 = vmatprep.subr.mxu0 0.0
    %3265 = vmatpush1.msra.mxu0 0.0
    %3266 = vmatprep.subr.mxu0 0.0
    %3267 = vmatpush1.msra.mxu0 0.0
    %3268 = vmatprep.subr.mxu0 0.0
    %3269 = vmatpush1.msra.mxu0 0.0
    %3270 = vmatprep.subr.mxu0 0.0
    %3271 = vmatpush1.msra.mxu0 0.0
    %3272 = vmatprep.subr.mxu0 0.0
    %3273 = vmatpush1.msra.mxu0 0.0
    %3274 = vmatprep.subr.mxu0 0.0
    %3275 = vmatpush1.msra.mxu0 0.0
    %3276 = vmatprep.subr.mxu0 0.0
    %3277 = vmatpush1.msra.mxu0 0.0
    %3278 = vmatprep.subr.mxu0 0.0
    %3279 = vmatpush1.msra.mxu0 0.0
    %3280 = vmatprep.subr.mxu0 0.0
    %3281 = vmatpush1.msra.mxu0 0.0
    %3282 = vmatprep.subr.mxu0 0.0
    %3283 = vmatpush1.msra.mxu0 0.0
    %3284 = vmatprep.subr.mxu0 0.0
    %3285 = vmatpush1.msra.mxu0 0.0
    %3286 = vmatprep.subr.mxu0 0.0
    %3287 = vmatpush1.msra.mxu0 0.0
    %3288 = vmatprep.subr.mxu0 0.0
    %3289 = vmatpush1.msra.mxu0 0.0
    %3290 = vmatprep.subr.mxu0 0.0
    %3291 = vmatpush1.msra.mxu0 0.0
    %3292 = vmatprep.subr.mxu0 0.0
    %3293 = vmatpush1.msra.mxu0 0.0
    %3294 = vmatprep.subr.mxu0 0.0
    %3295 = vmatpush1.msra.mxu0 0.0
    %3296 = vmatprep.subr.mxu0 0.0
    %3297 = vmatpush1.msra.mxu0 0.0
    %3298 = vmatprep.subr.mxu0 0.0
    %3299 = vmatpush1.msra.mxu0 0.0
    %3300 = vmatprep.subr.mxu0 0.0
    %3301 = vmatpush1.msra.mxu0 0.0
    %3302 = vmatprep.subr.mxu0 0.0
    %3303 = vmatpush1.msra.mxu0 0.0
    %3304 = vmatprep.subr.mxu0 0.0
    %3305 = vmatpush1.msra.mxu0 0.0
    %3306 = vmatprep.subr.mxu0 0.0
    %3307 = vmatpush1.msra.mxu0 0.0
    %3308 = vmatprep.subr.mxu0 0.0
    %3309 = vmatpush1.msra.mxu0 0.0
    %3310 = vmatprep.subr.mxu0 0.0
    %3311 = vmatpush1.msra.mxu0 0.0
    %3312 = vmatprep.subr.mxu0 0.0
    %3313 = vmatpush1.msra.mxu0 0.0
    %3314 = vmatprep.subr.mxu0 0.0
    %3315 = vmatpush1.msra.mxu0 0.0
    %3316 = vmatprep.subr.mxu0 0.0
    %3317 = vmatpush1.msra.mxu0 0.0
    %3318 = vmatprep.subr.mxu0 0.0
    %3319 = vmatpush1.msra.mxu0 0.0
    %3320 = vmatprep.mubr.f32.mxu0 0.0
    %3321 = vmatmul.mubr.f32.gmra.mrb[0].mxu0 %v3242
    %v3322 = vpop.f32.mrb[0].mxu0
    %v3323 = vadd.f32 0.0, %v3322
    %v3324 = vpop.f32.mrb[0].mxu0
    %v3325 = vadd.f32 0.0, %v3324
    %3326 = vmatprep.mubr.f32.mxu0 0.0
    %3327 = vmatmul.mubr.f32.gmra.mrb[0].mxu0 %v3245
    %v3328 = vpop.f32.mrb[0].mxu0
    %v3329 = vadd.f32 0.0, %v3328
    %v3330 = vpop.f32.mrb[0].mxu0
    %v3331 = vadd.f32 0.0, %v3330
    %3332 = vmatprep.mubr.f32.mxu0 0.0
    %3333 = vmatmul.mubr.f32.gmra.mrb[0].mxu0 %v3248
    %v3334 = vpop.f32.mrb[0].mxu0
    %v3335 = vadd.f32 0.0, %v3334
    %v3336 = vpop.f32.mrb[0].mxu0
    %v3337 = vadd.f32 0.0, %v3336
    %3338 = vdwg.mxu0
    %v3339 = vld [vmem:[#allocation19] sm:$0xff]
    %v3340 = vld [vmem:[#allocation19 + $0x8] sm:$0xff]
    %v3341 = vld [vmem:[#allocation19 + $0x10] sm:$0xff]
    %v3342 = vld [vmem:[#allocation19 + $0x18] sm:$0xff]
    %v3343 = vld [vmem:[#allocation19 + $0x20] sm:$0xff]
    %v3344 = vld [vmem:[#allocation19 + $0x28] sm:$0xff]
    %v3345 = vld [vmem:[#allocation19 + $0x30] sm:$0xff]
    %v3346 = vld [vmem:[#allocation19 + $0x38] sm:$0xff]
    %v3347 = vld [vmem:[#allocation19 + $0x40] sm:$0xff]
    %v3348 = vld [vmem:[#allocation19 + $0x48] sm:$0xff]
    %v3349 = vld [vmem:[#allocation19 + $0x50] sm:$0xff]
    %v3350 = vld [vmem:[#allocation19 + $0x58] sm:$0xff]
    %v3351 = vld [vmem:[#allocation19 + $0x60] sm:$0xff]
    %v3352 = vld [vmem:[#allocation19 + $0x68] sm:$0xff]
    %v3353 = vld [vmem:[#allocation19 + $0x70] sm:$0xff]
    %v3354 = vld [vmem:[#allocation19 + $0x78] sm:$0xff]
    %v3355 = vld [vmem:[#allocation19 + $0x80] sm:$0xff]
    %v3356 = vld [vmem:[#allocation19 + $0x88] sm:$0xff]
    %v3357 = vld [vmem:[#allocation19 + $0x90] sm:$0xff]
    %v3358 = vld [vmem:[#allocation19 + $0x98] sm:$0xff]
    %v3359 = vld [vmem:[#allocation19 + $0xa0] sm:$0xff]
    %v3360 = vld [vmem:[#allocation19 + $0xa8] sm:$0xff]
    %v3361 = vld [vmem:[#allocation19 + $0xb0] sm:$0xff]
    %v3362 = vld [vmem:[#allocation19 + $0xb8] sm:$0xff]
    %v3363 = vld [vmem:[#allocation19 + $0xc0] sm:$0xff]
    %v3364 = vld [vmem:[#allocation19 + $0xc8] sm:$0xff]
    %v3365 = vld [vmem:[#allocation19 + $0xd0] sm:$0xff]
    %v3366 = vld [vmem:[#allocation19 + $0xd8] sm:$0xff]
    %v3367 = vld [vmem:[#allocation19 + $0xe0] sm:$0xff]
    %v3368 = vld [vmem:[#allocation19 + $0xe8] sm:$0xff]
    %v3369 = vld [vmem:[#allocation19 + $0xf0] sm:$0xff]
    %v3370 = vld [vmem:[#allocation19 + $0xf8] sm:$0xff]
    %v3371 = vld [vmem:[#allocation19 + $0x100] sm:$0xff]
    %v3372 = vld [vmem:[#allocation19 + $0x108] sm:$0xff]
    %v3373 = vld [vmem:[#allocation19 + $0x110] sm:$0xff]
    %v3374 = vld [vmem:[#allocation19 + $0x118] sm:$0xff]
    %v3375 = vld [vmem:[#allocation19 + $0x120] sm:$0xff]
    %v3376 = vld [vmem:[#allocation19 + $0x128] sm:$0xff]
    %v3377 = vld [vmem:[#allocation19 + $0x130] sm:$0xff]
    %v3378 = vld [vmem:[#allocation19 + $0x138] sm:$0xff]
    %v3380 = vsel %vm389, %v3325, 0
    %v3383 = vsel %vm389, %v3331, 0
    %v3386 = vsel %vm389, %v3337, 0
    %3388 = vmatprep.subr.mxu0 %v3340
    %3389 = vmatpush1.msra.mxu0 %v3339
    %3390 = vmatprep.subr.mxu0 %v3342
    %3391 = vmatpush1.msra.mxu0 %v3341
    %3392 = vmatprep.subr.mxu0 %v3344
    %3393 = vmatpush1.msra.mxu0 %v3343
    %3394 = vmatprep.subr.mxu0 %v3346
    %3395 = vmatpush1.msra.mxu0 %v3345
    %3396 = vmatprep.subr.mxu0 %v3348
    %3397 = vmatpush1.msra.mxu0 %v3347
    %3398 = vmatprep.subr.mxu0 %v3350
    %3399 = vmatpush1.msra.mxu0 %v3349
    %3400 = vmatprep.subr.mxu0 %v3352
    %3401 = vmatpush1.msra.mxu0 %v3351
    %3402 = vmatprep.subr.mxu0 %v3354
    %3403 = vmatpush1.msra.mxu0 %v3353
    %3404 = vmatprep.subr.mxu0 %v3356
    %3405 = vmatpush1.msra.mxu0 %v3355
    %3406 = vmatprep.subr.mxu0 %v3358
    %3407 = vmatpush1.msra.mxu0 %v3357
    %3408 = vmatprep.subr.mxu0 %v3360
    %3409 = vmatpush1.msra.mxu0 %v3359
    %3410 = vmatprep.subr.mxu0 %v3362
    %3411 = vmatpush1.msra.mxu0 %v3361
    %3412 = vmatprep.subr.mxu0 %v3364
    %3413 = vmatpush1.msra.mxu0 %v3363
    %3414 = vmatprep.subr.mxu0 %v3366
    %3415 = vmatpush1.msra.mxu0 %v3365
    %3416 = vmatprep.subr.mxu0 %v3368
    %3417 = vmatpush1.msra.mxu0 %v3367
    %3418 = vmatprep.subr.mxu0 %v3370
    %3419 = vmatpush1.msra.mxu0 %v3369
    %3420 = vmatprep.subr.mxu0 %v3372
    %3421 = vmatpush1.msra.mxu0 %v3371
    %3422 = vmatprep.subr.mxu0 %v3374
    %3423 = vmatpush1.msra.mxu0 %v3373
    %3424 = vmatprep.subr.mxu0 %v3376
    %3425 = vmatpush1.msra.mxu0 %v3375
    %3426 = vmatprep.subr.mxu0 %v3378
    %3427 = vmatpush1.msra.mxu0 %v3377
    %3428 = vmatprep.subr.mxu0 0.0
    %3429 = vmatpush1.msra.mxu0 0.0
    %3430 = vmatprep.subr.mxu0 0.0
    %3431 = vmatpush1.msra.mxu0 0.0
    %3432 = vmatprep.subr.mxu0 0.0
    %3433 = vmatpush1.msra.mxu0 0.0
    %3434 = vmatprep.subr.mxu0 0.0
    %3435 = vmatpush1.msra.mxu0 0.0
    %3436 = vmatprep.subr.mxu0 0.0
    %3437 = vmatpush1.msra.mxu0 0.0
    %3438 = vmatprep.subr.mxu0 0.0
    %3439 = vmatpush1.msra.mxu0 0.0
    %3440 = vmatprep.subr.mxu0 0.0
    %3441 = vmatpush1.msra.mxu0 0.0
    %3442 = vmatprep.subr.mxu0 0.0
    %3443 = vmatpush1.msra.mxu0 0.0
    %3444 = vmatprep.subr.mxu0 0.0
    %3445 = vmatpush1.msra.mxu0 0.0
    %3446 = vmatprep.subr.mxu0 0.0
    %3447 = vmatpush1.msra.mxu0 0.0
    %3448 = vmatprep.subr.mxu0 0.0
    %3449 = vmatpush1.msra.mxu0 0.0
    %3450 = vmatprep.subr.mxu0 0.0
    %3451 = vmatpush1.msra.mxu0 0.0
    %3452 = vmatprep.mubr.f32.mxu0 %v3380
    %3453 = vmatmul.mubr.f32.gmra.mrb[0].mxu0 %v3323
    %v3454 = vpop.f32.mrb[0].mxu0
    %v3455 = vadd.f32 0.0, %v3454
    %v3456 = vpop.f32.mrb[0].mxu0
    %v3457 = vadd.f32 0.0, %v3456
    %3458 = vmatprep.mubr.f32.mxu0 %v3383
    %3459 = vmatmul.mubr.f32.gmra.mrb[0].mxu0 %v3329
    %v3460 = vpop.f32.mrb[0].mxu0
    %v3461 = vadd.f32 0.0, %v3460
    %v3462 = vpop.f32.mrb[0].mxu0
    %v3463 = vadd.f32 0.0, %v3462
    %3464 = vmatprep.mubr.f32.mxu0 %v3386
    %3465 = vmatmul.mubr.f32.gmra.mrb[0].mxu0 %v3335
    %v3466 = vpop.f32.mrb[0].mxu0
    %v3467 = vadd.f32 0.0, %v3466
    %v3468 = vpop.f32.mrb[0].mxu0
    %v3469 = vadd.f32 0.0, %v3468
    %3470 = vdwg.mxu0
    %v3471 = vadd.f32 %v3231, %v3455
    %v3472 = vadd.f32 %v3232, %v3457
    %v3473 = vadd.f32 %v3233, %v3461
    %v3474 = vadd.f32 %v3234, %v3463
    %v3475 = vadd.f32 %v3235, %v3467
    %v3476 = vadd.f32 %v3236, %v3469
    %s3477 = scalar_lea.vmem [#allocation18], 24
    %v3478 = vld [vmem:[%s3477] sm:$0xff]
    %v3479 = vld [vmem:[%s3477 + $0x8] sm:$0xff]
    %v3480 = vld [vmem:[%s3477 + $0x10] sm:$0xf]
    %v3482 = vsel %vm3240, %v3478, 0
    %v3485 = vsel %vm3240, %v3479, 0
    %v3488 = vsel %vm3240, %v3480, 0
    %3490 = vmatprep.subr.mxu0 %v3226
    %3491 = vmatpush1.msra.mxu0 %v3225
    %3492 = vmatprep.subr.mxu0 %v3228
    %3493 = vmatpush1.msra.mxu0 %v3227
    %3494 = vmatprep.subr.mxu0 %v3254
    %3495 = vmatpush1.msra.mxu0 %v3251
    %3496 = vmatprep.subr.mxu0 0.0
    %3497 = vmatpush1.msra.mxu0 0.0
    %3498 = vmatprep.subr.mxu0 0.0
    %3499 = vmatpush1.msra.mxu0 0.0
    %3500 = vmatprep.subr.mxu0 0.0
    %3501 = vmatpush1.msra.mxu0 0.0
    %3502 = vmatprep.subr.mxu0 0.0
    %3503 = vmatpush1.msra.mxu0 0.0
    %3504 = vmatprep.subr.mxu0 0.0
    %3505 = vmatpush1.msra.mxu0 0.0
    %3506 = vmatprep.subr.mxu0 0.0
    %3507 = vmatpush1.msra.mxu0 0.0
    %3508 = vmatprep.subr.mxu0 0.0
    %3509 = vmatpush1.msra.mxu0 0.0
    %3510 = vmatprep.subr.mxu0 0.0
    %3511 = vmatpush1.msra.mxu0 0.0
    %3512 = vmatprep.subr.mxu0 0.0
    %3513 = vmatpush1.msra.mxu0 0.0
    %3514 = vmatprep.subr.mxu0 0.0
    %3515 = vmatpush1.msra.mxu0 0.0
    %3516 = vmatprep.subr.mxu0 0.0
    %3517 = vmatpush1.msra.mxu0 0.0
    %3518 = vmatprep.subr.mxu0 0.0
    %3519 = vmatpush1.msra.mxu0 0.0
    %3520 = vmatprep.subr.mxu0 0.0
    %3521 = vmatpush1.msra.mxu0 0.0
    %3522 = vmatprep.subr.mxu0 0.0
    %3523 = vmatpush1.msra.mxu0 0.0
    %3524 = vmatprep.subr.mxu0 0.0
    %3525 = vmatpush1.msra.mxu0 0.0
    %3526 = vmatprep.subr.mxu0 0.0
    %3527 = vmatpush1.msra.mxu0 0.0
    %3528 = vmatprep.subr.mxu0 0.0
    %3529 = vmatpush1.msra.mxu0 0.0
    %3530 = vmatprep.subr.mxu0 0.0
    %3531 = vmatpush1.msra.mxu0 0.0
    %3532 = vmatprep.subr.mxu0 0.0
    %3533 = vmatpush1.msra.mxu0 0.0
    %3534 = vmatprep.subr.mxu0 0.0
    %3535 = vmatpush1.msra.mxu0 0.0
    %3536 = vmatprep.subr.mxu0 0.0
    %3537 = vmatpush1.msra.mxu0 0.0
    %3538 = vmatprep.subr.mxu0 0.0
    %3539 = vmatpush1.msra.mxu0 0.0
    %3540 = vmatprep.subr.mxu0 0.0
    %3541 = vmatpush1.msra.mxu0 0.0
    %3542 = vmatprep.subr.mxu0 0.0
    %3543 = vmatpush1.msra.mxu0 0.0
    %3544 = vmatprep.subr.mxu0 0.0
    %3545 = vmatpush1.msra.mxu0 0.0
    %3546 = vmatprep.subr.mxu0 0.0
    %3547 = vmatpush1.msra.mxu0 0.0
    %3548 = vmatprep.subr.mxu0 0.0
    %3549 = vmatpush1.msra.mxu0 0.0
    %3550 = vmatprep.subr.mxu0 0.0
    %3551 = vmatpush1.msra.mxu0 0.0
    %3552 = vmatprep.subr.mxu0 0.0
    %3553 = vmatpush1.msra.mxu0 0.0
    %3554 = vmatprep.mubr.f32.mxu0 0.0
    %3555 = vmatmul.mubr.f32.gmra.mrb[0].mxu0 %v3482
    %v3556 = vpop.f32.mrb[0].mxu0
    %v3557 = vadd.f32 0.0, %v3556
    %v3558 = vpop.f32.mrb[0].mxu0
    %v3559 = vadd.f32 0.0, %v3558
    %3560 = vmatprep.mubr.f32.mxu0 0.0
    %3561 = vmatmul.mubr.f32.gmra.mrb[0].mxu0 %v3485
    %v3562 = vpop.f32.mrb[0].mxu0
    %v3563 = vadd.f32 0.0, %v3562
    %v3564 = vpop.f32.mrb[0].mxu0
    %v3565 = vadd.f32 0.0, %v3564
    %3566 = vmatprep.mubr.f32.mxu0 0.0
    %3567 = vmatmul.mubr.f32.gmra.mrb[0].mxu0 %v3488
    %v3568 = vpop.f32.mrb[0].mxu0
    %v3569 = vadd.f32 0.0, %v3568
    %v3570 = vpop.f32.mrb[0].mxu0
    %v3571 = vadd.f32 0.0, %v3570
    %3572 = vdwg.mxu0
    %s3573 = scalar_lea.vmem [#allocation19], 320
    %v3574 = vld [vmem:[%s3573] sm:$0xff]
    %v3575 = vld [vmem:[%s3573 + $0x8] sm:$0xff]
    %v3576 = vld [vmem:[%s3573 + $0x10] sm:$0xff]
    %v3577 = vld [vmem:[%s3573 + $0x18] sm:$0xff]
    %v3578 = vld [vmem:[%s3573 + $0x20] sm:$0xff]
    %v3579 = vld [vmem:[%s3573 + $0x28] sm:$0xff]
    %v3580 = vld [vmem:[%s3573 + $0x30] sm:$0xff]
    %v3581 = vld [vmem:[%s3573 + $0x38] sm:$0xff]
    %v3582 = vld [vmem:[%s3573 + $0x40] sm:$0xff]
    %v3583 = vld [vmem:[%s3573 + $0x48] sm:$0xff]
    %v3584 = vld [vmem:[%s3573 + $0x50] sm:$0xff]
    %v3585 = vld [vmem:[%s3573 + $0x58] sm:$0xff]
    %v3586 = vld [vmem:[%s3573 + $0x60] sm:$0xff]
    %v3587 = vld [vmem:[%s3573 + $0x68] sm:$0xff]
    %v3588 = vld [vmem:[%s3573 + $0x70] sm:$0xff]
    %v3589 = vld [vmem:[%s3573 + $0x78] sm:$0xff]
    %v3590 = vld [vmem:[%s3573 + $0x80] sm:$0xff]
    %v3591 = vld [vmem:[%s3573 + $0x88] sm:$0xff]
    %v3592 = vld [vmem:[%s3573 + $0x90] sm:$0xff]
    %v3593 = vld [vmem:[%s3573 + $0x98] sm:$0xff]
    %v3594 = vld [vmem:[%s3573 + $0xa0] sm:$0xff]
    %v3595 = vld [vmem:[%s3573 + $0xa8] sm:$0xff]
    %v3596 = vld [vmem:[%s3573 + $0xb0] sm:$0xff]
    %v3597 = vld [vmem:[%s3573 + $0xb8] sm:$0xff]
    %v3598 = vld [vmem:[%s3573 + $0xc0] sm:$0xff]
    %v3599 = vld [vmem:[%s3573 + $0xc8] sm:$0xff]
    %v3600 = vld [vmem:[%s3573 + $0xd0] sm:$0xff]
    %v3601 = vld [vmem:[%s3573 + $0xd8] sm:$0xff]
    %v3602 = vld [vmem:[%s3573 + $0xe0] sm:$0xff]
    %v3603 = vld [vmem:[%s3573 + $0xe8] sm:$0xff]
    %v3604 = vld [vmem:[%s3573 + $0xf0] sm:$0xff]
    %v3605 = vld [vmem:[%s3573 + $0xf8] sm:$0xff]
    %v3606 = vld [vmem:[%s3573 + $0x100] sm:$0xff]
    %v3607 = vld [vmem:[%s3573 + $0x108] sm:$0xff]
    %v3608 = vld [vmem:[%s3573 + $0x110] sm:$0xff]
    %v3609 = vld [vmem:[%s3573 + $0x118] sm:$0xff]
    %v3610 = vld [vmem:[%s3573 + $0x120] sm:$0xff]
    %v3611 = vld [vmem:[%s3573 + $0x128] sm:$0xff]
    %v3612 = vld [vmem:[%s3573 + $0x130] sm:$0xff]
    %v3613 = vld [vmem:[%s3573 + $0x138] sm:$0xff]
    %v3615 = vsel %vm389, %v3559, 0
    %v3618 = vsel %vm389, %v3565, 0
    %v3621 = vsel %vm389, %v3571, 0
    %3623 = vmatprep.subr.mxu0 %v3575
    %3624 = vmatpush1.msra.mxu0 %v3574
    %3625 = vmatprep.subr.mxu0 %v3577
    %3626 = vmatpush1.msra.mxu0 %v3576
    %3627 = vmatprep.subr.mxu0 %v3579
    %3628 = vmatpush1.msra.mxu0 %v3578
    %3629 = vmatprep.subr.mxu0 %v3581
    %3630 = vmatpush1.msra.mxu0 %v3580
    %3631 = vmatprep.subr.mxu0 %v3583
    %3632 = vmatpush1.msra.mxu0 %v3582
    %3633 = vmatprep.subr.mxu0 %v3585
    %3634 = vmatpush1.msra.mxu0 %v3584
    %3635 = vmatprep.subr.mxu0 %v3587
    %3636 = vmatpush1.msra.mxu0 %v3586
    %3637 = vmatprep.subr.mxu0 %v3589
    %3638 = vmatpush1.msra.mxu0 %v3588
    %3639 = vmatprep.subr.mxu0 %v3591
    %3640 = vmatpush1.msra.mxu0 %v3590
    %3641 = vmatprep.subr.mxu0 %v3593
    %3642 = vmatpush1.msra.mxu0 %v3592
    %3643 = vmatprep.subr.mxu0 %v3595
    %3644 = vmatpush1.msra.mxu0 %v3594
    %3645 = vmatprep.subr.mxu0 %v3597
    %3646 = vmatpush1.msra.mxu0 %v3596
    %3647 = vmatprep.subr.mxu0 %v3599
    %3648 = vmatpush1.msra.mxu0 %v3598
    %3649 = vmatprep.subr.mxu0 %v3601
    %3650 = vmatpush1.msra.mxu0 %v3600
    %3651 = vmatprep.subr.mxu0 %v3603
    %3652 = vmatpush1.msra.mxu0 %v3602
    %3653 = vmatprep.subr.mxu0 %v3605
    %3654 = vmatpush1.msra.mxu0 %v3604
    %3655 = vmatprep.subr.mxu0 %v3607
    %3656 = vmatpush1.msra.mxu0 %v3606
    %3657 = vmatprep.subr.mxu0 %v3609
    %3658 = vmatpush1.msra.mxu0 %v3608
    %3659 = vmatprep.subr.mxu0 %v3611
    %3660 = vmatpush1.msra.mxu0 %v3610
    %3661 = vmatprep.subr.mxu0 %v3613
    %3662 = vmatpush1.msra.mxu0 %v3612
    %3663 = vmatprep.subr.mxu0 0.0
    %3664 = vmatpush1.msra.mxu0 0.0
    %3665 = vmatprep.subr.mxu0 0.0
    %3666 = vmatpush1.msra.mxu0 0.0
    %3667 = vmatprep.subr.mxu0 0.0
    %3668 = vmatpush1.msra.mxu0 0.0
    %3669 = vmatprep.subr.mxu0 0.0
    %3670 = vmatpush1.msra.mxu0 0.0
    %3671 = vmatprep.subr.mxu0 0.0
    %3672 = vmatpush1.msra.mxu0 0.0
    %3673 = vmatprep.subr.mxu0 0.0
    %3674 = vmatpush1.msra.mxu0 0.0
    %3675 = vmatprep.subr.mxu0 0.0
    %3676 = vmatpush1.msra.mxu0 0.0
    %3677 = vmatprep.subr.mxu0 0.0
    %3678 = vmatpush1.msra.mxu0 0.0
    %3679 = vmatprep.subr.mxu0 0.0
    %3680 = vmatpush1.msra.mxu0 0.0
    %3681 = vmatprep.subr.mxu0 0.0
    %3682 = vmatpush1.msra.mxu0 0.0
    %3683 = vmatprep.subr.mxu0 0.0
    %3684 = vmatpush1.msra.mxu0 0.0
    %3685 = vmatprep.subr.mxu0 0.0
    %3686 = vmatpush1.msra.mxu0 0.0
    %3687 = vmatprep.mubr.f32.mxu0 %v3615
    %3688 = vmatmul.mubr.f32.gmra.mrb[0].mxu0 %v3557
    %v3689 = vpop.f32.mrb[0].mxu0
    %v3690 = vadd.f32 0.0, %v3689
    %v3691 = vpop.f32.mrb[0].mxu0
    %v3692 = vadd.f32 0.0, %v3691
    %3693 = vmatprep.mubr.f32.mxu0 %v3618
    %3694 = vmatmul.mubr.f32.gmra.mrb[0].mxu0 %v3563
    %v3695 = vpop.f32.mrb[0].mxu0
    %v3696 = vadd.f32 0.0, %v3695
    %v3697 = vpop.f32.mrb[0].mxu0
    %v3698 = vadd.f32 0.0, %v3697
    %3699 = vmatprep.mubr.f32.mxu0 %v3621
    %3700 = vmatmul.mubr.f32.gmra.mrb[0].mxu0 %v3569
    %v3701 = vpop.f32.mrb[0].mxu0
    %v3702 = vadd.f32 0.0, %v3701
    %v3703 = vpop.f32.mrb[0].mxu0
    %v3704 = vadd.f32 0.0, %v3703
    %3705 = vdwg.mxu0
    %v3706 = vadd.f32 %v3471, %v3690
    %v3707 = vadd.f32 %v3472, %v3692
    %v3708 = vadd.f32 %v3473, %v3696
    %v3709 = vadd.f32 %v3474, %v3698
    %v3710 = vadd.f32 %v3475, %v3702
    %v3711 = vadd.f32 %v3476, %v3704
    %s3712 = scalar_lea.vmem [#allocation18], 48
    %v3713 = vld [vmem:[%s3712] sm:$0xff]
    %v3714 = vld [vmem:[%s3712 + $0x8] sm:$0xff]
    %v3715 = vld [vmem:[%s3712 + $0x10] sm:$0xf]
    %v3717 = vsel %vm3240, %v3713, 0
    %v3720 = vsel %vm3240, %v3714, 0
    %v3723 = vsel %vm3240, %v3715, 0
    %3725 = vmatprep.subr.mxu0 %v3226
    %3726 = vmatpush1.msra.mxu0 %v3225
    %3727 = vmatprep.subr.mxu0 %v3228
    %3728 = vmatpush1.msra.mxu0 %v3227
    %3729 = vmatprep.subr.mxu0 %v3254
    %3730 = vmatpush1.msra.mxu0 %v3251
    %3731 = vmatprep.subr.mxu0 0.0
    %3732 = vmatpush1.msra.mxu0 0.0
    %3733 = vmatprep.subr.mxu0 0.0
    %3734 = vmatpush1.msra.mxu0 0.0
    %3735 = vmatprep.subr.mxu0 0.0
    %3736 = vmatpush1.msra.mxu0 0.0
    %3737 = vmatprep.subr.mxu0 0.0
    %3738 = vmatpush1.msra.mxu0 0.0
    %3739 = vmatprep.subr.mxu0 0.0
    %3740 = vmatpush1.msra.mxu0 0.0
    %3741 = vmatprep.subr.mxu0 0.0
    %3742 = vmatpush1.msra.mxu0 0.0
    %3743 = vmatprep.subr.mxu0 0.0
    %3744 = vmatpush1.msra.mxu0 0.0
    %3745 = vmatprep.subr.mxu0 0.0
    %3746 = vmatpush1.msra.mxu0 0.0
    %3747 = vmatprep.subr.mxu0 0.0
    %3748 = vmatpush1.msra.mxu0 0.0
    %3749 = vmatprep.subr.mxu0 0.0
    %3750 = vmatpush1.msra.mxu0 0.0
    %3751 = vmatprep.subr.mxu0 0.0
    %3752 = vmatpush1.msra.mxu0 0.0
    %3753 = vmatprep.subr.mxu0 0.0
    %3754 = vmatpush1.msra.mxu0 0.0
    %3755 = vmatprep.subr.mxu0 0.0
    %3756 = vmatpush1.msra.mxu0 0.0
    %3757 = vmatprep.subr.mxu0 0.0
    %3758 = vmatpush1.msra.mxu0 0.0
    %3759 = vmatprep.subr.mxu0 0.0
    %3760 = vmatpush1.msra.mxu0 0.0
    %3761 = vmatprep.subr.mxu0 0.0
    %3762 = vmatpush1.msra.mxu0 0.0
    %3763 = vmatprep.subr.mxu0 0.0
    %3764 = vmatpush1.msra.mxu0 0.0
    %3765 = vmatprep.subr.mxu0 0.0
    %3766 = vmatpush1.msra.mxu0 0.0
    %3767 = vmatprep.subr.mxu0 0.0
    %3768 = vmatpush1.msra.mxu0 0.0
    %3769 = vmatprep.subr.mxu0 0.0
    %3770 = vmatpush1.msra.mxu0 0.0
    %3771 = vmatprep.subr.mxu0 0.0
    %3772 = vmatpush1.msra.mxu0 0.0
    %3773 = vmatprep.subr.mxu0 0.0
    %3774 = vmatpush1.msra.mxu0 0.0
    %3775 = vmatprep.subr.mxu0 0.0
    %3776 = vmatpush1.msra.mxu0 0.0
    %3777 = vmatprep.subr.mxu0 0.0
    %3778 = vmatpush1.msra.mxu0 0.0
    %3779 = vmatprep.subr.mxu0 0.0
    %3780 = vmatpush1.msra.mxu0 0.0
    %3781 = vmatprep.subr.mxu0 0.0
    %3782 = vmatpush1.msra.mxu0 0.0
    %3783 = vmatprep.subr.mxu0 0.0
    %3784 = vmatpush1.msra.mxu0 0.0
    %3785 = vmatprep.subr.mxu0 0.0
    %3786 = vmatpush1.msra.mxu0 0.0
    %3787 = vmatprep.subr.mxu0 0.0
    %3788 = vmatpush1.msra.mxu0 0.0
    %3789 = vmatprep.mubr.f32.mxu0 0.0
    %3790 = vmatmul.mubr.f32.gmra.mrb[0].mxu0 %v3717
    %v3791 = vpop.f32.mrb[0].mxu0
    %v3792 = vadd.f32 0.0, %v3791
    %v3793 = vpop.f32.mrb[0].mxu0
    %v3794 = vadd.f32 0.0, %v3793
    %3795 = vmatprep.mubr.f32.mxu0 0.0
    %3796 = vmatmul.mubr.f32.gmra.mrb[0].mxu0 %v3720
    %v3797 = vpop.f32.mrb[0].mxu0
    %v3798 = vadd.f32 0.0, %v3797
    %v3799 = vpop.f32.mrb[0].mxu0
    %v3800 = vadd.f32 0.0, %v3799
    %3801 = vmatprep.mubr.f32.mxu0 0.0
    %3802 = vmatmul.mubr.f32.gmra.mrb[0].mxu0 %v3723
    %v3803 = vpop.f32.mrb[0].mxu0
    %v3804 = vadd.f32 0.0, %v3803
    %v3805 = vpop.f32.mrb[0].mxu0
    %v3806 = vadd.f32 0.0, %v3805
    %3807 = vdwg.mxu0
    %s3808 = scalar_lea.vmem [#allocation19], 640
    %v3809 = vld [vmem:[%s3808] sm:$0xff]
    %v3810 = vld [vmem:[%s3808 + $0x8] sm:$0xff]
    %v3811 = vld [vmem:[%s3808 + $0x10] sm:$0xff]
    %v3812 = vld [vmem:[%s3808 + $0x18] sm:$0xff]
    %v3813 = vld [vmem:[%s3808 + $0x20] sm:$0xff]
    %v3814 = vld [vmem:[%s3808 + $0x28] sm:$0xff]
    %v3815 = vld [vmem:[%s3808 + $0x30] sm:$0xff]
    %v3816 = vld [vmem:[%s3808 + $0x38] sm:$0xff]
    %v3817 = vld [vmem:[%s3808 + $0x40] sm:$0xff]
    %v3818 = vld [vmem:[%s3808 + $0x48] sm:$0xff]
    %v3819 = vld [vmem:[%s3808 + $0x50] sm:$0xff]
    %v3820 = vld [vmem:[%s3808 + $0x58] sm:$0xff]
    %v3821 = vld [vmem:[%s3808 + $0x60] sm:$0xff]
    %v3822 = vld [vmem:[%s3808 + $0x68] sm:$0xff]
    %v3823 = vld [vmem:[%s3808 + $0x70] sm:$0xff]
    %v3824 = vld [vmem:[%s3808 + $0x78] sm:$0xff]
    %v3825 = vld [vmem:[%s3808 + $0x80] sm:$0xff]
    %v3826 = vld [vmem:[%s3808 + $0x88] sm:$0xff]
    %v3827 = vld [vmem:[%s3808 + $0x90] sm:$0xff]
    %v3828 = vld [vmem:[%s3808 + $0x98] sm:$0xff]
    %v3829 = vld [vmem:[%s3808 + $0xa0] sm:$0xff]
    %v3830 = vld [vmem:[%s3808 + $0xa8] sm:$0xff]
    %v3831 = vld [vmem:[%s3808 + $0xb0] sm:$0xff]
    %v3832 = vld [vmem:[%s3808 + $0xb8] sm:$0xff]
    %v3833 = vld [vmem:[%s3808 + $0xc0] sm:$0xff]
    %v3834 = vld [vmem:[%s3808 + $0xc8] sm:$0xff]
    %v3835 = vld [vmem:[%s3808 + $0xd0] sm:$0xff]
    %v3836 = vld [vmem:[%s3808 + $0xd8] sm:$0xff]
    %v3837 = vld [vmem:[%s3808 + $0xe0] sm:$0xff]
    %v3838 = vld [vmem:[%s3808 + $0xe8] sm:$0xff]
    %v3839 = vld [vmem:[%s3808 + $0xf0] sm:$0xff]
    %v3840 = vld [vmem:[%s3808 + $0xf8] sm:$0xff]
    %v3841 = vld [vmem:[%s3808 + $0x100] sm:$0xff]
    %v3842 = vld [vmem:[%s3808 + $0x108] sm:$0xff]
    %v3843 = vld [vmem:[%s3808 + $0x110] sm:$0xff]
    %v3844 = vld [vmem:[%s3808 + $0x118] sm:$0xff]
    %v3845 = vld [vmem:[%s3808 + $0x120] sm:$0xff]
    %v3846 = vld [vmem:[%s3808 + $0x128] sm:$0xff]
    %v3847 = vld [vmem:[%s3808 + $0x130] sm:$0xff]
    %v3848 = vld [vmem:[%s3808 + $0x138] sm:$0xff]
    %v3850 = vsel %vm389, %v3794, 0
    %v3853 = vsel %vm389, %v3800, 0
    %v3856 = vsel %vm389, %v3806, 0
    %3858 = vmatprep.subr.mxu0 %v3810
    %3859 = vmatpush1.msra.mxu0 %v3809
    %3860 = vmatprep.subr.mxu0 %v3812
    %3861 = vmatpush1.msra.mxu0 %v3811
    %3862 = vmatprep.subr.mxu0 %v3814
    %3863 = vmatpush1.msra.mxu0 %v3813
    %3864 = vmatprep.subr.mxu0 %v3816
    %3865 = vmatpush1.msra.mxu0 %v3815
    %3866 = vmatprep.subr.mxu0 %v3818
    %3867 = vmatpush1.msra.mxu0 %v3817
    %3868 = vmatprep.subr.mxu0 %v3820
    %3869 = vmatpush1.msra.mxu0 %v3819
    %3870 = vmatprep.subr.mxu0 %v3822
    %3871 = vmatpush1.msra.mxu0 %v3821
    %3872 = vmatprep.subr.mxu0 %v3824
    %3873 = vmatpush1.msra.mxu0 %v3823
    %3874 = vmatprep.subr.mxu0 %v3826
    %3875 = vmatpush1.msra.mxu0 %v3825
    %3876 = vmatprep.subr.mxu0 %v3828
    %3877 = vmatpush1.msra.mxu0 %v3827
    %3878 = vmatprep.subr.mxu0 %v3830
    %3879 = vmatpush1.msra.mxu0 %v3829
    %3880 = vmatprep.subr.mxu0 %v3832
    %3881 = vmatpush1.msra.mxu0 %v3831
    %3882 = vmatprep.subr.mxu0 %v3834
    %3883 = vmatpush1.msra.mxu0 %v3833
    %3884 = vmatprep.subr.mxu0 %v3836
    %3885 = vmatpush1.msra.mxu0 %v3835
    %3886 = vmatprep.subr.mxu0 %v3838
    %3887 = vmatpush1.msra.mxu0 %v3837
    %3888 = vmatprep.subr.mxu0 %v3840
    %3889 = vmatpush1.msra.mxu0 %v3839
    %3890 = vmatprep.subr.mxu0 %v3842
    %3891 = vmatpush1.msra.mxu0 %v3841
    %3892 = vmatprep.subr.mxu0 %v3844
    %3893 = vmatpush1.msra.mxu0 %v3843
    %3894 = vmatprep.subr.mxu0 %v3846
    %3895 = vmatpush1.msra.mxu0 %v3845
    %3896 = vmatprep.subr.mxu0 %v3848
    %3897 = vmatpush1.msra.mxu0 %v3847
    %3898 = vmatprep.subr.mxu0 0.0
    %3899 = vmatpush1.msra.mxu0 0.0
    %3900 = vmatprep.subr.mxu0 0.0
    %3901 = vmatpush1.msra.mxu0 0.0
    %3902 = vmatprep.subr.mxu0 0.0
    %3903 = vmatpush1.msra.mxu0 0.0
    %3904 = vmatprep.subr.mxu0 0.0
    %3905 = vmatpush1.msra.mxu0 0.0
    %3906 = vmatprep.subr.mxu0 0.0
    %3907 = vmatpush1.msra.mxu0 0.0
    %3908 = vmatprep.subr.mxu0 0.0
    %3909 = vmatpush1.msra.mxu0 0.0
    %3910 = vmatprep.subr.mxu0 0.0
    %3911 = vmatpush1.msra.mxu0 0.0
    %3912 = vmatprep.subr.mxu0 0.0
    %3913 = vmatpush1.msra.mxu0 0.0
    %3914 = vmatprep.subr.mxu0 0.0
    %3915 = vmatpush1.msra.mxu0 0.0
    %3916 = vmatprep.subr.mxu0 0.0
    %3917 = vmatpush1.msra.mxu0 0.0
    %3918 = vmatprep.subr.mxu0 0.0
    %3919 = vmatpush1.msra.mxu0 0.0
    %3920 = vmatprep.subr.mxu0 0.0
    %3921 = vmatpush1.msra.mxu0 0.0
    %3922 = vmatprep.mubr.f32.mxu0 %v3850
    %3923 = vmatmul.mubr.f32.gmra.mrb[0].mxu0 %v3792
    %v3924 = vpop.f32.mrb[0].mxu0
    %v3925 = vadd.f32 0.0, %v3924
    %v3926 = vpop.f32.mrb[0].mxu0
    %v3927 = vadd.f32 0.0, %v3926
    %3928 = vmatprep.mubr.f32.mxu0 %v3853
    %3929 = vmatmul.mubr.f32.gmra.mrb[0].mxu0 %v3798
    %v3930 = vpop.f32.mrb[0].mxu0
    %v3931 = vadd.f32 0.0, %v3930
    %v3932 = vpop.f32.mrb[0].mxu0
    %v3933 = vadd.f32 0.0, %v3932
    %3934 = vmatprep.mubr.f32.mxu0 %v3856
    %3935 = vmatmul.mubr.f32.gmra.mrb[0].mxu0 %v3804
    %v3936 = vpop.f32.mrb[0].mxu0
    %v3937 = vadd.f32 0.0, %v3936
    %v3938 = vpop.f32.mrb[0].mxu0
    %v3939 = vadd.f32 0.0, %v3938
    %3940 = vdwg.mxu0
    %v3941 = vadd.f32 %v3706, %v3925
    %v3942 = vadd.f32 %v3707, %v3927
    %v3943 = vadd.f32 %v3708, %v3931
    %v3944 = vadd.f32 %v3709, %v3933
    %v3945 = vadd.f32 %v3710, %v3937
    %v3946 = vadd.f32 %v3711, %v3939
    %v3947 = vmul.f32 %v3941, 0.5
    %v3948 = vmul.f32 %v3942, 0.5
    %v3949 = vmul.f32 %v3943, 0.5
    %v3950 = vmul.f32 %v3944, 0.5
    %v3951 = vmul.f32 %v3945, 0.5
    %v3952 = vmul.f32 %v3946, 0.5
    %v3953 = vmul.f32 %v3941, 0.70710677
    %v3954 = vmul.f32 %v3942, 0.70710677
    %v3955 = vmul.f32 %v3943, 0.70710677
    %v3956 = vmul.f32 %v3944, 0.70710677
    %v3957 = vmul.f32 %v3945, 0.70710677
    %v3958 = vmul.f32 %v3946, 0.70710677
    %v3959 = vand.u32 2147483647, %v3953
    %v3960 = vand.u32 2147483647, %v3954
    %v3961 = vand.u32 2147483647, %v3955
    %v3962 = vand.u32 2147483647, %v3956
    %v3963 = vand.u32 2147483647, %v3957
    %v3964 = vand.u32 2147483647, %v3958
    %v3965 = vmul.f32 %v3959, 0.3275911
    %v3966 = vmul.f32 %v3960, 0.3275911
    %v3967 = vmul.f32 %v3961, 0.3275911
    %v3968 = vmul.f32 %v3962, 0.3275911
    %v3969 = vmul.f32 %v3963, 0.3275911
    %v3970 = vmul.f32 %v3964, 0.3275911
    %v3971 = vadd.f32 %v3965, 1.0
    %v3972 = vadd.f32 %v3966, 1.0
    %v3973 = vadd.f32 %v3967, 1.0
    %v3974 = vadd.f32 %v3968, 1.0
    %v3975 = vadd.f32 %v3969, 1.0
    %v3976 = vadd.f32 %v3970, 1.0
    %v3977 = vrcp.pop %v3971
    %v3978 = vmul.f32 1.0, %v3977
    %v3979 = vrcp.pop %v3972
    %v3980 = vmul.f32 1.0, %v3979
    %v3981 = vrcp.pop %v3973
    %v3982 = vmul.f32 1.0, %v3981
    %v3983 = vrcp.pop %v3974
    %v3984 = vmul.f32 1.0, %v3983
    %v3985 = vrcp.pop %v3975
    %v3986 = vmul.f32 1.0, %v3985
    %v3987 = vrcp.pop %v3976
    %v3988 = vmul.f32 1.0, %v3987
    %v3989 = vmul.f32 %v3978, 1.0614054
    %v3990 = vmul.f32 %v3980, 1.0614054
    %v3991 = vmul.f32 %v3982, 1.0614054
    %v3992 = vmul.f32 %v3984, 1.0614054
    %v3993 = vmul.f32 %v3986, 1.0614054
    %v3994 = vmul.f32 %v3988, 1.0614054
    %v3995 = vadd.f32 %v3989, -1.4531521
    %v3996 = vadd.f32 %v3990, -1.4531521
    %v3997 = vadd.f32 %v3991, -1.4531521
    %v3998 = vadd.f32 %v3992, -1.4531521
    %v3999 = vadd.f32 %v3993, -1.4531521
    %v4000 = vadd.f32 %v3994, -1.4531521
    %v4001 = vmul.f32 %v3995, %v3978
    %v4002 = vmul.f32 %v3996, %v3980
    %v4003 = vmul.f32 %v3997, %v3982
    %v4004 = vmul.f32 %v3998, %v3984
    %v4005 = vmul.f32 %v3999, %v3986
    %v4006 = vmul.f32 %v4000, %v3988
    %v4007 = vadd.f32 %v4001, 1.4214138
    %v4008 = vadd.f32 %v4002, 1.4214138
    %v4009 = vadd.f32 %v4003, 1.4214138
    %v4010 = vadd.f32 %v4004, 1.4214138
    %v4011 = vadd.f32 %v4005, 1.4214138
    %v4012 = vadd.f32 %v4006, 1.4214138
    %v4013 = vmul.f32 %v4007, %v3978
    %v4014 = vmul.f32 %v4008, %v3980
    %v4015 = vmul.f32 %v4009, %v3982
    %v4016 = vmul.f32 %v4010, %v3984
    %v4017 = vmul.f32 %v4011, %v3986
    %v4018 = vmul.f32 %v4012, %v3988
    %v4019 = vadd.f32 %v4013, -0.28449672
    %v4020 = vadd.f32 %v4014, -0.28449672
    %v4021 = vadd.f32 %v4015, -0.28449672
    %v4022 = vadd.f32 %v4016, -0.28449672
    %v4023 = vadd.f32 %v4017, -0.28449672
    %v4024 = vadd.f32 %v4018, -0.28449672
    %v4025 = vmul.f32 %v4019, %v3978
    %v4026 = vmul.f32 %v4020, %v3980
    %v4027 = vmul.f32 %v4021, %v3982
    %v4028 = vmul.f32 %v4022, %v3984
    %v4029 = vmul.f32 %v4023, %v3986
    %v4030 = vmul.f32 %v4024, %v3988
    %v4031 = vadd.f32 %v4025, 0.2548296
    %v4032 = vadd.f32 %v4026, 0.2548296
    %v4033 = vadd.f32 %v4027, 0.2548296
    %v4034 = vadd.f32 %v4028, 0.2548296
    %v4035 = vadd.f32 %v4029, 0.2548296
    %v4036 = vadd.f32 %v4030, 0.2548296
    %v4037 = vmul.f32 %v4031, %v3978
    %v4038 = vmul.f32 %v4032, %v3980
    %v4039 = vmul.f32 %v4033, %v3982
    %v4040 = vmul.f32 %v4034, %v3984
    %v4041 = vmul.f32 %v4035, %v3986
    %v4042 = vmul.f32 %v4036, %v3988
    %v4043 = vsub.f32 0.0, %v3959
    %v4044 = vsub.f32 0.0, %v3960
    %v4045 = vsub.f32 0.0, %v3961
    %v4046 = vsub.f32 0.0, %v3962
    %v4047 = vsub.f32 0.0, %v3963
    %v4048 = vsub.f32 0.0, %v3964
    %v4049 = vmul.f32 %v4043, %v3959
    %v4050 = vmul.f32 %v4044, %v3960
    %v4051 = vmul.f32 %v4045, %v3961
    %v4052 = vmul.f32 %v4046, %v3962
    %v4053 = vmul.f32 %v4047, %v3963
    %v4054 = vmul.f32 %v4048, %v3964
    %v4055 = vmul.f32 %v4049, 1.442695
    %v4056 = vpow.pop %v4055
    %v4057 = vmul.f32 %v4050, 1.442695
    %v4058 = vpow.pop %v4057
    %v4059 = vmul.f32 %v4051, 1.442695
    %v4060 = vpow.pop %v4059
    %v4061 = vmul.f32 %v4052, 1.442695
    %v4062 = vpow.pop %v4061
    %v4063 = vmul.f32 %v4053, 1.442695
    %v4064 = vpow.pop %v4063
    %v4065 = vmul.f32 %v4054, 1.442695
    %v4066 = vpow.pop %v4065
    %v4067 = vmul.f32 %v4037, %v4056
    %v4068 = vmul.f32 %v4038, %v4058
    %v4069 = vmul.f32 %v4039, %v4060
    %v4070 = vmul.f32 %v4040, %v4062
    %v4071 = vmul.f32 %v4041, %v4064
    %v4072 = vmul.f32 %v4042, %v4066
    %v4073 = vsub.f32 1.0, %v4067
    %v4074 = vsub.f32 1.0, %v4068
    %v4075 = vsub.f32 1.0, %v4069
    %v4076 = vsub.f32 1.0, %v4070
    %v4077 = vsub.f32 1.0, %v4071
    %v4078 = vsub.f32 1.0, %v4072
    %vm4079 = vcmp.ge.f32.partialorder %v3953, 0.0
    %vm4080 = vcmp.ge.f32.partialorder %v3954, 0.0
    %vm4081 = vcmp.ge.f32.partialorder %v3955, 0.0
    %vm4082 = vcmp.ge.f32.partialorder %v3956, 0.0
    %vm4083 = vcmp.ge.f32.partialorder %v3957, 0.0
    %vm4084 = vcmp.ge.f32.partialorder %v3958, 0.0
    %v4085 = vsub.f32 0.0, %v4073
    %v4086 = vsub.f32 0.0, %v4074
    %v4087 = vsub.f32 0.0, %v4075
    %v4088 = vsub.f32 0.0, %v4076
    %v4089 = vsub.f32 0.0, %v4077
    %v4090 = vsub.f32 0.0, %v4078
    %v4091 = vsel %vm4079, %v4073, %v4085
    %v4092 = vsel %vm4080, %v4074, %v4086
    %v4093 = vsel %vm4081, %v4075, %v4087
    %v4094 = vsel %vm4082, %v4076, %v4088
    %v4095 = vsel %vm4083, %v4077, %v4089
    %v4096 = vsel %vm4084, %v4078, %v4090
    %v4097 = vadd.f32 %v4091, 1.0
    %v4098 = vadd.f32 %v4092, 1.0
    %v4099 = vadd.f32 %v4093, 1.0
    %v4100 = vadd.f32 %v4094, 1.0
    %v4101 = vadd.f32 %v4095, 1.0
    %v4102 = vadd.f32 %v4096, 1.0
    %v4103 = vmul.f32 %v3947, %v4097
    %v4104 = vmul.f32 %v3948, %v4098
    %v4105 = vmul.f32 %v3949, %v4099
    %v4106 = vmul.f32 %v3950, %v4100
    %v4107 = vmul.f32 %v3951, %v4101
    %v4108 = vmul.f32 %v3952, %v4102
    %v4109 = vld [vmem:[%s15] sm:$0xff]
    %v4110 = vld [vmem:[%s15 + $0x8] sm:$0xf]
    %v4111 = vld [vmem:[#allocation22] sm:$0xff]
    %v4112 = vld [vmem:[#allocation22 + $0x8] sm:$0xf]
    %v4114 = vsel %vm3240, %v4111, 0
    %v4117 = vsel %vm3240, %v4112, 0
    %v4120 = vsel %vm1291, %v4107, 0
    %v4123 = vsel %vm1291, %v4108, 0
    %4125 = vmatprep.subr.mxu0 %v4104
    %4126 = vmatpush1.msra.mxu0 %v4103
    %4127 = vmatprep.subr.mxu0 %v4106
    %4128 = vmatpush1.msra.mxu0 %v4105
    %4129 = vmatprep.subr.mxu0 %v4123
    %4130 = vmatpush1.msra.mxu0 %v4120
    %4131 = vmatprep.subr.mxu0 0.0
    %4132 = vmatpush1.msra.mxu0 0.0
    %4133 = vmatprep.subr.mxu0 0.0
    %4134 = vmatpush1.msra.mxu0 0.0
    %4135 = vmatprep.subr.mxu0 0.0
    %4136 = vmatpush1.msra.mxu0 0.0
    %4137 = vmatprep.subr.mxu0 0.0
    %4138 = vmatpush1.msra.mxu0 0.0
    %4139 = vmatprep.subr.mxu0 0.0
    %4140 = vmatpush1.msra.mxu0 0.0
    %4141 = vmatprep.subr.mxu0 0.0
    %4142 = vmatpush1.msra.mxu0 0.0
    %4143 = vmatprep.subr.mxu0 0.0
    %4144 = vmatpush1.msra.mxu0 0.0
    %4145 = vmatprep.subr.mxu0 0.0
    %4146 = vmatpush1.msra.mxu0 0.0
    %4147 = vmatprep.subr.mxu0 0.0
    %4148 = vmatpush1.msra.mxu0 0.0
    %4149 = vmatprep.subr.mxu0 0.0
    %4150 = vmatpush1.msra.mxu0 0.0
    %4151 = vmatprep.subr.mxu0 0.0
    %4152 = vmatpush1.msra.mxu0 0.0
    %4153 = vmatprep.subr.mxu0 0.0
    %4154 = vmatpush1.msra.mxu0 0.0
    %4155 = vmatprep.subr.mxu0 0.0
    %4156 = vmatpush1.msra.mxu0 0.0
    %4157 = vmatprep.subr.mxu0 0.0
    %4158 = vmatpush1.msra.mxu0 0.0
    %4159 = vmatprep.subr.mxu0 0.0
    %4160 = vmatpush1.msra.mxu0 0.0
    %4161 = vmatprep.subr.mxu0 0.0
    %4162 = vmatpush1.msra.mxu0 0.0
    %4163 = vmatprep.subr.mxu0 0.0
    %4164 = vmatpush1.msra.mxu0 0.0
    %4165 = vmatprep.subr.mxu0 0.0
    %4166 = vmatpush1.msra.mxu0 0.0
    %4167 = vmatprep.subr.mxu0 0.0
    %4168 = vmatpush1.msra.mxu0 0.0
    %4169 = vmatprep.subr.mxu0 0.0
    %4170 = vmatpush1.msra.mxu0 0.0
    %4171 = vmatprep.subr.mxu0 0.0
    %4172 = vmatpush1.msra.mxu0 0.0
    %4173 = vmatprep.subr.mxu0 0.0
    %4174 = vmatpush1.msra.mxu0 0.0
    %4175 = vmatprep.subr.mxu0 0.0
    %4176 = vmatpush1.msra.mxu0 0.0
    %4177 = vmatprep.subr.mxu0 0.0
    %4178 = vmatpush1.msra.mxu0 0.0
    %4179 = vmatprep.subr.mxu0 0.0
    %4180 = vmatpush1.msra.mxu0 0.0
    %4181 = vmatprep.subr.mxu0 0.0
    %4182 = vmatpush1.msra.mxu0 0.0
    %4183 = vmatprep.subr.mxu0 0.0
    %4184 = vmatpush1.msra.mxu0 0.0
    %4185 = vmatprep.subr.mxu0 0.0
    %4186 = vmatpush1.msra.mxu0 0.0
    %4187 = vmatprep.subr.mxu0 0.0
    %4188 = vmatpush1.msra.mxu0 0.0
    %4189 = vmatprep.mubr.f32.mxu0 0.0
    %4190 = vmatmul.mubr.f32.gmra.mrb[0].mxu0 %v4114
    %v4191 = vpop.f32.mrb[0].mxu0
    %v4192 = vadd.f32 0.0, %v4191
    %v4193 = vpop.f32.mrb[0].mxu0
    %v4194 = vadd.f32 0.0, %v4193
    %4195 = vmatprep.mubr.f32.mxu0 0.0
    %4196 = vmatmul.mubr.f32.gmra.mrb[0].mxu0 %v4117
    %v4197 = vpop.f32.mrb[0].mxu0
    %v4198 = vadd.f32 0.0, %v4197
    %v4199 = vpop.f32.mrb[0].mxu0
    %v4200 = vadd.f32 0.0, %v4199
    %4201 = vdwg.mxu0
    %v4202 = vld [vmem:[%s14] sm:$0xff]
    %v4203 = vld [vmem:[%s14 + $0x8] sm:$0xff]
    %v4204 = vld [vmem:[%s14 + $0x10] sm:$0xff]
    %v4205 = vld [vmem:[%s14 + $0x18] sm:$0xff]
    %v4206 = vld [vmem:[%s14 + $0x20] sm:$0xff]
    %v4207 = vld [vmem:[%s14 + $0x28] sm:$0xff]
    %v4208 = vld [vmem:[%s14 + $0x30] sm:$0xff]
    %v4209 = vld [vmem:[%s14 + $0x38] sm:$0xff]
    %v4210 = vld [vmem:[%s14 + $0x40] sm:$0xff]
    %v4211 = vld [vmem:[%s14 + $0x48] sm:$0xff]
    %v4212 = vld [vmem:[%s14 + $0x50] sm:$0xff]
    %v4213 = vld [vmem:[%s14 + $0x58] sm:$0xff]
    %v4214 = vld [vmem:[%s14 + $0x60] sm:$0xff]
    %v4215 = vld [vmem:[%s14 + $0x68] sm:$0xff]
    %v4216 = vld [vmem:[%s14 + $0x70] sm:$0xff]
    %v4217 = vld [vmem:[%s14 + $0x78] sm:$0xff]
    %v4218 = vld [vmem:[%s14 + $0x80] sm:$0xff]
    %v4219 = vld [vmem:[%s14 + $0x88] sm:$0xff]
    %v4220 = vld [vmem:[%s14 + $0x90] sm:$0xff]
    %v4221 = vld [vmem:[%s14 + $0x98] sm:$0xff]
    %v4223 = vsel %vm389, %v4194, 0
    %v4226 = vsel %vm389, %v4200, 0
    %4228 = vmatprep.subr.mxu0 0.0
    %4229 = vmatpush1.msra.mxu0 %v4202
    %4230 = vmatprep.subr.mxu0 0.0
    %4231 = vmatpush1.msra.mxu0 %v4203
    %4232 = vmatprep.subr.mxu0 0.0
    %4233 = vmatpush1.msra.mxu0 %v4204
    %4234 = vmatprep.subr.mxu0 0.0
    %4235 = vmatpush1.msra.mxu0 %v4205
    %4236 = vmatprep.subr.mxu0 0.0
    %4237 = vmatpush1.msra.mxu0 %v4206
    %4238 = vmatprep.subr.mxu0 0.0
    %4239 = vmatpush1.msra.mxu0 %v4207
    %4240 = vmatprep.subr.mxu0 0.0
    %4241 = vmatpush1.msra.mxu0 %v4208
    %4242 = vmatprep.subr.mxu0 0.0
    %4243 = vmatpush1.msra.mxu0 %v4209
    %4244 = vmatprep.subr.mxu0 0.0
    %4245 = vmatpush1.msra.mxu0 %v4210
    %4246 = vmatprep.subr.mxu0 0.0
    %4247 = vmatpush1.msra.mxu0 %v4211
    %4248 = vmatprep.subr.mxu0 0.0
    %4249 = vmatpush1.msra.mxu0 %v4212
    %4250 = vmatprep.subr.mxu0 0.0
    %4251 = vmatpush1.msra.mxu0 %v4213
    %4252 = vmatprep.subr.mxu0 0.0
    %4253 = vmatpush1.msra.mxu0 %v4214
    %4254 = vmatprep.subr.mxu0 0.0
    %4255 = vmatpush1.msra.mxu0 %v4215
    %4256 = vmatprep.subr.mxu0 0.0
    %4257 = vmatpush1.msra.mxu0 %v4216
    %4258 = vmatprep.subr.mxu0 0.0
    %4259 = vmatpush1.msra.mxu0 %v4217
    %4260 = vmatprep.subr.mxu0 0.0
    %4261 = vmatpush1.msra.mxu0 %v4218
    %4262 = vmatprep.subr.mxu0 0.0
    %4263 = vmatpush1.msra.mxu0 %v4219
    %4264 = vmatprep.subr.mxu0 0.0
    %4265 = vmatpush1.msra.mxu0 %v4220
    %4266 = vmatprep.subr.mxu0 0.0
    %4267 = vmatpush1.msra.mxu0 %v4221
    %4268 = vmatprep.subr.mxu0 0.0
    %4269 = vmatpush1.msra.mxu0 0.0
    %4270 = vmatprep.subr.mxu0 0.0
    %4271 = vmatpush1.msra.mxu0 0.0
    %4272 = vmatprep.subr.mxu0 0.0
    %4273 = vmatpush1.msra.mxu0 0.0
    %4274 = vmatprep.subr.mxu0 0.0
    %4275 = vmatpush1.msra.mxu0 0.0
    %4276 = vmatprep.subr.mxu0 0.0
    %4277 = vmatpush1.msra.mxu0 0.0
    %4278 = vmatprep.subr.mxu0 0.0
    %4279 = vmatpush1.msra.mxu0 0.0
    %4280 = vmatprep.subr.mxu0 0.0
    %4281 = vmatpush1.msra.mxu0 0.0
    %4282 = vmatprep.subr.mxu0 0.0
    %4283 = vmatpush1.msra.mxu0 0.0
    %4284 = vmatprep.subr.mxu0 0.0
    %4285 = vmatpush1.msra.mxu0 0.0
    %4286 = vmatprep.subr.mxu0 0.0
    %4287 = vmatpush1.msra.mxu0 0.0
    %4288 = vmatprep.subr.mxu0 0.0
    %4289 = vmatpush1.msra.mxu0 0.0
    %4290 = vmatprep.subr.mxu0 0.0
    %4291 = vmatpush1.msra.mxu0 0.0
    %4292 = vmatprep.mubr.f32.mxu0 %v4223
    %4293 = vmatmul.mubr.f32.gmra.mrb[0].mxu0 %v4192
    %v4294 = vpop.f32.mrb[0].mxu0
    %v4295 = vadd.f32 0.0, %v4294
    %v4296 = vpop.f32.mrb[0].mxu0
    %4297 = vmatprep.mubr.f32.mxu0 %v4226
    %4298 = vmatmul.mubr.f32.gmra.mrb[0].mxu0 %v4198
    %v4299 = vpop.f32.mrb[0].mxu0
    %v4300 = vadd.f32 0.0, %v4299
    %v4301 = vpop.f32.mrb[0].mxu0
    %4302 = vdwg.mxu0
    %v4303 = vadd.f32 %v4109, %v4295
    %v4304 = vadd.f32 %v4110, %v4300
    %s4305 = scalar_lea.vmem [#allocation22], 16
    %v4306 = vld [vmem:[%s4305] sm:$0xff]
    %v4307 = vld [vmem:[%s4305 + $0x8] sm:$0xf]
    %v4309 = vsel %vm3240, %v4306, 0
    %v4312 = vsel %vm3240, %v4307, 0
    %4314 = vmatprep.subr.mxu0 %v4104
    %4315 = vmatpush1.msra.mxu0 %v4103
    %4316 = vmatprep.subr.mxu0 %v4106
    %4317 = vmatpush1.msra.mxu0 %v4105
    %4318 = vmatprep.subr.mxu0 %v4123
    %4319 = vmatpush1.msra.mxu0 %v4120
    %4320 = vmatprep.subr.mxu0 0.0
    %4321 = vmatpush1.msra.mxu0 0.0
    %4322 = vmatprep.subr.mxu0 0.0
    %4323 = vmatpush1.msra.mxu0 0.0
    %4324 = vmatprep.subr.mxu0 0.0
    %4325 = vmatpush1.msra.mxu0 0.0
    %4326 = vmatprep.subr.mxu0 0.0
    %4327 = vmatpush1.msra.mxu0 0.0
    %4328 = vmatprep.subr.mxu0 0.0
    %4329 = vmatpush1.msra.mxu0 0.0
    %4330 = vmatprep.subr.mxu0 0.0
    %4331 = vmatpush1.msra.mxu0 0.0
    %4332 = vmatprep.subr.mxu0 0.0
    %4333 = vmatpush1.msra.mxu0 0.0
    %4334 = vmatprep.subr.mxu0 0.0
    %4335 = vmatpush1.msra.mxu0 0.0
    %4336 = vmatprep.subr.mxu0 0.0
    %4337 = vmatpush1.msra.mxu0 0.0
    %4338 = vmatprep.subr.mxu0 0.0
    %4339 = vmatpush1.msra.mxu0 0.0
    %4340 = vmatprep.subr.mxu0 0.0
    %4341 = vmatpush1.msra.mxu0 0.0
    %4342 = vmatprep.subr.mxu0 0.0
    %4343 = vmatpush1.msra.mxu0 0.0
    %4344 = vmatprep.subr.mxu0 0.0
    %4345 = vmatpush1.msra.mxu0 0.0
    %4346 = vmatprep.subr.mxu0 0.0
    %4347 = vmatpush1.msra.mxu0 0.0
    %4348 = vmatprep.subr.mxu0 0.0
    %4349 = vmatpush1.msra.mxu0 0.0
    %4350 = vmatprep.subr.mxu0 0.0
    %4351 = vmatpush1.msra.mxu0 0.0
    %4352 = vmatprep.subr.mxu0 0.0
    %4353 = vmatpush1.msra.mxu0 0.0
    %4354 = vmatprep.subr.mxu0 0.0
    %4355 = vmatpush1.msra.mxu0 0.0
    %4356 = vmatprep.subr.mxu0 0.0
    %4357 = vmatpush1.msra.mxu0 0.0
    %4358 = vmatprep.subr.mxu0 0.0
    %4359 = vmatpush1.msra.mxu0 0.0
    %4360 = vmatprep.subr.mxu0 0.0
    %4361 = vmatpush1.msra.mxu0 0.0
    %4362 = vmatprep.subr.mxu0 0.0
    %4363 = vmatpush1.msra.mxu0 0.0
    %4364 = vmatprep.subr.mxu0 0.0
    %4365 = vmatpush1.msra.mxu0 0.0
    %4366 = vmatprep.subr.mxu0 0.0
    %4367 = vmatpush1.msra.mxu0 0.0
    %4368 = vmatprep.subr.mxu0 0.0
    %4369 = vmatpush1.msra.mxu0 0.0
    %4370 = vmatprep.subr.mxu0 0.0
    %4371 = vmatpush1.msra.mxu0 0.0
    %4372 = vmatprep.subr.mxu0 0.0
    %4373 = vmatpush1.msra.mxu0 0.0
    %4374 = vmatprep.subr.mxu0 0.0
    %4375 = vmatpush1.msra.mxu0 0.0
    %4376 = vmatprep.subr.mxu0 0.0
    %4377 = vmatpush1.msra.mxu0 0.0
    %4378 = vmatprep.mubr.f32.mxu0 0.0
    %4379 = vmatmul.mubr.f32.gmra.mrb[0].mxu0 %v4309
    %v4380 = vpop.f32.mrb[0].mxu0
    %v4381 = vadd.f32 0.0, %v4380
    %v4382 = vpop.f32.mrb[0].mxu0
    %v4383 = vadd.f32 0.0, %v4382
    %4384 = vmatprep.mubr.f32.mxu0 0.0
    %4385 = vmatmul.mubr.f32.gmra.mrb[0].mxu0 %v4312
    %v4386 = vpop.f32.mrb[0].mxu0
    %v4387 = vadd.f32 0.0, %v4386
    %v4388 = vpop.f32.mrb[0].mxu0
    %v4389 = vadd.f32 0.0, %v4388
    %4390 = vdwg.mxu0
    %s4391 = scalar_lea.vmem %s14, 160
    %v4392 = vld [vmem:[%s4391] sm:$0xff]
    %v4393 = vld [vmem:[%s4391 + $0x8] sm:$0xff]
    %v4394 = vld [vmem:[%s4391 + $0x10] sm:$0xff]
    %v4395 = vld [vmem:[%s4391 + $0x18] sm:$0xff]
    %v4396 = vld [vmem:[%s4391 + $0x20] sm:$0xff]
    %v4397 = vld [vmem:[%s4391 + $0x28] sm:$0xff]
    %v4398 = vld [vmem:[%s4391 + $0x30] sm:$0xff]
    %v4399 = vld [vmem:[%s4391 + $0x38] sm:$0xff]
    %v4400 = vld [vmem:[%s4391 + $0x40] sm:$0xff]
    %v4401 = vld [vmem:[%s4391 + $0x48] sm:$0xff]
    %v4402 = vld [vmem:[%s4391 + $0x50] sm:$0xff]
    %v4403 = vld [vmem:[%s4391 + $0x58] sm:$0xff]
    %v4404 = vld [vmem:[%s4391 + $0x60] sm:$0xff]
    %v4405 = vld [vmem:[%s4391 + $0x68] sm:$0xff]
    %v4406 = vld [vmem:[%s4391 + $0x70] sm:$0xff]
    %v4407 = vld [vmem:[%s4391 + $0x78] sm:$0xff]
    %v4408 = vld [vmem:[%s4391 + $0x80] sm:$0xff]
    %v4409 = vld [vmem:[%s4391 + $0x88] sm:$0xff]
    %v4410 = vld [vmem:[%s4391 + $0x90] sm:$0xff]
    %v4411 = vld [vmem:[%s4391 + $0x98] sm:$0xff]
    %v4413 = vsel %vm389, %v4383, 0
    %v4416 = vsel %vm389, %v4389, 0
    %4418 = vmatprep.subr.mxu0 0.0
    %4419 = vmatpush1.msra.mxu0 %v4392
    %4420 = vmatprep.subr.mxu0 0.0
    %4421 = vmatpush1.msra.mxu0 %v4393
    %4422 = vmatprep.subr.mxu0 0.0
    %4423 = vmatpush1.msra.mxu0 %v4394
    %4424 = vmatprep.subr.mxu0 0.0
    %4425 = vmatpush1.msra.mxu0 %v4395
    %4426 = vmatprep.subr.mxu0 0.0
    %4427 = vmatpush1.msra.mxu0 %v4396
    %4428 = vmatprep.subr.mxu0 0.0
    %4429 = vmatpush1.msra.mxu0 %v4397
    %4430 = vmatprep.subr.mxu0 0.0
    %4431 = vmatpush1.msra.mxu0 %v4398
    %4432 = vmatprep.subr.mxu0 0.0
    %4433 = vmatpush1.msra.mxu0 %v4399
    %4434 = vmatprep.subr.mxu0 0.0
    %4435 = vmatpush1.msra.mxu0 %v4400
    %4436 = vmatprep.subr.mxu0 0.0
    %4437 = vmatpush1.msra.mxu0 %v4401
    %4438 = vmatprep.subr.mxu0 0.0
    %4439 = vmatpush1.msra.mxu0 %v4402
    %4440 = vmatprep.subr.mxu0 0.0
    %4441 = vmatpush1.msra.mxu0 %v4403
    %4442 = vmatprep.subr.mxu0 0.0
    %4443 = vmatpush1.msra.mxu0 %v4404
    %4444 = vmatprep.subr.mxu0 0.0
    %4445 = vmatpush1.msra.mxu0 %v4405
    %4446 = vmatprep.subr.mxu0 0.0
    %4447 = vmatpush1.msra.mxu0 %v4406
    %4448 = vmatprep.subr.mxu0 0.0
    %4449 = vmatpush1.msra.mxu0 %v4407
    %4450 = vmatprep.subr.mxu0 0.0
    %4451 = vmatpush1.msra.mxu0 %v4408
    %4452 = vmatprep.subr.mxu0 0.0
    %4453 = vmatpush1.msra.mxu0 %v4409
    %4454 = vmatprep.subr.mxu0 0.0
    %4455 = vmatpush1.msra.mxu0 %v4410
    %4456 = vmatprep.subr.mxu0 0.0
    %4457 = vmatpush1.msra.mxu0 %v4411
    %4458 = vmatprep.subr.mxu0 0.0
    %4459 = vmatpush1.msra.mxu0 0.0
    %4460 = vmatprep.subr.mxu0 0.0
    %4461 = vmatpush1.msra.mxu0 0.0
    %4462 = vmatprep.subr.mxu0 0.0
    %4463 = vmatpush1.msra.mxu0 0.0
    %4464 = vmatprep.subr.mxu0 0.0
    %4465 = vmatpush1.msra.mxu0 0.0
    %4466 = vmatprep.subr.mxu0 0.0
    %4467 = vmatpush1.msra.mxu0 0.0
    %4468 = vmatprep.subr.mxu0 0.0
    %4469 = vmatpush1.msra.mxu0 0.0
    %4470 = vmatprep.subr.mxu0 0.0
    %4471 = vmatpush1.msra.mxu0 0.0
    %4472 = vmatprep.subr.mxu0 0.0
    %4473 = vmatpush1.msra.mxu0 0.0
    %4474 = vmatprep.subr.mxu0 0.0
    %4475 = vmatpush1.msra.mxu0 0.0
    %4476 = vmatprep.subr.mxu0 0.0
    %4477 = vmatpush1.msra.mxu0 0.0
    %4478 = vmatprep.subr.mxu0 0.0
    %4479 = vmatpush1.msra.mxu0 0.0
    %4480 = vmatprep.subr.mxu0 0.0
    %4481 = vmatpush1.msra.mxu0 0.0
    %4482 = vmatprep.mubr.f32.mxu0 %v4413
    %4483 = vmatmul.mubr.f32.gmra.mrb[0].mxu0 %v4381
    %v4484 = vpop.f32.mrb[0].mxu0
    %v4485 = vadd.f32 0.0, %v4484
    %v4486 = vpop.f32.mrb[0].mxu0
    %4487 = vmatprep.mubr.f32.mxu0 %v4416
    %4488 = vmatmul.mubr.f32.gmra.mrb[0].mxu0 %v4387
    %v4489 = vpop.f32.mrb[0].mxu0
    %v4490 = vadd.f32 0.0, %v4489
    %v4491 = vpop.f32.mrb[0].mxu0
    %4492 = vdwg.mxu0
    %v4493 = vadd.f32 %v4303, %v4485
    %v4494 = vadd.f32 %v4304, %v4490
    %s4495 = scalar_lea.vmem [#allocation22], 32
    %v4496 = vld [vmem:[%s4495] sm:$0xff]
    %v4497 = vld [vmem:[%s4495 + $0x8] sm:$0xf]
    %v4499 = vsel %vm3240, %v4496, 0
    %v4502 = vsel %vm3240, %v4497, 0
    %4504 = vmatprep.subr.mxu0 %v4104
    %4505 = vmatpush1.msra.mxu0 %v4103
    %4506 = vmatprep.subr.mxu0 %v4106
    %4507 = vmatpush1.msra.mxu0 %v4105
    %4508 = vmatprep.subr.mxu0 %v4123
    %4509 = vmatpush1.msra.mxu0 %v4120
    %4510 = vmatprep.subr.mxu0 0.0
    %4511 = vmatpush1.msra.mxu0 0.0
    %4512 = vmatprep.subr.mxu0 0.0
    %4513 = vmatpush1.msra.mxu0 0.0
    %4514 = vmatprep.subr.mxu0 0.0
    %4515 = vmatpush1.msra.mxu0 0.0
    %4516 = vmatprep.subr.mxu0 0.0
    %4517 = vmatpush1.msra.mxu0 0.0
    %4518 = vmatprep.subr.mxu0 0.0
    %4519 = vmatpush1.msra.mxu0 0.0
    %4520 = vmatprep.subr.mxu0 0.0
    %4521 = vmatpush1.msra.mxu0 0.0
    %4522 = vmatprep.subr.mxu0 0.0
    %4523 = vmatpush1.msra.mxu0 0.0
    %4524 = vmatprep.subr.mxu0 0.0
    %4525 = vmatpush1.msra.mxu0 0.0
    %4526 = vmatprep.subr.mxu0 0.0
    %4527 = vmatpush1.msra.mxu0 0.0
    %4528 = vmatprep.subr.mxu0 0.0
    %4529 = vmatpush1.msra.mxu0 0.0
    %4530 = vmatprep.subr.mxu0 0.0
    %4531 = vmatpush1.msra.mxu0 0.0
    %4532 = vmatprep.subr.mxu0 0.0
    %4533 = vmatpush1.msra.mxu0 0.0
    %4534 = vmatprep.subr.mxu0 0.0
    %4535 = vmatpush1.msra.mxu0 0.0
    %4536 = vmatprep.subr.mxu0 0.0
    %4537 = vmatpush1.msra.mxu0 0.0
    %4538 = vmatprep.subr.mxu0 0.0
    %4539 = vmatpush1.msra.mxu0 0.0
    %4540 = vmatprep.subr.mxu0 0.0
    %4541 = vmatpush1.msra.mxu0 0.0
    %4542 = vmatprep.subr.mxu0 0.0
    %4543 = vmatpush1.msra.mxu0 0.0
    %4544 = vmatprep.subr.mxu0 0.0
    %4545 = vmatpush1.msra.mxu0 0.0
    %4546 = vmatprep.subr.mxu0 0.0
    %4547 = vmatpush1.msra.mxu0 0.0
    %4548 = vmatprep.subr.mxu0 0.0
    %4549 = vmatpush1.msra.mxu0 0.0
    %4550 = vmatprep.subr.mxu0 0.0
    %4551 = vmatpush1.msra.mxu0 0.0
    %4552 = vmatprep.subr.mxu0 0.0
    %4553 = vmatpush1.msra.mxu0 0.0
    %4554 = vmatprep.subr.mxu0 0.0
    %4555 = vmatpush1.msra.mxu0 0.0
    %4556 = vmatprep.subr.mxu0 0.0
    %4557 = vmatpush1.msra.mxu0 0.0
    %4558 = vmatprep.subr.mxu0 0.0
    %4559 = vmatpush1.msra.mxu0 0.0
    %4560 = vmatprep.subr.mxu0 0.0
    %4561 = vmatpush1.msra.mxu0 0.0
    %4562 = vmatprep.subr.mxu0 0.0
    %4563 = vmatpush1.msra.mxu0 0.0
    %4564 = vmatprep.subr.mxu0 0.0
    %4565 = vmatpush1.msra.mxu0 0.0
    %4566 = vmatprep.subr.mxu0 0.0
    %4567 = vmatpush1.msra.mxu0 0.0
    %4568 = vmatprep.mubr.f32.mxu0 0.0
    %4569 = vmatmul.mubr.f32.gmra.mrb[0].mxu0 %v4499
    %v4570 = vpop.f32.mrb[0].mxu0
    %v4571 = vadd.f32 0.0, %v4570
    %v4572 = vpop.f32.mrb[0].mxu0
    %v4573 = vadd.f32 0.0, %v4572
    %4574 = vmatprep.mubr.f32.mxu0 0.0
    %4575 = vmatmul.mubr.f32.gmra.mrb[0].mxu0 %v4502
    %v4576 = vpop.f32.mrb[0].mxu0
    %v4577 = vadd.f32 0.0, %v4576
    %v4578 = vpop.f32.mrb[0].mxu0
    %v4579 = vadd.f32 0.0, %v4578
    %4580 = vdwg.mxu0
    %s4581 = scalar_lea.vmem %s14, 320
    %v4582 = vld [vmem:[%s4581] sm:$0xff]
    %v4583 = vld [vmem:[%s4581 + $0x8] sm:$0xff]
    %v4584 = vld [vmem:[%s4581 + $0x10] sm:$0xff]
    %v4585 = vld [vmem:[%s4581 + $0x18] sm:$0xff]
    %v4586 = vld [vmem:[%s4581 + $0x20] sm:$0xff]
    %v4587 = vld [vmem:[%s4581 + $0x28] sm:$0xff]
    %v4588 = vld [vmem:[%s4581 + $0x30] sm:$0xff]
    %v4589 = vld [vmem:[%s4581 + $0x38] sm:$0xff]
    %v4590 = vld [vmem:[%s4581 + $0x40] sm:$0xff]
    %v4591 = vld [vmem:[%s4581 + $0x48] sm:$0xff]
    %v4592 = vld [vmem:[%s4581 + $0x50] sm:$0xff]
    %v4593 = vld [vmem:[%s4581 + $0x58] sm:$0xff]
    %v4594 = vld [vmem:[%s4581 + $0x60] sm:$0xff]
    %v4595 = vld [vmem:[%s4581 + $0x68] sm:$0xff]
    %v4596 = vld [vmem:[%s4581 + $0x70] sm:$0xff]
    %v4597 = vld [vmem:[%s4581 + $0x78] sm:$0xff]
    %v4598 = vld [vmem:[%s4581 + $0x80] sm:$0xff]
    %v4599 = vld [vmem:[%s4581 + $0x88] sm:$0xff]
    %v4600 = vld [vmem:[%s4581 + $0x90] sm:$0xff]
    %v4601 = vld [vmem:[%s4581 + $0x98] sm:$0xff]
    %v4603 = vsel %vm389, %v4573, 0
    %v4606 = vsel %vm389, %v4579, 0
    %4608 = vmatprep.subr.mxu0 0.0
    %4609 = vmatpush1.msra.mxu0 %v4582
    %4610 = vmatprep.subr.mxu0 0.0
    %4611 = vmatpush1.msra.mxu0 %v4583
    %4612 = vmatprep.subr.mxu0 0.0
    %4613 = vmatpush1.msra.mxu0 %v4584
    %4614 = vmatprep.subr.mxu0 0.0
    %4615 = vmatpush1.msra.mxu0 %v4585
    %4616 = vmatprep.subr.mxu0 0.0
    %4617 = vmatpush1.msra.mxu0 %v4586
    %4618 = vmatprep.subr.mxu0 0.0
    %4619 = vmatpush1.msra.mxu0 %v4587
    %4620 = vmatprep.subr.mxu0 0.0
    %4621 = vmatpush1.msra.mxu0 %v4588
    %4622 = vmatprep.subr.mxu0 0.0
    %4623 = vmatpush1.msra.mxu0 %v4589
    %4624 = vmatprep.subr.mxu0 0.0
    %4625 = vmatpush1.msra.mxu0 %v4590
    %4626 = vmatprep.subr.mxu0 0.0
    %4627 = vmatpush1.msra.mxu0 %v4591
    %4628 = vmatprep.subr.mxu0 0.0
    %4629 = vmatpush1.msra.mxu0 %v4592
    %4630 = vmatprep.subr.mxu0 0.0
    %4631 = vmatpush1.msra.mxu0 %v4593
    %4632 = vmatprep.subr.mxu0 0.0
    %4633 = vmatpush1.msra.mxu0 %v4594
    %4634 = vmatprep.subr.mxu0 0.0
    %4635 = vmatpush1.msra.mxu0 %v4595
    %4636 = vmatprep.subr.mxu0 0.0
    %4637 = vmatpush1.msra.mxu0 %v4596
    %4638 = vmatprep.subr.mxu0 0.0
    %4639 = vmatpush1.msra.mxu0 %v4597
    %4640 = vmatprep.subr.mxu0 0.0
    %4641 = vmatpush1.msra.mxu0 %v4598
    %4642 = vmatprep.subr.mxu0 0.0
    %4643 = vmatpush1.msra.mxu0 %v4599
    %4644 = vmatprep.subr.mxu0 0.0
    %4645 = vmatpush1.msra.mxu0 %v4600
    %4646 = vmatprep.subr.mxu0 0.0
    %4647 = vmatpush1.msra.mxu0 %v4601
    %4648 = vmatprep.subr.mxu0 0.0
    %4649 = vmatpush1.msra.mxu0 0.0
    %4650 = vmatprep.subr.mxu0 0.0
    %4651 = vmatpush1.msra.mxu0 0.0
    %4652 = vmatprep.subr.mxu0 0.0
    %4653 = vmatpush1.msra.mxu0 0.0
    %4654 = vmatprep.subr.mxu0 0.0
    %4655 = vmatpush1.msra.mxu0 0.0
    %4656 = vmatprep.subr.mxu0 0.0
    %4657 = vmatpush1.msra.mxu0 0.0
    %4658 = vmatprep.subr.mxu0 0.0
    %4659 = vmatpush1.msra.mxu0 0.0
    %4660 = vmatprep.subr.mxu0 0.0
    %4661 = vmatpush1.msra.mxu0 0.0
    %4662 = vmatprep.subr.mxu0 0.0
    %4663 = vmatpush1.msra.mxu0 0.0
    %4664 = vmatprep.subr.mxu0 0.0
    %4665 = vmatpush1.msra.mxu0 0.0
    %4666 = vmatprep.subr.mxu0 0.0
    %4667 = vmatpush1.msra.mxu0 0.0
    %4668 = vmatprep.subr.mxu0 0.0
    %4669 = vmatpush1.msra.mxu0 0.0
    %4670 = vmatprep.subr.mxu0 0.0
    %4671 = vmatpush1.msra.mxu0 0.0
    %4672 = vmatprep.mubr.f32.mxu0 %v4603
    %4673 = vmatmul.mubr.f32.gmra.mrb[0].mxu0 %v4571
    %v4674 = vpop.f32.mrb[0].mxu0
    %v4675 = vadd.f32 0.0, %v4674
    %v4676 = vpop.f32.mrb[0].mxu0
    %4677 = vmatprep.mubr.f32.mxu0 %v4606
    %4678 = vmatmul.mubr.f32.gmra.mrb[0].mxu0 %v4577
    %v4679 = vpop.f32.mrb[0].mxu0
    %v4680 = vadd.f32 0.0, %v4679
    %v4681 = vpop.f32.mrb[0].mxu0
    %4682 = vdwg.mxu0
    %v4683 = vadd.f32 %v4493, %v4675
    %v4684 = vadd.f32 %v4494, %v4680
    %v4685 = vmul.f32 %v4683, 0.5
    %v4686 = vmul.f32 %v4684, 0.5
    %v4687 = vmul.f32 %v4683, 0.70710677
    %v4688 = vmul.f32 %v4684, 0.70710677
    %v4689 = vand.u32 2147483647, %v4687
    %v4690 = vand.u32 2147483647, %v4688
    %v4691 = vmul.f32 %v4689, 0.3275911
    %v4692 = vmul.f32 %v4690, 0.3275911
    %v4693 = vadd.f32 %v4691, 1.0
    %v4694 = vadd.f32 %v4692, 1.0
    %v4695 = vrcp.pop %v4693
    %v4696 = vmul.f32 1.0, %v4695
    %v4697 = vrcp.pop %v4694
    %v4698 = vmul.f32 1.0, %v4697
    %v4699 = vmul.f32 %v4696, 1.0614054
    %v4700 = vmul.f32 %v4698, 1.0614054
    %v4701 = vadd.f32 %v4699, -1.4531521
    %v4702 = vadd.f32 %v4700, -1.4531521
    %v4703 = vmul.f32 %v4701, %v4696
    %v4704 = vmul.f32 %v4702, %v4698
    %v4705 = vadd.f32 %v4703, 1.4214138
    %v4706 = vadd.f32 %v4704, 1.4214138
    %v4707 = vmul.f32 %v4705, %v4696
    %v4708 = vmul.f32 %v4706, %v4698
    %v4709 = vadd.f32 %v4707, -0.28449672
    %v4710 = vadd.f32 %v4708, -0.28449672
    %v4711 = vmul.f32 %v4709, %v4696
    %v4712 = vmul.f32 %v4710, %v4698
    %v4713 = vadd.f32 %v4711, 0.2548296
    %v4714 = vadd.f32 %v4712, 0.2548296
    %v4715 = vmul.f32 %v4713, %v4696
    %v4716 = vmul.f32 %v4714, %v4698
    %v4717 = vsub.f32 0.0, %v4689
    %v4718 = vsub.f32 0.0, %v4690
    %v4719 = vmul.f32 %v4717, %v4689
    %v4720 = vmul.f32 %v4718, %v4690
    %v4721 = vmul.f32 %v4719, 1.442695
    %v4722 = vpow.pop %v4721
    %v4723 = vmul.f32 %v4720, 1.442695
    %v4724 = vpow.pop %v4723
    %v4725 = vmul.f32 %v4715, %v4722
    %v4726 = vmul.f32 %v4716, %v4724
    %v4727 = vsub.f32 1.0, %v4725
    %v4728 = vsub.f32 1.0, %v4726
    %vm4729 = vcmp.ge.f32.partialorder %v4687, 0.0
    %vm4730 = vcmp.ge.f32.partialorder %v4688, 0.0
    %v4731 = vsub.f32 0.0, %v4727
    %v4732 = vsub.f32 0.0, %v4728
    %v4733 = vsel %vm4729, %v4727, %v4731
    %v4734 = vsel %vm4730, %v4728, %v4732
    %v4735 = vadd.f32 %v4733, 1.0
    %v4736 = vadd.f32 %v4734, 1.0
    %v4737 = vmul.f32 %v4685, %v4735
    %v4738 = vmul.f32 %v4686, %v4736
    %v4739 = vld [vmem:[%s18] sm:$0x1]
    %v4741 = vlaneseq
    %v4742 = vshrl.u32 %v4741, 7
    %v4743 = vsub.s32 0, %v4742
    %v4744 = vrot.slane %v4739, %v4743
    %v4746 = vadd.f32 %v4744, 0.0
    %v4747 = vld [vmem:[%s16] sm:$0x3]
    %vm4748 = vcmask 97280
    %v4750 = vsel %vm4748, %v4747, 0
    %v4753 = vsel %vm1291, %v4738, 0
    %4755 = vmatprep.subr.mxu0 0.0
    %4756 = vmatpush1.msra.mxu0 %v4737
    %4757 = vmatprep.subr.mxu0 0.0
    %4758 = vmatpush1.msra.mxu0 %v4753
    %4759 = vmatprep.subr.mxu0 0.0
    %4760 = vmatpush1.msra.mxu0 0.0
    %4761 = vmatprep.subr.mxu0 0.0
    %4762 = vmatpush1.msra.mxu0 0.0
    %4763 = vmatprep.subr.mxu0 0.0
    %4764 = vmatpush1.msra.mxu0 0.0
    %4765 = vmatprep.subr.mxu0 0.0
    %4766 = vmatpush1.msra.mxu0 0.0
    %4767 = vmatprep.subr.mxu0 0.0
    %4768 = vmatpush1.msra.mxu0 0.0
    %4769 = vmatprep.subr.mxu0 0.0
    %4770 = vmatpush1.msra.mxu0 0.0
    %4771 = vmatprep.subr.mxu0 0.0
    %4772 = vmatpush1.msra.mxu0 0.0
    %4773 = vmatprep.subr.mxu0 0.0
    %4774 = vmatpush1.msra.mxu0 0.0
    %4775 = vmatprep.subr.mxu0 0.0
    %4776 = vmatpush1.msra.mxu0 0.0
    %4777 = vmatprep.subr.mxu0 0.0
    %4778 = vmatpush1.msra.mxu0 0.0
    %4779 = vmatprep.subr.mxu0 0.0
    %4780 = vmatpush1.msra.mxu0 0.0
    %4781 = vmatprep.subr.mxu0 0.0
    %4782 = vmatpush1.msra.mxu0 0.0
    %4783 = vmatprep.subr.mxu0 0.0
    %4784 = vmatpush1.msra.mxu0 0.0
    %4785 = vmatprep.subr.mxu0 0.0
    %4786 = vmatpush1.msra.mxu0 0.0
    %4787 = vmatprep.subr.mxu0 0.0
    %4788 = vmatpush1.msra.mxu0 0.0
    %4789 = vmatprep.subr.mxu0 0.0
    %4790 = vmatpush1.msra.mxu0 0.0
    %4791 = vmatprep.subr.mxu0 0.0
    %4792 = vmatpush1.msra.mxu0 0.0
    %4793 = vmatprep.subr.mxu0 0.0
    %4794 = vmatpush1.msra.mxu0 0.0
    %4795 = vmatprep.subr.mxu0 0.0
    %4796 = vmatpush1.msra.mxu0 0.0
    %4797 = vmatprep.subr.mxu0 0.0
    %4798 = vmatpush1.msra.mxu0 0.0
    %4799 = vmatprep.subr.mxu0 0.0
    %4800 = vmatpush1.msra.mxu0 0.0
    %4801 = vmatprep.subr.mxu0 0.0
    %4802 = vmatpush1.msra.mxu0 0.0
    %4803 = vmatprep.subr.mxu0 0.0
    %4804 = vmatpush1.msra.mxu0 0.0
    %4805 = vmatprep.subr.mxu0 0.0
    %4806 = vmatpush1.msra.mxu0 0.0
    %4807 = vmatprep.subr.mxu0 0.0
    %4808 = vmatpush1.msra.mxu0 0.0
    %4809 = vmatprep.subr.mxu0 0.0
    %4810 = vmatpush1.msra.mxu0 0.0
    %4811 = vmatprep.subr.mxu0 0.0
    %4812 = vmatpush1.msra.mxu0 0.0
    %4813 = vmatprep.subr.mxu0 0.0
    %4814 = vmatpush1.msra.mxu0 0.0
    %4815 = vmatprep.subr.mxu0 0.0
    %4816 = vmatpush1.msra.mxu0 0.0
    %4817 = vmatprep.subr.mxu0 0.0
    %4818 = vmatpush1.msra.mxu0 0.0
    %4819 = vmatprep.mubr.f32.mxu0 0.0
    %4820 = vmatmul.mubr.f32.gmra.mrb[0].mxu0 %v4750
    %v4821 = vpop.f32.mrb[0].mxu0
    %v4822 = vadd.f32 0.0, %v4821
    %v4823 = vpop.f32.mrb[0].mxu0
    %4824 = vdwg.mxu0
    %v4825 = vld [vmem:[%s17] sm:$0xff]
    %v4826 = vld [vmem:[%s17 + $0x8] sm:$0xff]
    %v4827 = vld [vmem:[%s17 + $0x10] sm:$0xff]
    %v4828 = vld [vmem:[%s17 + $0x18] sm:$0xff]
    %v4829 = vld [vmem:[%s17 + $0x20] sm:$0xff]
    %v4830 = vld [vmem:[%s17 + $0x28] sm:$0xff]
    %v4831 = vld [vmem:[%s17 + $0x30] sm:$0xff]
    %v4832 = vld [vmem:[%s17 + $0x38] sm:$0xff]
    %v4833 = vld [vmem:[%s17 + $0x40] sm:$0xff]
    %v4834 = vld [vmem:[%s17 + $0x48] sm:$0xff]
    %v4835 = vld [vmem:[%s17 + $0x50] sm:$0xff]
    %v4836 = vld [vmem:[%s17 + $0x58] sm:$0xff]
    %vm4837 = vcmask 785408
    %v4839 = vsel %vm4837, %v4822, 0
    %4841 = vmatprep.subr.mxu0 0.0
    %4842 = vmatpush1.msra.mxu0 %v4825
    %4843 = vmatprep.subr.mxu0 0.0
    %4844 = vmatpush1.msra.mxu0 %v4826
    %4845 = vmatprep.subr.mxu0 0.0
    %4846 = vmatpush1.msra.mxu0 %v4827
    %4847 = vmatprep.subr.mxu0 0.0
    %4848 = vmatpush1.msra.mxu0 %v4828
    %4849 = vmatprep.subr.mxu0 0.0
    %4850 = vmatpush1.msra.mxu0 %v4829
    %4851 = vmatprep.subr.mxu0 0.0
    %4852 = vmatpush1.msra.mxu0 %v4830
    %4853 = vmatprep.subr.mxu0 0.0
    %4854 = vmatpush1.msra.mxu0 %v4831
    %4855 = vmatprep.subr.mxu0 0.0
    %4856 = vmatpush1.msra.mxu0 %v4832
    %4857 = vmatprep.subr.mxu0 0.0
    %4858 = vmatpush1.msra.mxu0 %v4833
    %4859 = vmatprep.subr.mxu0 0.0
    %4860 = vmatpush1.msra.mxu0 %v4834
    %4861 = vmatprep.subr.mxu0 0.0
    %4862 = vmatpush1.msra.mxu0 %v4835
    %4863 = vmatprep.subr.mxu0 0.0
    %4864 = vmatpush1.msra.mxu0 %v4836
    %4865 = vmatprep.subr.mxu0 0.0
    %4866 = vmatpush1.msra.mxu0 0.0
    %4867 = vmatprep.subr.mxu0 0.0
    %4868 = vmatpush1.msra.mxu0 0.0
    %4869 = vmatprep.subr.mxu0 0.0
    %4870 = vmatpush1.msra.mxu0 0.0
    %4871 = vmatprep.subr.mxu0 0.0
    %4872 = vmatpush1.msra.mxu0 0.0
    %4873 = vmatprep.subr.mxu0 0.0
    %4874 = vmatpush1.msra.mxu0 0.0
    %4875 = vmatprep.subr.mxu0 0.0
    %4876 = vmatpush1.msra.mxu0 0.0
    %4877 = vmatprep.subr.mxu0 0.0
    %4878 = vmatpush1.msra.mxu0 0.0
    %4879 = vmatprep.subr.mxu0 0.0
    %4880 = vmatpush1.msra.mxu0 0.0
    %4881 = vmatprep.subr.mxu0 0.0
    %4882 = vmatpush1.msra.mxu0 0.0
    %4883 = vmatprep.subr.mxu0 0.0
    %4884 = vmatpush1.msra.mxu0 0.0
    %4885 = vmatprep.subr.mxu0 0.0
    %4886 = vmatpush1.msra.mxu0 0.0
    %4887 = vmatprep.subr.mxu0 0.0
    %4888 = vmatpush1.msra.mxu0 0.0
    %4889 = vmatprep.subr.mxu0 0.0
    %4890 = vmatpush1.msra.mxu0 0.0
    %4891 = vmatprep.subr.mxu0 0.0
    %4892 = vmatpush1.msra.mxu0 0.0
    %4893 = vmatprep.subr.mxu0 0.0
    %4894 = vmatpush1.msra.mxu0 0.0
    %4895 = vmatprep.subr.mxu0 0.0
    %4896 = vmatpush1.msra.mxu0 0.0
    %4897 = vmatprep.subr.mxu0 0.0
    %4898 = vmatpush1.msra.mxu0 0.0
    %4899 = vmatprep.subr.mxu0 0.0
    %4900 = vmatpush1.msra.mxu0 0.0
    %4901 = vmatprep.subr.mxu0 0.0
    %4902 = vmatpush1.msra.mxu0 0.0
    %4903 = vmatprep.subr.mxu0 0.0
    %4904 = vmatpush1.msra.mxu0 0.0
    %4905 = vmatprep.mubr.f32.mxu0 0.0
    %4906 = vmatmul.mubr.f32.gmra.mrb[0].mxu0 %v4839
    %v4907 = vpop.f32.mrb[0].mxu0
    %v4908 = vadd.f32 0.0, %v4907
    %v4909 = vpop.f32.mrb[0].mxu0
    %4910 = vdwg.mxu0
    %v4911 = vadd.f32 %v4746, %v4908
    %s4912 = scalar_lea.vmem %s16, 2
    %v4913 = vld [vmem:[%s4912] sm:$0x3]
    %v4915 = vsel %vm4748, %v4913, 0
    %4917 = vmatprep.subr.mxu0 0.0
    %4918 = vmatpush1.msra.mxu0 %v4737
    %4919 = vmatprep.subr.mxu0 0.0
    %4920 = vmatpush1.msra.mxu0 %v4753
    %4921 = vmatprep.subr.mxu0 0.0
    %4922 = vmatpush1.msra.mxu0 0.0
    %4923 = vmatprep.subr.mxu0 0.0
    %4924 = vmatpush1.msra.mxu0 0.0
    %4925 = vmatprep.subr.mxu0 0.0
    %4926 = vmatpush1.msra.mxu0 0.0
    %4927 = vmatprep.subr.mxu0 0.0
    %4928 = vmatpush1.msra.mxu0 0.0
    %4929 = vmatprep.subr.mxu0 0.0
    %4930 = vmatpush1.msra.mxu0 0.0
    %4931 = vmatprep.subr.mxu0 0.0
    %4932 = vmatpush1.msra.mxu0 0.0
    %4933 = vmatprep.subr.mxu0 0.0
    %4934 = vmatpush1.msra.mxu0 0.0
    %4935 = vmatprep.subr.mxu0 0.0
    %4936 = vmatpush1.msra.mxu0 0.0
    %4937 = vmatprep.subr.mxu0 0.0
    %4938 = vmatpush1.msra.mxu0 0.0
    %4939 = vmatprep.subr.mxu0 0.0
    %4940 = vmatpush1.msra.mxu0 0.0
    %4941 = vmatprep.subr.mxu0 0.0
    %4942 = vmatpush1.msra.mxu0 0.0
    %4943 = vmatprep.subr.mxu0 0.0
    %4944 = vmatpush1.msra.mxu0 0.0
    %4945 = vmatprep.subr.mxu0 0.0
    %4946 = vmatpush1.msra.mxu0 0.0
    %4947 = vmatprep.subr.mxu0 0.0
    %4948 = vmatpush1.msra.mxu0 0.0
    %4949 = vmatprep.subr.mxu0 0.0
    %4950 = vmatpush1.msra.mxu0 0.0
    %4951 = vmatprep.subr.mxu0 0.0
    %4952 = vmatpush1.msra.mxu0 0.0
    %4953 = vmatprep.subr.mxu0 0.0
    %4954 = vmatpush1.msra.mxu0 0.0
    %4955 = vmatprep.subr.mxu0 0.0
    %4956 = vmatpush1.msra.mxu0 0.0
    %4957 = vmatprep.subr.mxu0 0.0
    %4958 = vmatpush1.msra.mxu0 0.0
    %4959 = vmatprep.subr.mxu0 0.0
    %4960 = vmatpush1.msra.mxu0 0.0
    %4961 = vmatprep.subr.mxu0 0.0
    %4962 = vmatpush1.msra.mxu0 0.0
    %4963 = vmatprep.subr.mxu0 0.0
    %4964 = vmatpush1.msra.mxu0 0.0
    %4965 = vmatprep.subr.mxu0 0.0
    %4966 = vmatpush1.msra.mxu0 0.0
    %4967 = vmatprep.subr.mxu0 0.0
    %4968 = vmatpush1.msra.mxu0 0.0
    %4969 = vmatprep.subr.mxu0 0.0
    %4970 = vmatpush1.msra.mxu0 0.0
    %4971 = vmatprep.subr.mxu0 0.0
    %4972 = vmatpush1.msra.mxu0 0.0
    %4973 = vmatprep.subr.mxu0 0.0
    %4974 = vmatpush1.msra.mxu0 0.0
    %4975 = vmatprep.subr.mxu0 0.0
    %4976 = vmatpush1.msra.mxu0 0.0
    %4977 = vmatprep.subr.mxu0 0.0
    %4978 = vmatpush1.msra.mxu0 0.0
    %4979 = vmatprep.subr.mxu0 0.0
    %4980 = vmatpush1.msra.mxu0 0.0
    %4981 = vmatprep.mubr.f32.mxu0 0.0
    %4982 = vmatmul.mubr.f32.gmra.mrb[0].mxu0 %v4915
    %v4983 = vpop.f32.mrb[0].mxu0
    %v4984 = vadd.f32 0.0, %v4983
    %v4985 = vpop.f32.mrb[0].mxu0
    %4986 = vdwg.mxu0
    %s4987 = scalar_lea.vmem %s17, 96
    %v4988 = vld [vmem:[%s4987] sm:$0xff]
    %v4989 = vld [vmem:[%s4987 + $0x8] sm:$0xff]
    %v4990 = vld [vmem:[%s4987 + $0x10] sm:$0xff]
    %v4991 = vld [vmem:[%s4987 + $0x18] sm:$0xff]
    %v4992 = vld [vmem:[%s4987 + $0x20] sm:$0xff]
    %v4993 = vld [vmem:[%s4987 + $0x28] sm:$0xff]
    %v4994 = vld [vmem:[%s4987 + $0x30] sm:$0xff]
    %v4995 = vld [vmem:[%s4987 + $0x38] sm:$0xff]
    %v4996 = vld [vmem:[%s4987 + $0x40] sm:$0xff]
    %v4997 = vld [vmem:[%s4987 + $0x48] sm:$0xff]
    %v4998 = vld [vmem:[%s4987 + $0x50] sm:$0xff]
    %v4999 = vld [vmem:[%s4987 + $0x58] sm:$0xff]
    %v5001 = vsel %vm4837, %v4984, 0
    %5003 = vmatprep.subr.mxu0 0.0
    %5004 = vmatpush1.msra.mxu0 %v4988
    %5005 = vmatprep.subr.mxu0 0.0
    %5006 = vmatpush1.msra.mxu0 %v4989
    %5007 = vmatprep.subr.mxu0 0.0
    %5008 = vmatpush1.msra.mxu0 %v4990
    %5009 = vmatprep.subr.mxu0 0.0
    %5010 = vmatpush1.msra.mxu0 %v4991
    %5011 = vmatprep.subr.mxu0 0.0
    %5012 = vmatpush1.msra.mxu0 %v4992
    %5013 = vmatprep.subr.mxu0 0.0
    %5014 = vmatpush1.msra.mxu0 %v4993
    %5015 = vmatprep.subr.mxu0 0.0
    %5016 = vmatpush1.msra.mxu0 %v4994
    %5017 = vmatprep.subr.mxu0 0.0
    %5018 = vmatpush1.msra.mxu0 %v4995
    %5019 = vmatprep.subr.mxu0 0.0
    %5020 = vmatpush1.msra.mxu0 %v4996
    %5021 = vmatprep.subr.mxu0 0.0
    %5022 = vmatpush1.msra.mxu0 %v4997
    %5023 = vmatprep.subr.mxu0 0.0
    %5024 = vmatpush1.msra.mxu0 %v4998
    %5025 = vmatprep.subr.mxu0 0.0
    %5026 = vmatpush1.msra.mxu0 %v4999
    %5027 = vmatprep.subr.mxu0 0.0
    %5028 = vmatpush1.msra.mxu0 0.0
    %5029 = vmatprep.subr.mxu0 0.0
    %5030 = vmatpush1.msra.mxu0 0.0
    %5031 = vmatprep.subr.mxu0 0.0
    %5032 = vmatpush1.msra.mxu0 0.0
    %5033 = vmatprep.subr.mxu0 0.0
    %5034 = vmatpush1.msra.mxu0 0.0
    %5035 = vmatprep.subr.mxu0 0.0
    %5036 = vmatpush1.msra.mxu0 0.0
    %5037 = vmatprep.subr.mxu0 0.0
    %5038 = vmatpush1.msra.mxu0 0.0
    %5039 = vmatprep.subr.mxu0 0.0
    %5040 = vmatpush1.msra.mxu0 0.0
    %5041 = vmatprep.subr.mxu0 0.0
    %5042 = vmatpush1.msra.mxu0 0.0
    %5043 = vmatprep.subr.mxu0 0.0
    %5044 = vmatpush1.msra.mxu0 0.0
    %5045 = vmatprep.subr.mxu0 0.0
    %5046 = vmatpush1.msra.mxu0 0.0
    %5047 = vmatprep.subr.mxu0 0.0
    %5048 = vmatpush1.msra.mxu0 0.0
    %5049 = vmatprep.subr.mxu0 0.0
    %5050 = vmatpush1.msra.mxu0 0.0
    %5051 = vmatprep.subr.mxu0 0.0
    %5052 = vmatpush1.msra.mxu0 0.0
    %5053 = vmatprep.subr.mxu0 0.0
    %5054 = vmatpush1.msra.mxu0 0.0
    %5055 = vmatprep.subr.mxu0 0.0
    %5056 = vmatpush1.msra.mxu0 0.0
    %5057 = vmatprep.subr.mxu0 0.0
    %5058 = vmatpush1.msra.mxu0 0.0
    %5059 = vmatprep.subr.mxu0 0.0
    %5060 = vmatpush1.msra.mxu0 0.0
    %5061 = vmatprep.subr.mxu0 0.0
    %5062 = vmatpush1.msra.mxu0 0.0
    %5063 = vmatprep.subr.mxu0 0.0
    %5064 = vmatpush1.msra.mxu0 0.0
    %5065 = vmatprep.subr.mxu0 0.0
    %5066 = vmatpush1.msra.mxu0 0.0
    %5067 = vmatprep.mubr.f32.mxu0 0.0
    %5068 = vmatmul.mubr.f32.gmra.mrb[0].mxu0 %v5001
    %v5069 = vpop.f32.mrb[0].mxu0
    %v5070 = vadd.f32 0.0, %v5069
    %v5071 = vpop.f32.mrb[0].mxu0
    %5072 = vdwg.mxu0
    %v5073 = vadd.f32 %v4911, %v5070
    %s5074 = scalar_lea.vmem %s16, 4
    %v5075 = vld [vmem:[%s5074] sm:$0x3]
    %v5077 = vsel %vm4748, %v5075, 0
    %5079 = vmatprep.subr.mxu0 0.0
    %5080 = vmatpush1.msra.mxu0 %v4737
    %5081 = vmatprep.subr.mxu0 0.0
    %5082 = vmatpush1.msra.mxu0 %v4753
    %5083 = vmatprep.subr.mxu0 0.0
    %5084 = vmatpush1.msra.mxu0 0.0
    %5085 = vmatprep.subr.mxu0 0.0
    %5086 = vmatpush1.msra.mxu0 0.0
    %5087 = vmatprep.subr.mxu0 0.0
    %5088 = vmatpush1.msra.mxu0 0.0
    %5089 = vmatprep.subr.mxu0 0.0
    %5090 = vmatpush1.msra.mxu0 0.0
    %5091 = vmatprep.subr.mxu0 0.0
    %5092 = vmatpush1.msra.mxu0 0.0
    %5093 = vmatprep.subr.mxu0 0.0
    %5094 = vmatpush1.msra.mxu0 0.0
    %5095 = vmatprep.subr.mxu0 0.0
    %5096 = vmatpush1.msra.mxu0 0.0
    %5097 = vmatprep.subr.mxu0 0.0
    %5098 = vmatpush1.msra.mxu0 0.0
    %5099 = vmatprep.subr.mxu0 0.0
    %5100 = vmatpush1.msra.mxu0 0.0
    %5101 = vmatprep.subr.mxu0 0.0
    %5102 = vmatpush1.msra.mxu0 0.0
    %5103 = vmatprep.subr.mxu0 0.0
    %5104 = vmatpush1.msra.mxu0 0.0
    %5105 = vmatprep.subr.mxu0 0.0
    %5106 = vmatpush1.msra.mxu0 0.0
    %5107 = vmatprep.subr.mxu0 0.0
    %5108 = vmatpush1.msra.mxu0 0.0
    %5109 = vmatprep.subr.mxu0 0.0
    %5110 = vmatpush1.msra.mxu0 0.0
    %5111 = vmatprep.subr.mxu0 0.0
    %5112 = vmatpush1.msra.mxu0 0.0
    %5113 = vmatprep.subr.mxu0 0.0
    %5114 = vmatpush1.msra.mxu0 0.0
    %5115 = vmatprep.subr.mxu0 0.0
    %5116 = vmatpush1.msra.mxu0 0.0
    %5117 = vmatprep.subr.mxu0 0.0
    %5118 = vmatpush1.msra.mxu0 0.0
    %5119 = vmatprep.subr.mxu0 0.0
    %5120 = vmatpush1.msra.mxu0 0.0
    %5121 = vmatprep.subr.mxu0 0.0
    %5122 = vmatpush1.msra.mxu0 0.0
    %5123 = vmatprep.subr.mxu0 0.0
    %5124 = vmatpush1.msra.mxu0 0.0
    %5125 = vmatprep.subr.mxu0 0.0
    %5126 = vmatpush1.msra.mxu0 0.0
    %5127 = vmatprep.subr.mxu0 0.0
    %5128 = vmatpush1.msra.mxu0 0.0
    %5129 = vmatprep.subr.mxu0 0.0
    %5130 = vmatpush1.msra.mxu0 0.0
    %5131 = vmatprep.subr.mxu0 0.0
    %5132 = vmatpush1.msra.mxu0 0.0
    %5133 = vmatprep.subr.mxu0 0.0
    %5134 = vmatpush1.msra.mxu0 0.0
    %5135 = vmatprep.subr.mxu0 0.0
    %5136 = vmatpush1.msra.mxu0 0.0
    %5137 = vmatprep.subr.mxu0 0.0
    %5138 = vmatpush1.msra.mxu0 0.0
    %5139 = vmatprep.subr.mxu0 0.0
    %5140 = vmatpush1.msra.mxu0 0.0
    %5141 = vmatprep.subr.mxu0 0.0
    %5142 = vmatpush1.msra.mxu0 0.0
    %5143 = vmatprep.mubr.f32.mxu0 0.0
    %5144 = vmatmul.mubr.f32.gmra.mrb[0].mxu0 %v5077
    %v5145 = vpop.f32.mrb[0].mxu0
    %v5146 = vadd.f32 0.0, %v5145
    %v5147 = vpop.f32.mrb[0].mxu0
    %5148 = vdwg.mxu0
    %s5149 = scalar_lea.vmem %s17, 192
    %v5150 = vld [vmem:[%s5149] sm:$0xff]
    %v5151 = vld [vmem:[%s5149 + $0x8] sm:$0xff]
    %v5152 = vld [vmem:[%s5149 + $0x10] sm:$0xff]
    %v5153 = vld [vmem:[%s5149 + $0x18] sm:$0xff]
    %v5154 = vld [vmem:[%s5149 + $0x20] sm:$0xff]
    %v5155 = vld [vmem:[%s5149 + $0x28] sm:$0xff]
    %v5156 = vld [vmem:[%s5149 + $0x30] sm:$0xff]
    %v5157 = vld [vmem:[%s5149 + $0x38] sm:$0xff]
    %v5158 = vld [vmem:[%s5149 + $0x40] sm:$0xff]
    %v5159 = vld [vmem:[%s5149 + $0x48] sm:$0xff]
    %v5160 = vld [vmem:[%s5149 + $0x50] sm:$0xff]
    %v5161 = vld [vmem:[%s5149 + $0x58] sm:$0xff]
    %v5163 = vsel %vm4837, %v5146, 0
    %5165 = vmatprep.subr.mxu0 0.0
    %5166 = vmatpush1.msra.mxu0 %v5150
    %5167 = vmatprep.subr.mxu0 0.0
    %5168 = vmatpush1.msra.mxu0 %v5151
    %5169 = vmatprep.subr.mxu0 0.0
    %5170 = vmatpush1.msra.mxu0 %v5152
    %5171 = vmatprep.subr.mxu0 0.0
    %5172 = vmatpush1.msra.mxu0 %v5153
    %5173 = vmatprep.subr.mxu0 0.0
    %5174 = vmatpush1.msra.mxu0 %v5154
    %5175 = vmatprep.subr.mxu0 0.0
    %5176 = vmatpush1.msra.mxu0 %v5155
    %5177 = vmatprep.subr.mxu0 0.0
    %5178 = vmatpush1.msra.mxu0 %v5156
    %5179 = vmatprep.subr.mxu0 0.0
    %5180 = vmatpush1.msra.mxu0 %v5157
    %5181 = vmatprep.subr.mxu0 0.0
    %5182 = vmatpush1.msra.mxu0 %v5158
    %5183 = vmatprep.subr.mxu0 0.0
    %5184 = vmatpush1.msra.mxu0 %v5159
    %5185 = vmatprep.subr.mxu0 0.0
    %5186 = vmatpush1.msra.mxu0 %v5160
    %5187 = vmatprep.subr.mxu0 0.0
    %5188 = vmatpush1.msra.mxu0 %v5161
    %5189 = vmatprep.subr.mxu0 0.0
    %5190 = vmatpush1.msra.mxu0 0.0
    %5191 = vmatprep.subr.mxu0 0.0
    %5192 = vmatpush1.msra.mxu0 0.0
    %5193 = vmatprep.subr.mxu0 0.0
    %5194 = vmatpush1.msra.mxu0 0.0
    %5195 = vmatprep.subr.mxu0 0.0
    %5196 = vmatpush1.msra.mxu0 0.0
    %5197 = vmatprep.subr.mxu0 0.0
    %5198 = vmatpush1.msra.mxu0 0.0
    %5199 = vmatprep.subr.mxu0 0.0
    %5200 = vmatpush1.msra.mxu0 0.0
    %5201 = vmatprep.subr.mxu0 0.0
    %5202 = vmatpush1.msra.mxu0 0.0
    %5203 = vmatprep.subr.mxu0 0.0
    %5204 = vmatpush1.msra.mxu0 0.0
    %5205 = vmatprep.subr.mxu0 0.0
    %5206 = vmatpush1.msra.mxu0 0.0
    %5207 = vmatprep.subr.mxu0 0.0
    %5208 = vmatpush1.msra.mxu0 0.0
    %5209 = vmatprep.subr.mxu0 0.0
    %5210 = vmatpush1.msra.mxu0 0.0
    %5211 = vmatprep.subr.mxu0 0.0
    %5212 = vmatpush1.msra.mxu0 0.0
    %5213 = vmatprep.subr.mxu0 0.0
    %5214 = vmatpush1.msra.mxu0 0.0
    %5215 = vmatprep.subr.mxu0 0.0
    %5216 = vmatpush1.msra.mxu0 0.0
    %5217 = vmatprep.subr.mxu0 0.0
    %5218 = vmatpush1.msra.mxu0 0.0
    %5219 = vmatprep.subr.mxu0 0.0
    %5220 = vmatpush1.msra.mxu0 0.0
    %5221 = vmatprep.subr.mxu0 0.0
    %5222 = vmatpush1.msra.mxu0 0.0
    %5223 = vmatprep.subr.mxu0 0.0
    %5224 = vmatpush1.msra.mxu0 0.0
    %5225 = vmatprep.subr.mxu0 0.0
    %5226 = vmatpush1.msra.mxu0 0.0
    %5227 = vmatprep.subr.mxu0 0.0
    %5228 = vmatpush1.msra.mxu0 0.0
    %5229 = vmatprep.mubr.f32.mxu0 0.0
    %5230 = vmatmul.mubr.f32.gmra.mrb[0].mxu0 %v5163
    %v5231 = vpop.f32.mrb[0].mxu0
    %v5232 = vadd.f32 0.0, %v5231
    %v5233 = vpop.f32.mrb[0].mxu0
    %5234 = vdwg.mxu0
    %v5235 = vadd.f32 %v5073, %v5232
    %s5236 = scalar_lea.vmem %s16, 6
    %v5237 = vld [vmem:[%s5236] sm:$0x3]
    %v5239 = vsel %vm4748, %v5237, 0
    %5241 = vmatprep.subr.mxu0 0.0
    %5242 = vmatpush1.msra.mxu0 %v4737
    %5243 = vmatprep.subr.mxu0 0.0
    %5244 = vmatpush1.msra.mxu0 %v4753
    %5245 = vmatprep.subr.mxu0 0.0
    %5246 = vmatpush1.msra.mxu0 0.0
    %5247 = vmatprep.subr.mxu0 0.0
    %5248 = vmatpush1.msra.mxu0 0.0
    %5249 = vmatprep.subr.mxu0 0.0
    %5250 = vmatpush1.msra.mxu0 0.0
    %5251 = vmatprep.subr.mxu0 0.0
    %5252 = vmatpush1.msra.mxu0 0.0
    %5253 = vmatprep.subr.mxu0 0.0
    %5254 = vmatpush1.msra.mxu0 0.0
    %5255 = vmatprep.subr.mxu0 0.0
    %5256 = vmatpush1.msra.mxu0 0.0
    %5257 = vmatprep.subr.mxu0 0.0
    %5258 = vmatpush1.msra.mxu0 0.0
    %5259 = vmatprep.subr.mxu0 0.0
    %5260 = vmatpush1.msra.mxu0 0.0
    %5261 = vmatprep.subr.mxu0 0.0
    %5262 = vmatpush1.msra.mxu0 0.0
    %5263 = vmatprep.subr.mxu0 0.0
    %5264 = vmatpush1.msra.mxu0 0.0
    %5265 = vmatprep.subr.mxu0 0.0
    %5266 = vmatpush1.msra.mxu0 0.0
    %5267 = vmatprep.subr.mxu0 0.0
    %5268 = vmatpush1.msra.mxu0 0.0
    %5269 = vmatprep.subr.mxu0 0.0
    %5270 = vmatpush1.msra.mxu0 0.0
    %5271 = vmatprep.subr.mxu0 0.0
    %5272 = vmatpush1.msra.mxu0 0.0
    %5273 = vmatprep.subr.mxu0 0.0
    %5274 = vmatpush1.msra.mxu0 0.0
    %5275 = vmatprep.subr.mxu0 0.0
    %5276 = vmatpush1.msra.mxu0 0.0
    %5277 = vmatprep.subr.mxu0 0.0
    %5278 = vmatpush1.msra.mxu0 0.0
    %5279 = vmatprep.subr.mxu0 0.0
    %5280 = vmatpush1.msra.mxu0 0.0
    %5281 = vmatprep.subr.mxu0 0.0
    %5282 = vmatpush1.msra.mxu0 0.0
    %5283 = vmatprep.subr.mxu0 0.0
    %5284 = vmatpush1.msra.mxu0 0.0
    %5285 = vmatprep.subr.mxu0 0.0
    %5286 = vmatpush1.msra.mxu0 0.0
    %5287 = vmatprep.subr.mxu0 0.0
    %5288 = vmatpush1.msra.mxu0 0.0
    %5289 = vmatprep.subr.mxu0 0.0
    %5290 = vmatpush1.msra.mxu0 0.0
    %5291 = vmatprep.subr.mxu0 0.0
    %5292 = vmatpush1.msra.mxu0 0.0
    %5293 = vmatprep.subr.mxu0 0.0
    %5294 = vmatpush1.msra.mxu0 0.0
    %5295 = vmatprep.subr.mxu0 0.0
    %5296 = vmatpush1.msra.mxu0 0.0
    %5297 = vmatprep.subr.mxu0 0.0
    %5298 = vmatpush1.msra.mxu0 0.0
    %5299 = vmatprep.subr.mxu0 0.0
    %5300 = vmatpush1.msra.mxu0 0.0
    %5301 = vmatprep.subr.mxu0 0.0
    %5302 = vmatpush1.msra.mxu0 0.0
    %5303 = vmatprep.subr.mxu0 0.0
    %5304 = vmatpush1.msra.mxu0 0.0
    %5305 = vmatprep.mubr.f32.mxu0 0.0
    %5306 = vmatmul.mubr.f32.gmra.mrb[0].mxu0 %v5239
    %v5307 = vpop.f32.mrb[0].mxu0
    %v5308 = vadd.f32 0.0, %v5307
    %v5309 = vpop.f32.mrb[0].mxu0
    %5310 = vdwg.mxu0
    %s5311 = scalar_lea.vmem %s17, 288
    %v5312 = vld [vmem:[%s5311] sm:$0xff]
    %v5313 = vld [vmem:[%s5311 + $0x8] sm:$0xff]
    %v5314 = vld [vmem:[%s5311 + $0x10] sm:$0xff]
    %v5315 = vld [vmem:[%s5311 + $0x18] sm:$0xff]
    %v5316 = vld [vmem:[%s5311 + $0x20] sm:$0xff]
    %v5317 = vld [vmem:[%s5311 + $0x28] sm:$0xff]
    %v5318 = vld [vmem:[%s5311 + $0x30] sm:$0xff]
    %v5319 = vld [vmem:[%s5311 + $0x38] sm:$0xff]
    %v5320 = vld [vmem:[%s5311 + $0x40] sm:$0xff]
    %v5321 = vld [vmem:[%s5311 + $0x48] sm:$0xff]
    %v5322 = vld [vmem:[%s5311 + $0x50] sm:$0xff]
    %v5323 = vld [vmem:[%s5311 + $0x58] sm:$0xff]
    %v5325 = vsel %vm4837, %v5308, 0
    %5327 = vmatprep.subr.mxu0 0.0
    %5328 = vmatpush1.msra.mxu0 %v5312
    %5329 = vmatprep.subr.mxu0 0.0
    %5330 = vmatpush1.msra.mxu0 %v5313
    %5331 = vmatprep.subr.mxu0 0.0
    %5332 = vmatpush1.msra.mxu0 %v5314
    %5333 = vmatprep.subr.mxu0 0.0
    %5334 = vmatpush1.msra.mxu0 %v5315
    %5335 = vmatprep.subr.mxu0 0.0
    %5336 = vmatpush1.msra.mxu0 %v5316
    %5337 = vmatprep.subr.mxu0 0.0
    %5338 = vmatpush1.msra.mxu0 %v5317
    %5339 = vmatprep.subr.mxu0 0.0
    %5340 = vmatpush1.msra.mxu0 %v5318
    %5341 = vmatprep.subr.mxu0 0.0
    %5342 = vmatpush1.msra.mxu0 %v5319
    %5343 = vmatprep.subr.mxu0 0.0
    %5344 = vmatpush1.msra.mxu0 %v5320
    %5345 = vmatprep.subr.mxu0 0.0
    %5346 = vmatpush1.msra.mxu0 %v5321
    %5347 = vmatprep.subr.mxu0 0.0
    %5348 = vmatpush1.msra.mxu0 %v5322
    %5349 = vmatprep.subr.mxu0 0.0
    %5350 = vmatpush1.msra.mxu0 %v5323
    %5351 = vmatprep.subr.mxu0 0.0
    %5352 = vmatpush1.msra.mxu0 0.0
    %5353 = vmatprep.subr.mxu0 0.0
    %5354 = vmatpush1.msra.mxu0 0.0
    %5355 = vmatprep.subr.mxu0 0.0
    %5356 = vmatpush1.msra.mxu0 0.0
    %5357 = vmatprep.subr.mxu0 0.0
    %5358 = vmatpush1.msra.mxu0 0.0
    %5359 = vmatprep.subr.mxu0 0.0
    %5360 = vmatpush1.msra.mxu0 0.0
    %5361 = vmatprep.subr.mxu0 0.0
    %5362 = vmatpush1.msra.mxu0 0.0
    %5363 = vmatprep.subr.mxu0 0.0
    %5364 = vmatpush1.msra.mxu0 0.0
    %5365 = vmatprep.subr.mxu0 0.0
    %5366 = vmatpush1.msra.mxu0 0.0
    %5367 = vmatprep.subr.mxu0 0.0
    %5368 = vmatpush1.msra.mxu0 0.0
    %5369 = vmatprep.subr.mxu0 0.0
    %5370 = vmatpush1.msra.mxu0 0.0
    %5371 = vmatprep.subr.mxu0 0.0
    %5372 = vmatpush1.msra.mxu0 0.0
    %5373 = vmatprep.subr.mxu0 0.0
    %5374 = vmatpush1.msra.mxu0 0.0
    %5375 = vmatprep.subr.mxu0 0.0
    %5376 = vmatpush1.msra.mxu0 0.0
    %5377 = vmatprep.subr.mxu0 0.0
    %5378 = vmatpush1.msra.mxu0 0.0
    %5379 = vmatprep.subr.mxu0 0.0
    %5380 = vmatpush1.msra.mxu0 0.0
    %5381 = vmatprep.subr.mxu0 0.0
    %5382 = vmatpush1.msra.mxu0 0.0
    %5383 = vmatprep.subr.mxu0 0.0
    %5384 = vmatpush1.msra.mxu0 0.0
    %5385 = vmatprep.subr.mxu0 0.0
    %5386 = vmatpush1.msra.mxu0 0.0
    %5387 = vmatprep.subr.mxu0 0.0
    %5388 = vmatpush1.msra.mxu0 0.0
    %5389 = vmatprep.subr.mxu0 0.0
    %5390 = vmatpush1.msra.mxu0 0.0
    %5391 = vmatprep.mubr.f32.mxu0 0.0
    %5392 = vmatmul.mubr.f32.gmra.mrb[0].mxu0 %v5325
    %v5393 = vpop.f32.mrb[0].mxu0
    %v5394 = vadd.f32 0.0, %v5393
    %v5395 = vpop.f32.mrb[0].mxu0
    %5396 = vdwg.mxu0
    %v5397 = vadd.f32 %v5235, %v5394
    %vm5398 = vcmask 123904
    %5399 = vst.msk [vmem:[%s19] sm:$0x3] %vm5398, %v5397
    // Predicated region
    $region134: #{cnn_encoder_forward.1} parent=1 // pred_check
      _
    $region135: #{cnn_encoder_forward.1} parent=1 // pred_check_branch
      %5401 = sbr.rel (0) target = $region137
    $region136: #{cnn_encoder_forward.1} parent=1 // pred_region
      _
    $region137: #{cnn_encoder_forward.1} parent=1 // pred_fallthru
      _
    // Predicated region
    $region138: #{cnn_encoder_forward.1} parent=1 // pred_check
      _
    $region139: #{cnn_encoder_forward.1} parent=1 // pred_check_branch
      %5403 = sbr.rel (0) target = $region141
    $region140: #{cnn_encoder_forward.1} parent=1 // pred_region
      _
    $region141: #{cnn_encoder_forward.1} parent=1 // pred_fallthru
      _
    %5404 = vsyncpa [#allocation3], 1
    %5405 = vsyncpa [#allocation5], 1
    %5406 = vsyncpa [#allocation8], 1
    %5407 = vsyncpa [#allocation11], 1
    %5408 = vsyncpa [#allocation14], 1
    %5409 = vsyncpa [#allocation17], 1
    %5410 = vsyncpa [#allocation20], 1
    %5411 = vsyncpa [#allocation23], 1

</llo_original>
